<compile_context>
chip_gen: v7x
topology: tpu7x:2x2x1
jax: 0.10.0
libtpu: 0.0.40
codegen_flags: <defaults>
</compile_context>

<pallas_src>
import numpy as np
import jax
import jax.numpy as jnp
from jax.experimental import pallas as pl
from jax.experimental.pallas import tpu as pltpu


# ---------------------------------------------------------------------------
# Deterministic parameter construction (librosa slaney mel filterbank + hann)
# ---------------------------------------------------------------------------
def _hz_to_mel(freqs):
    freqs = np.asarray(freqs, dtype=np.float64)
    f_min, f_sp = 0.0, 200.0 / 3
    mels = (freqs - f_min) / f_sp
    min_log_hz = 1000.0
    min_log_mel = (min_log_hz - f_min) / f_sp
    logstep = np.log(6.4) / 27.0
    return np.where(
        freqs >= min_log_hz,
        min_log_mel + np.log(np.maximum(freqs, min_log_hz) / min_log_hz) / logstep,
        mels,
    )


def _mel_to_hz(mels):
    mels = np.asarray(mels, dtype=np.float64)
    f_min, f_sp = 0.0, 200.0 / 3
    freqs = f_min + f_sp * mels
    min_log_hz = 1000.0
    min_log_mel = (min_log_hz - f_min) / f_sp
    logstep = np.log(6.4) / 27.0
    return np.where(
        mels >= min_log_mel,
        min_log_hz * np.exp(logstep * (mels - min_log_mel)),
        freqs,
    )


def librosa_mel_fn(sr, n_fft, n_mels, fmin, fmax):
    """librosa.filters.mel with defaults (htk=False, norm='slaney')."""
    n_freq = n_fft // 2 + 1
    fftfreqs = np.linspace(0.0, sr / 2.0, n_freq)
    mel_f = _mel_to_hz(np.linspace(_hz_to_mel(fmin), _hz_to_mel(fmax), n_mels + 2))
    fdiff = np.diff(mel_f)
    ramps = mel_f[:, None] - fftfreqs[None, :]
    lower = -ramps[:-2] / fdiff[:-1, None]
    upper = ramps[2:] / fdiff[1:, None]
    weights = np.maximum(0.0, np.minimum(lower, upper))
    enorm = 2.0 / (mel_f[2 : n_mels + 2] - mel_f[:n_mels])
    weights = weights * enorm[:, None]
    return weights.astype(np.float32)  # (n_mels, n_freq)


def hann_window_periodic(win_length):
    n = np.arange(win_length, dtype=np.float64)
    return (0.5 - 0.5 * np.cos(2.0 * np.pi * n / win_length)).astype(np.float32)


def _round_up(x, m):
    return ((x + m - 1) // m) * m


# ---------------------------------------------------------------------------
# Pallas kernel: frames @ (win*DFT)  -> |.| -> @ mel_basis^T -> log(clamp)
#   - fused cos/sin weight, shipped pre-split into bf16 (hi, lo) halves
#   - DFT done as 3 bf16 MXU passes: hi*hi + lo*hi + hi*lo  (~f32 accuracy)
#   - mel projection uses default (single-pass) MXU precision
# ---------------------------------------------------------------------------
def _make_melspec_kernel(fp):
    def kernel(frames_ref, w_hi_ref, w_lo_ref, melT_ref, out_ref):
        f = frames_ref[...]                                   # (TR, n_fft) f32
        f_hi = f.astype(jnp.bfloat16)
        f_lo = (f - f_hi.astype(jnp.float32)).astype(jnp.bfloat16)
        w_hi = w_hi_ref[...]                                  # (n_fft, 2*FP) bf16
        w_lo = w_lo_ref[...]
        ri = jnp.dot(f_hi, w_hi, preferred_element_type=jnp.float32)
        ri = ri + jnp.dot(f_lo, w_hi, preferred_element_type=jnp.float32)
        ri = ri + jnp.dot(f_hi, w_lo, preferred_element_type=jnp.float32)
        re = ri[:, :fp]                                       # lane-aligned slices
        im = ri[:, fp:]
        mag = jnp.sqrt(re * re + im * im + 1e-9)              # torch.sqrt(|X|^2+1e-9)
        mel = jnp.dot(mag, melT_ref[...],
                      preferred_element_type=jnp.float32)     # (TR, MP)
        out_ref[...] = jnp.log(jnp.maximum(mel, 1e-5))

    return kernel


class MelSpecPallas:
    def __init__(self, n_fft=1024, hop_length=256, win_length=1024,
                 n_mel_channels=100, target_sample_rate=24000,
                 fmin=0, fmax=8000):
        assert win_length == n_fft, "kernel assumes win_length == n_fft (module default)"
        self.n_fft = n_fft
        self.hop_length = hop_length
        self.win_length = win_length
        self.n_mel_channels = n_mel_channels

        n_freq = n_fft // 2 + 1
        self.n_freq = n_freq

        mel_basis = librosa_mel_fn(target_sample_rate, n_fft, n_mel_channels,
                                   fmin, fmax)                # (n_mel, n_freq)

        # Only DFT bins that carry a nonzero mel weight contribute to the
        # output (bins above fmax have exactly zero weight), so trim the
        # frequency axis there and pad up to a lane multiple.
        nz_cols = np.flatnonzero(mel_basis.any(axis=0))
        n_used = int(nz_cols[-1]) + 1 if nz_cols.size else 1
        self.n_used = n_used
        self.FP = _round_up(n_used, 128)                      # padded freq (lane)
        self.MP = _round_up(n_mel_channels, 128)              # padded mel  (lane)

        window = hann_window_periodic(win_length).astype(np.float64)
        n = np.arange(n_fft, dtype=np.float64)
        k = np.arange(n_used, dtype=np.float64)
        ang = 2.0 * np.pi * np.outer(n, k) / n_fft            # (n_fft, n_used)

        # Fused [cos | -sin] windowed-DFT weight, zero-padded to 2*FP lanes.
        W = np.zeros((n_fft, 2 * self.FP), np.float64)
        W[:, :n_used] = window[:, None] * np.cos(ang)
        W[:, self.FP:self.FP + n_used] = -window[:, None] * np.sin(ang)
        W32 = jnp.asarray(W.astype(np.float32))
        w_hi = W32.astype(jnp.bfloat16)
        w_lo = (W32 - w_hi.astype(jnp.float32)).astype(jnp.bfloat16)
        self.w_hi = w_hi
        self.w_lo = w_lo

        melT = np.zeros((self.FP, self.MP), np.float32)
        melT[:n_used, :n_mel_channels] = mel_basis[:, :n_used].T
        self.melT = jnp.asarray(melT)

        self.mel_basis_np = mel_basis
        self.window_np = window.astype(np.float32)

    def __call__(self, audio):
        # audio: (B, L) float32
        B, L = audio.shape
        n_fft, hop = self.n_fft, self.hop_length
        pad = (n_fft - hop) // 2
        x = jnp.pad(audio.astype(jnp.float32), ((0, 0), (pad, pad)), mode="reflect")
        Lp = L + 2 * pad
        n_frames = 1 + (Lp - n_fft) // hop

        # Framing (overlapping gather) is XLA glue; matmuls run in the kernel.
        idx = np.arange(n_frames)[:, None] * hop + np.arange(n_fft)[None, :]
        frames = x[:, idx]                                    # (B, n_frames, n_fft)
        frames = frames.reshape(B * n_frames, n_fft)

        # Row tile: big enough to fill the MXU M dimension, adaptive for tiny
        # inputs so we don't pad a 24-row problem to 256 rows.
        R = B * n_frames
        if R >= 1024:
            TR = 256
        elif R >= 128:
            TR = 128
        else:
            TR = min(128, _round_up(max(R, 8), 32))
        Rp = _round_up(R, TR)
        if Rp != R:
            frames = jnp.pad(frames, ((0, Rp - R), (0, 0)))

        FP, MP = self.FP, self.MP
        # Constant weights (w_hi, w_lo, melT) are ~3.4 MiB; even double-buffered
        # by the default pipeline the total footprint is ~13 MiB, comfortably
        # under every generation's VMEM, so we skip pl.Buffered(1) plumbing.
        out = pl.pallas_call(
            _make_melspec_kernel(FP),
            out_shape=jax.ShapeDtypeStruct((Rp, MP), jnp.float32),
            grid_spec=pltpu.PrefetchScalarGridSpec(
                num_scalar_prefetch=0,
                grid=(Rp // TR,),
                in_specs=[
                    pl.BlockSpec((TR, n_fft), lambda i: (i, 0)),
                    pl.BlockSpec((n_fft, 2 * FP), lambda i: (0, 0)),
                    pl.BlockSpec((n_fft, 2 * FP), lambda i: (0, 0)),
                    pl.BlockSpec((FP, MP), lambda i: (0, 0)),
                ],
                out_specs=pl.BlockSpec((TR, MP), lambda i: (i, 0)),
            ),
            compiler_params=pltpu.CompilerParams(
                dimension_semantics=("parallel",),
                vmem_limit_bytes=48 * 1024 * 1024,   # <= v7x's 64 MiB physical
            ),
        )(frames, self.w_hi, self.w_lo, self.melT)

        out = out[:R, : self.n_mel_channels]                  # drop padding
        out = out.reshape(B, n_frames, self.n_mel_channels)
        return jnp.transpose(out, (0, 2, 1))                  # (B, n_mel, n_frames)

    # ------------------ numpy reference (mirrors the torch code) -----------
    def reference(self, audio_np):
        B, L = audio_np.shape
        n_fft, hop = self.n_fft, self.hop_length
        pad = (n_fft - hop) // 2
        x = np.pad(audio_np.astype(np.float64), ((0, 0), (pad, pad)), mode="reflect")
        Lp = L + 2 * pad
        n_frames = 1 + (Lp - n_fft) // hop
        idx = np.arange(n_frames)[:, None] * hop + np.arange(n_fft)[None, :]
        frames = x[:, idx] * self.window_np.astype(np.float64)[None, None, :]
        spec = np.fft.rfft(frames, n=n_fft, axis=-1)          # (B, n_frames, n_freq)
        mag = np.sqrt(spec.real ** 2 + spec.imag ** 2 + 1e-9)
        mel = mag @ self.mel_basis_np.astype(np.float64).T    # (B, n_frames, n_mel)
        mel = np.log(np.clip(mel, 1e-5, None))
        return np.transpose(mel, (0, 2, 1)).astype(np.float32)


if __name__ == "__main__":
    key = jax.random.PRNGKey(0)
    B, L = 2, 3072                                  # small audio, 12 frames/batch
    audio = jax.random.normal(key, (B, L), dtype=jnp.float32) * 0.1

    melspec = MelSpecPallas(n_fft=1024, hop_length=256, win_length=1024,
                            n_mel_channels=100, target_sample_rate=24000)

    out = melspec(audio)
    out = jax.block_until_ready(out)

    ref = melspec.reference(np.asarray(audio))
    assert out.shape == ref.shape == (B, 100, 12), (out.shape, ref.shape)
    np.testing.assert_allclose(np.asarray(out), ref, atol=1e-2, rtol=1e-2)

    print("KERNEL_OK")
</pallas_src>

<mosaic_0001>
module attributes {stable_mosaic.version = 11 : i64} {
  func.func @kernel(%arg0: i32, %arg1: memref<32x1024xf32, #tpu.memory_space<vmem>>, %arg2: memref<1024x768xbf16, #tpu.memory_space<vmem>>, %arg3: memref<1024x768xbf16, #tpu.memory_space<vmem>>, %arg4: memref<384x128xf32, #tpu.memory_space<vmem>>, %arg5: memref<32x128xf32, #tpu.memory_space<vmem>>) attributes {dimension_semantics = [#tpu.dimension_semantics<parallel>], iteration_bounds = array<i64: 1>, scalar_prefetch = 0 : i64, scratch_operands = 0 : i64, tpu.core_type = #tpu.core_type<tc>, window_params = [{transform_indices = @transform_0, window_bounds = array<i64: 32, 1024>}, {pipeline_mode = #tpu.pipeline_mode<synchronous>, transform_indices = @transform_1, window_bounds = array<i64: 1024, 768>}, {pipeline_mode = #tpu.pipeline_mode<synchronous>, transform_indices = @transform_2, window_bounds = array<i64: 1024, 768>}, {pipeline_mode = #tpu.pipeline_mode<synchronous>, transform_indices = @transform_3, window_bounds = array<i64: 384, 128>}, {transform_indices = @transform_4, window_bounds = array<i64: 32, 128>}]} {
    %c0 = arith.constant 0 : index
    %c0_0 = arith.constant 0 : index
    %0 = vector.load %arg1[%c0, %c0_0] : memref<32x1024xf32, #tpu.memory_space<vmem>>, vector<32x1024xf32>
    %1 = arith.truncf %0 : vector<32x1024xf32> to vector<32x1024xbf16>
    %2 = arith.extf %1 : vector<32x1024xbf16> to vector<32x1024xf32>
    %3 = arith.subf %0, %2 : vector<32x1024xf32>
    %4 = arith.truncf %3 : vector<32x1024xf32> to vector<32x1024xbf16>
    %c0_1 = arith.constant 0 : index
    %c0_2 = arith.constant 0 : index
    %5 = vector.load %arg2[%c0_1, %c0_2] : memref<1024x768xbf16, #tpu.memory_space<vmem>>, vector<1024x768xbf16>
    %c0_3 = arith.constant 0 : index
    %c0_4 = arith.constant 0 : index
    %6 = vector.load %arg3[%c0_3, %c0_4] : memref<1024x768xbf16, #tpu.memory_space<vmem>>, vector<1024x768xbf16>
    %cst = arith.constant dense<0.000000e+00> : vector<32x768xf32>
    %7 = tpu.matmul %1, %5, %cst {dimension_numbers = #tpu.dot_dimension_numbers<[1], [0], [0], [1], [0, 0, 1, 1], [], []>} : vector<32x1024xbf16>, vector<1024x768xbf16>, vector<32x768xf32> -> vector<32x768xf32>
    %cst_5 = arith.constant dense<0.000000e+00> : vector<32x768xf32>
    %8 = tpu.matmul %4, %5, %cst_5 {dimension_numbers = #tpu.dot_dimension_numbers<[1], [0], [0], [1], [0, 0, 1, 1], [], []>} : vector<32x1024xbf16>, vector<1024x768xbf16>, vector<32x768xf32> -> vector<32x768xf32>
    %9 = arith.addf %7, %8 : vector<32x768xf32>
    %cst_6 = arith.constant dense<0.000000e+00> : vector<32x768xf32>
    %10 = tpu.matmul %1, %6, %cst_6 {dimension_numbers = #tpu.dot_dimension_numbers<[1], [0], [0], [1], [0, 0, 1, 1], [], []>} : vector<32x1024xbf16>, vector<1024x768xbf16>, vector<32x768xf32> -> vector<32x768xf32>
    %11 = arith.addf %9, %10 : vector<32x768xf32>
    %12 = vector.extract_strided_slice %11 {offsets = [0, 0], sizes = [32, 384], strides = [1, 1]} : vector<32x768xf32> to vector<32x384xf32>
    %13 = vector.extract_strided_slice %11 {offsets = [0, 384], sizes = [32, 384], strides = [1, 1]} : vector<32x768xf32> to vector<32x384xf32>
    %14 = arith.mulf %12, %12 : vector<32x384xf32>
    %15 = arith.mulf %13, %13 : vector<32x384xf32>
    %16 = arith.addf %14, %15 : vector<32x384xf32>
    %cst_7 = arith.constant 9.99999971E-10 : f32
    %17 = vector.broadcast %cst_7 : f32 to vector<32x384xf32>
    %18 = arith.addf %16, %17 : vector<32x384xf32>
    %19 = math.sqrt %18 : vector<32x384xf32>
    %c0_8 = arith.constant 0 : index
    %c0_9 = arith.constant 0 : index
    %20 = vector.load %arg4[%c0_8, %c0_9] : memref<384x128xf32, #tpu.memory_space<vmem>>, vector<384x128xf32>
    %cst_10 = arith.constant dense<0.000000e+00> : vector<32x128xf32>
    %21 = tpu.matmul %19, %20, %cst_10 {dimension_numbers = #tpu.dot_dimension_numbers<[1], [0], [0], [1], [0, 0, 1, 1], [], []>} : vector<32x384xf32>, vector<384x128xf32>, vector<32x128xf32> -> vector<32x128xf32>
    %cst_11 = arith.constant 9.99999974E-6 : f32
    %22 = vector.broadcast %cst_11 : f32 to vector<32x128xf32>
    %23 = arith.maximumf %21, %22 : vector<32x128xf32>
    %24 = math.log %23 : vector<32x128xf32>
    %c0_12 = arith.constant 0 : index
    %c0_13 = arith.constant 0 : index
    %25 = vector.load %arg5[%c0_12, %c0_13] : memref<32x128xf32, #tpu.memory_space<vmem>>, vector<32x128xf32>
    tpu.vector_store %arg5[%c0_12, %c0_13], %24 {strides = array<i32>} : memref<32x128xf32, #tpu.memory_space<vmem>>, vector<32x128xf32>,
    return
  }
  func.func @transform_0(%arg0: i32) -> (i32, i32) {
    %c0_i32 = arith.constant 0 : i32
    %c0_i32_0 = arith.constant 0 : i32
    return %arg0, %c0_i32 : i32, i32
  }
  func.func @transform_1(%arg0: i32) -> (i32, i32) {
    %c0_i32 = arith.constant 0 : i32
    %c0_i32_0 = arith.constant 0 : i32
    %c0_i32_1 = arith.constant 0 : i32
    return %c0_i32, %c0_i32_0 : i32, i32
  }
  func.func @transform_2(%arg0: i32) -> (i32, i32) {
    %c0_i32 = arith.constant 0 : i32
    %c0_i32_0 = arith.constant 0 : i32
    %c0_i32_1 = arith.constant 0 : i32
    return %c0_i32, %c0_i32_0 : i32, i32
  }
  func.func @transform_3(%arg0: i32) -> (i32, i32) {
    %c0_i32 = arith.constant 0 : i32
    %c0_i32_0 = arith.constant 0 : i32
    %c0_i32_1 = arith.constant 0 : i32
    return %c0_i32, %c0_i32_0 : i32, i32
  }
  func.func @transform_4(%arg0: i32) -> (i32, i32) {
    %c0_i32 = arith.constant 0 : i32
    %c0_i32_0 = arith.constant 0 : i32
    return %arg0, %c0_i32 : i32, i32
  }
}

</mosaic_0001>

<llo_original>
// kernel: tpu_custom_call.1
$region0: #{tpu_custom_call.1}
  #allocation0 [shape = 'u32[]', space=smem, size = 0x4, offset = 0x4, fixed_abs, tag = 'smem constant byte address 0x4 - core index']
  #allocation1 [shape = 'u32[144,128]{1,0:T(1,128)}', space=vmem, size = 0x12000, scoped, tag = 'internal scratch']
  %s0 = inlined_call_operand.hbm [shape: f32[32,1024], index: 0, kind: input, shape index: {}]
  %s1 = inlined_call_operand.hbm [shape: bf16[1024,768], index: 1, kind: input, shape index: {}]
  %s2 = inlined_call_operand.hbm [shape: bf16[1024,768], index: 2, kind: input, shape index: {}]
  %s3 = inlined_call_operand.hbm [shape: f32[384,128], index: 3, kind: input, shape index: {}]
  %s4 = inlined_call_operand.hbm [shape: f32[32,128], index: 4, kind: output, shape index: {}]
  %s5 = sld [smem:[#allocation0]]
  $region42: #{tpu_custom_call.1} parent=0
    _
  %s7 = ssub.s32 1, %s5
  %s8 = scalar_select 0, %s7, %s5
  $region1: #{tpu_custom_call.1} parent=0
    #allocation2 [shape = 'u8[131072]{0}', space=vmem, size = 0x20000, scoped, tag = 'input window, operand 0, single buffered']
    #allocation3 [shape = 's32[1]{0}', space=sflag, size = 0x4, scoped, tag = 'scoped memory for tpu_custom_call.1']
    #allocation4 [shape = 's32[1]{0}', space=sflag, size = 0x4, scoped, tag = 'scoped memory for tpu_custom_call.1']
    #allocation5 [shape = 'u8[1572864]{0}', space=vmem, size = 0x180000, scoped, tag = 'input window, operand 1, single buffered']
    #allocation6 [shape = 's32[1]{0}', space=sflag, size = 0x4, scoped, tag = 'scoped memory for tpu_custom_call.1']
    #allocation7 [shape = 'u8[1572864]{0}', space=vmem, size = 0x180000, scoped, tag = 'input window, operand 2, single buffered']
    #allocation8 [shape = 'u8[196608]{0}', space=vmem, size = 0x30000, scoped, tag = 'input window, operand 3, single buffered']
    #allocation9 [shape = 's32[1]{0}', space=sflag, size = 0x4, scoped, tag = 'scoped memory for tpu_custom_call.1']
    #allocation10 [shape = 'u8[16384]{0}', space=vmem, size = 0x4000, scoped, tag = 'output window, operand 0, single buffered']
    %9 = vsyncpa [#allocation3], 0
    %10 = vsyncpa [#allocation6], 0
    %11 = vsyncpa [#allocation9], 0
    %12 = vsyncpa [#allocation4], 0
    // Predicated region
    $region2: #{tpu_custom_call.1} parent=1 // pred_check
      _
    $region3: #{tpu_custom_call.1} parent=1 // pred_check_branch
      %14 = sbr.rel (0) target = $region5
    $region4: #{tpu_custom_call.1} parent=1 // pred_region
      %s16 = ssub.s32 4096, 4096
      %17 = vsyncadd [#allocation3], %s16
      %s18 = sshll.u32 [#allocation2], 4
      %s19 = int_to_ptr.vmem [resolvable:$true] %s18
      %24 = dma.hbm_to_vmem [thread:$0]  %s0, 4096, %s19, [#allocation3], 1024, 1024, 64
    $region5: #{tpu_custom_call.1} parent=1 // pred_fallthru
      _
    // Predicated region
    $region6: #{tpu_custom_call.1} parent=1 // pred_check
      _
    $region7: #{tpu_custom_call.1} parent=1 // pred_check_branch
      %26 = sbr.rel (0) target = $region9
    $region8: #{tpu_custom_call.1} parent=1 // pred_region
      %s28 = ssub.s32 49152, 49152
      %29 = vsyncadd [#allocation6], %s28
      %s30 = sshll.u32 [#allocation5], 4
      %s31 = int_to_ptr.vmem [resolvable:$true] %s30
      %36 = dma.hbm_to_vmem [thread:$0]  %s1, 49152, %s31, [#allocation6], 384, 384, 24
    $region9: #{tpu_custom_call.1} parent=1 // pred_fallthru
      _
    // Predicated region
    $region10: #{tpu_custom_call.1} parent=1 // pred_check
      _
    $region11: #{tpu_custom_call.1} parent=1 // pred_check_branch
      %38 = sbr.rel (0) target = $region13
    $region12: #{tpu_custom_call.1} parent=1 // pred_region
      %s40 = ssub.s32 49152, 49152
      %41 = vsyncadd [#allocation6], %s40
      %s42 = sshll.u32 [#allocation7], 4
      %s43 = int_to_ptr.vmem [resolvable:$true] %s42
      %48 = dma.hbm_to_vmem [thread:$0]  %s2, 49152, %s43, [#allocation6], 384, 384, 24
    $region13: #{tpu_custom_call.1} parent=1 // pred_fallthru
      _
    // Predicated region
    $region14: #{tpu_custom_call.1} parent=1 // pred_check
      _
    $region15: #{tpu_custom_call.1} parent=1 // pred_check_branch
      %50 = sbr.rel (0) target = $region17
    $region16: #{tpu_custom_call.1} parent=1 // pred_region
      %s52 = ssub.s32 6144, 6144
      %53 = vsyncadd [#allocation9], %s52
      %s54 = sshll.u32 [#allocation8], 4
      %s55 = int_to_ptr.vmem [resolvable:$true] %s54
      %60 = dma.hbm_to_vmem [thread:$0]  %s3, 6144, %s55, [#allocation9], 128, 128, 8
    $region17: #{tpu_custom_call.1} parent=1 // pred_fallthru
      _
    // Predicated region
    $region18: #{tpu_custom_call.1} parent=1 // pred_check
      _
    $region19: #{tpu_custom_call.1} parent=1 // pred_check_branch
      %62 = sbr.rel (0) target = $region21
    $region20: #{tpu_custom_call.1} parent=1 // pred_region
      %63 = dma.done [#allocation3], 4096
    $region21: #{tpu_custom_call.1} parent=1 // pred_fallthru
      _
    // Predicated region
    $region22: #{tpu_custom_call.1} parent=1 // pred_check
      _
    $region23: #{tpu_custom_call.1} parent=1 // pred_check_branch
      %65 = sbr.rel (0) target = $region25
    $region24: #{tpu_custom_call.1} parent=1 // pred_region
      %66 = dma.done [#allocation6], 49152
    $region25: #{tpu_custom_call.1} parent=1 // pred_fallthru
      _
    // Predicated region
    $region26: #{tpu_custom_call.1} parent=1 // pred_check
      _
    $region27: #{tpu_custom_call.1} parent=1 // pred_check_branch
      %68 = sbr.rel (0) target = $region29
    $region28: #{tpu_custom_call.1} parent=1 // pred_region
      %69 = dma.done [#allocation6], 49152
    $region29: #{tpu_custom_call.1} parent=1 // pred_fallthru
      _
    // Predicated region
    $region30: #{tpu_custom_call.1} parent=1 // pred_check
      _
    $region31: #{tpu_custom_call.1} parent=1 // pred_check_branch
      %71 = sbr.rel (0) target = $region33
    $region32: #{tpu_custom_call.1} parent=1 // pred_region
      %72 = dma.done [#allocation9], 6144
    $region33: #{tpu_custom_call.1} parent=1 // pred_fallthru
      _
    %v73 = vld [vmem:[#allocation2] sm:$0xff]
    %v74 = vld [vmem:[#allocation2 + $0x8] sm:$0xff]
    %v75 = vld [vmem:[#allocation2 + $0x10] sm:$0xff]
    %v76 = vld [vmem:[#allocation2 + $0x18] sm:$0xff]
    %v77 = vld [vmem:[#allocation2 + $0x20] sm:$0xff]
    %v78 = vld [vmem:[#allocation2 + $0x28] sm:$0xff]
    %v79 = vld [vmem:[#allocation2 + $0x30] sm:$0xff]
    %v80 = vld [vmem:[#allocation2 + $0x38] sm:$0xff]
    %v81 = vld [vmem:[#allocation2 + $0x40] sm:$0xff]
    %v82 = vld [vmem:[#allocation2 + $0x48] sm:$0xff]
    %v83 = vld [vmem:[#allocation2 + $0x50] sm:$0xff]
    %v84 = vld [vmem:[#allocation2 + $0x58] sm:$0xff]
    %v85 = vld [vmem:[#allocation2 + $0x60] sm:$0xff]
    %v86 = vld [vmem:[#allocation2 + $0x68] sm:$0xff]
    %v87 = vld [vmem:[#allocation2 + $0x70] sm:$0xff]
    %v88 = vld [vmem:[#allocation2 + $0x78] sm:$0xff]
    %v89 = vld [vmem:[#allocation2 + $0x80] sm:$0xff]
    %v90 = vld [vmem:[#allocation2 + $0x88] sm:$0xff]
    %v91 = vld [vmem:[#allocation2 + $0x90] sm:$0xff]
    %v92 = vld [vmem:[#allocation2 + $0x98] sm:$0xff]
    %v93 = vld [vmem:[#allocation2 + $0xa0] sm:$0xff]
    %v94 = vld [vmem:[#allocation2 + $0xa8] sm:$0xff]
    %v95 = vld [vmem:[#allocation2 + $0xb0] sm:$0xff]
    %v96 = vld [vmem:[#allocation2 + $0xb8] sm:$0xff]
    %v97 = vld [vmem:[#allocation2 + $0xc0] sm:$0xff]
    %v98 = vld [vmem:[#allocation2 + $0xc8] sm:$0xff]
    %v99 = vld [vmem:[#allocation2 + $0xd0] sm:$0xff]
    %v100 = vld [vmem:[#allocation2 + $0xd8] sm:$0xff]
    %v101 = vld [vmem:[#allocation2 + $0xe0] sm:$0xff]
    %v102 = vld [vmem:[#allocation2 + $0xe8] sm:$0xff]
    %v103 = vld [vmem:[#allocation2 + $0xf0] sm:$0xff]
    %v104 = vld [vmem:[#allocation2 + $0xf8] sm:$0xff]
    %v105 = vpack.c.bf16 %v81, %v73
    %v106 = vpack.c.bf16 %v82, %v74
    %v107 = vpack.c.bf16 %v83, %v75
    %v108 = vpack.c.bf16 %v84, %v76
    %v109 = vpack.c.bf16 %v85, %v77
    %v110 = vpack.c.bf16 %v86, %v78
    %v111 = vpack.c.bf16 %v87, %v79
    %v112 = vpack.c.bf16 %v88, %v80
    %v113 = vpack.c.bf16 %v97, %v89
    %v114 = vpack.c.bf16 %v98, %v90
    %v115 = vpack.c.bf16 %v99, %v91
    %v116 = vpack.c.bf16 %v100, %v92
    %v117 = vpack.c.bf16 %v101, %v93
    %v118 = vpack.c.bf16 %v102, %v94
    %v119 = vpack.c.bf16 %v103, %v95
    %v120 = vpack.c.bf16 %v104, %v96
    %v121 = vunpack.c.l.bf16 %v105
    %v122 = vunpack.c.l.bf16 %v106
    %v123 = vunpack.c.l.bf16 %v107
    %v124 = vunpack.c.l.bf16 %v108
    %v125 = vunpack.c.l.bf16 %v109
    %v126 = vunpack.c.l.bf16 %v110
    %v127 = vunpack.c.l.bf16 %v111
    %v128 = vunpack.c.l.bf16 %v112
    %v129 = vunpack.c.h.bf16 %v105
    %v130 = vunpack.c.h.bf16 %v106
    %v131 = vunpack.c.h.bf16 %v107
    %v132 = vunpack.c.h.bf16 %v108
    %v133 = vunpack.c.h.bf16 %v109
    %v134 = vunpack.c.h.bf16 %v110
    %v135 = vunpack.c.h.bf16 %v111
    %v136 = vunpack.c.h.bf16 %v112
    %v137 = vunpack.c.l.bf16 %v113
    %v138 = vunpack.c.l.bf16 %v114
    %v139 = vunpack.c.l.bf16 %v115
    %v140 = vunpack.c.l.bf16 %v116
    %v141 = vunpack.c.l.bf16 %v117
    %v142 = vunpack.c.l.bf16 %v118
    %v143 = vunpack.c.l.bf16 %v119
    %v144 = vunpack.c.l.bf16 %v120
    %v145 = vunpack.c.h.bf16 %v113
    %v146 = vunpack.c.h.bf16 %v114
    %v147 = vunpack.c.h.bf16 %v115
    %v148 = vunpack.c.h.bf16 %v116
    %v149 = vunpack.c.h.bf16 %v117
    %v150 = vunpack.c.h.bf16 %v118
    %v151 = vunpack.c.h.bf16 %v119
    %v152 = vunpack.c.h.bf16 %v120
    %v153 = vsub.f32 %v73, %v121
    %v154 = vsub.f32 %v74, %v122
    %v155 = vsub.f32 %v75, %v123
    %v156 = vsub.f32 %v76, %v124
    %v157 = vsub.f32 %v77, %v125
    %v158 = vsub.f32 %v78, %v126
    %v159 = vsub.f32 %v79, %v127
    %v160 = vsub.f32 %v80, %v128
    %v161 = vsub.f32 %v81, %v129
    %v162 = vsub.f32 %v82, %v130
    %v163 = vsub.f32 %v83, %v131
    %v164 = vsub.f32 %v84, %v132
    %v165 = vsub.f32 %v85, %v133
    %v166 = vsub.f32 %v86, %v134
    %v167 = vsub.f32 %v87, %v135
    %v168 = vsub.f32 %v88, %v136
    %v169 = vsub.f32 %v89, %v137
    %v170 = vsub.f32 %v90, %v138
    %v171 = vsub.f32 %v91, %v139
    %v172 = vsub.f32 %v92, %v140
    %v173 = vsub.f32 %v93, %v141
    %v174 = vsub.f32 %v94, %v142
    %v175 = vsub.f32 %v95, %v143
    %v176 = vsub.f32 %v96, %v144
    %v177 = vsub.f32 %v97, %v145
    %v178 = vsub.f32 %v98, %v146
    %v179 = vsub.f32 %v99, %v147
    %v180 = vsub.f32 %v100, %v148
    %v181 = vsub.f32 %v101, %v149
    %v182 = vsub.f32 %v102, %v150
    %v183 = vsub.f32 %v103, %v151
    %v184 = vsub.f32 %v104, %v152
    %v185 = vpack.c.bf16 %v161, %v153
    %v186 = vpack.c.bf16 %v162, %v154
    %v187 = vpack.c.bf16 %v163, %v155
    %v188 = vpack.c.bf16 %v164, %v156
    %v189 = vpack.c.bf16 %v165, %v157
    %v190 = vpack.c.bf16 %v166, %v158
    %v191 = vpack.c.bf16 %v167, %v159
    %v192 = vpack.c.bf16 %v168, %v160
    %v193 = vpack.c.bf16 %v177, %v169
    %v194 = vpack.c.bf16 %v178, %v170
    %v195 = vpack.c.bf16 %v179, %v171
    %v196 = vpack.c.bf16 %v180, %v172
    %v197 = vpack.c.bf16 %v181, %v173
    %v198 = vpack.c.bf16 %v182, %v174
    %v199 = vpack.c.bf16 %v183, %v175
    %v200 = vpack.c.bf16 %v184, %v176
    %v201 = vld [vmem:[#allocation5] sm:$0xff]
    %v202 = vld [vmem:[#allocation5 + $0x8] sm:$0xff]
    %v203 = vld [vmem:[#allocation5 + $0x10] sm:$0xff]
    %v204 = vld [vmem:[#allocation5 + $0x18] sm:$0xff]
    %v205 = vld [vmem:[#allocation5 + $0x20] sm:$0xff]
    %v206 = vld [vmem:[#allocation5 + $0x28] sm:$0xff]
    %v207 = vld [vmem:[#allocation5 + $0x30] sm:$0xff]
    %v208 = vld [vmem:[#allocation5 + $0x38] sm:$0xff]
    %v209 = vld [vmem:[#allocation5 + $0x40] sm:$0xff]
    %v210 = vld [vmem:[#allocation5 + $0x48] sm:$0xff]
    %v211 = vld [vmem:[#allocation5 + $0x50] sm:$0xff]
    %v212 = vld [vmem:[#allocation5 + $0x58] sm:$0xff]
    %v213 = vld [vmem:[#allocation5 + $0x60] sm:$0xff]
    %v214 = vld [vmem:[#allocation5 + $0x68] sm:$0xff]
    %v215 = vld [vmem:[#allocation5 + $0x70] sm:$0xff]
    %v216 = vld [vmem:[#allocation5 + $0x78] sm:$0xff]
    %v217 = vld [vmem:[#allocation5 + $0x80] sm:$0xff]
    %v218 = vld [vmem:[#allocation5 + $0x88] sm:$0xff]
    %v219 = vld [vmem:[#allocation5 + $0x90] sm:$0xff]
    %v220 = vld [vmem:[#allocation5 + $0x98] sm:$0xff]
    %v221 = vld [vmem:[#allocation5 + $0xa0] sm:$0xff]
    %v222 = vld [vmem:[#allocation5 + $0xa8] sm:$0xff]
    %v223 = vld [vmem:[#allocation5 + $0xb0] sm:$0xff]
    %v224 = vld [vmem:[#allocation5 + $0xb8] sm:$0xff]
    %v225 = vld [vmem:[#allocation5 + $0xc0] sm:$0xff]
    %v226 = vld [vmem:[#allocation5 + $0xc8] sm:$0xff]
    %v227 = vld [vmem:[#allocation5 + $0xd0] sm:$0xff]
    %v228 = vld [vmem:[#allocation5 + $0xd8] sm:$0xff]
    %v229 = vld [vmem:[#allocation5 + $0xe0] sm:$0xff]
    %v230 = vld [vmem:[#allocation5 + $0xe8] sm:$0xff]
    %v231 = vld [vmem:[#allocation5 + $0xf0] sm:$0xff]
    %v232 = vld [vmem:[#allocation5 + $0xf8] sm:$0xff]
    %v233 = vld [vmem:[#allocation5 + $0x100] sm:$0xff]
    %v234 = vld [vmem:[#allocation5 + $0x108] sm:$0xff]
    %v235 = vld [vmem:[#allocation5 + $0x110] sm:$0xff]
    %v236 = vld [vmem:[#allocation5 + $0x118] sm:$0xff]
    %v237 = vld [vmem:[#allocation5 + $0x120] sm:$0xff]
    %v238 = vld [vmem:[#allocation5 + $0x128] sm:$0xff]
    %v239 = vld [vmem:[#allocation5 + $0x130] sm:$0xff]
    %v240 = vld [vmem:[#allocation5 + $0x138] sm:$0xff]
    %v241 = vld [vmem:[#allocation5 + $0x140] sm:$0xff]
    %v242 = vld [vmem:[#allocation5 + $0x148] sm:$0xff]
    %v243 = vld [vmem:[#allocation5 + $0x150] sm:$0xff]
    %v244 = vld [vmem:[#allocation5 + $0x158] sm:$0xff]
    %v245 = vld [vmem:[#allocation5 + $0x160] sm:$0xff]
    %v246 = vld [vmem:[#allocation5 + $0x168] sm:$0xff]
    %v247 = vld [vmem:[#allocation5 + $0x170] sm:$0xff]
    %v248 = vld [vmem:[#allocation5 + $0x178] sm:$0xff]
    %v249 = vld [vmem:[#allocation5 + $0x180] sm:$0xff]
    %v250 = vld [vmem:[#allocation5 + $0x188] sm:$0xff]
    %v251 = vld [vmem:[#allocation5 + $0x190] sm:$0xff]
    %v252 = vld [vmem:[#allocation5 + $0x198] sm:$0xff]
    %v253 = vld [vmem:[#allocation5 + $0x1a0] sm:$0xff]
    %v254 = vld [vmem:[#allocation5 + $0x1a8] sm:$0xff]
    %v255 = vld [vmem:[#allocation5 + $0x1b0] sm:$0xff]
    %v256 = vld [vmem:[#allocation5 + $0x1b8] sm:$0xff]
    %v257 = vld [vmem:[#allocation5 + $0x1c0] sm:$0xff]
    %v258 = vld [vmem:[#allocation5 + $0x1c8] sm:$0xff]
    %v259 = vld [vmem:[#allocation5 + $0x1d0] sm:$0xff]
    %v260 = vld [vmem:[#allocation5 + $0x1d8] sm:$0xff]
    %v261 = vld [vmem:[#allocation5 + $0x1e0] sm:$0xff]
    %v262 = vld [vmem:[#allocation5 + $0x1e8] sm:$0xff]
    %v263 = vld [vmem:[#allocation5 + $0x1f0] sm:$0xff]
    %v264 = vld [vmem:[#allocation5 + $0x1f8] sm:$0xff]
    %v265 = vld [vmem:[#allocation5 + $0x200] sm:$0xff]
    %v266 = vld [vmem:[#allocation5 + $0x208] sm:$0xff]
    %v267 = vld [vmem:[#allocation5 + $0x210] sm:$0xff]
    %v268 = vld [vmem:[#allocation5 + $0x218] sm:$0xff]
    %v269 = vld [vmem:[#allocation5 + $0x220] sm:$0xff]
    %v270 = vld [vmem:[#allocation5 + $0x228] sm:$0xff]
    %v271 = vld [vmem:[#allocation5 + $0x230] sm:$0xff]
    %v272 = vld [vmem:[#allocation5 + $0x238] sm:$0xff]
    %v273 = vld [vmem:[#allocation5 + $0x240] sm:$0xff]
    %v274 = vld [vmem:[#allocation5 + $0x248] sm:$0xff]
    %v275 = vld [vmem:[#allocation5 + $0x250] sm:$0xff]
    %v276 = vld [vmem:[#allocation5 + $0x258] sm:$0xff]
    %v277 = vld [vmem:[#allocation5 + $0x260] sm:$0xff]
    %v278 = vld [vmem:[#allocation5 + $0x268] sm:$0xff]
    %v279 = vld [vmem:[#allocation5 + $0x270] sm:$0xff]
    %v280 = vld [vmem:[#allocation5 + $0x278] sm:$0xff]
    %v281 = vld [vmem:[#allocation5 + $0x280] sm:$0xff]
    %v282 = vld [vmem:[#allocation5 + $0x288] sm:$0xff]
    %v283 = vld [vmem:[#allocation5 + $0x290] sm:$0xff]
    %v284 = vld [vmem:[#allocation5 + $0x298] sm:$0xff]
    %v285 = vld [vmem:[#allocation5 + $0x2a0] sm:$0xff]
    %v286 = vld [vmem:[#allocation5 + $0x2a8] sm:$0xff]
    %v287 = vld [vmem:[#allocation5 + $0x2b0] sm:$0xff]
    %v288 = vld [vmem:[#allocation5 + $0x2b8] sm:$0xff]
    %v289 = vld [vmem:[#allocation5 + $0x2c0] sm:$0xff]
    %v290 = vld [vmem:[#allocation5 + $0x2c8] sm:$0xff]
    %v291 = vld [vmem:[#allocation5 + $0x2d0] sm:$0xff]
    %v292 = vld [vmem:[#allocation5 + $0x2d8] sm:$0xff]
    %v293 = vld [vmem:[#allocation5 + $0x2e0] sm:$0xff]
    %v294 = vld [vmem:[#allocation5 + $0x2e8] sm:$0xff]
    %v295 = vld [vmem:[#allocation5 + $0x2f0] sm:$0xff]
    %v296 = vld [vmem:[#allocation5 + $0x2f8] sm:$0xff]
    %v297 = vld [vmem:[#allocation5 + $0x300] sm:$0xff]
    %v298 = vld [vmem:[#allocation5 + $0x308] sm:$0xff]
    %v299 = vld [vmem:[#allocation5 + $0x310] sm:$0xff]
    %v300 = vld [vmem:[#allocation5 + $0x318] sm:$0xff]
    %v301 = vld [vmem:[#allocation5 + $0x320] sm:$0xff]
    %v302 = vld [vmem:[#allocation5 + $0x328] sm:$0xff]
    %v303 = vld [vmem:[#allocation5 + $0x330] sm:$0xff]
    %v304 = vld [vmem:[#allocation5 + $0x338] sm:$0xff]
    %v305 = vld [vmem:[#allocation5 + $0x340] sm:$0xff]
    %v306 = vld [vmem:[#allocation5 + $0x348] sm:$0xff]
    %v307 = vld [vmem:[#allocation5 + $0x350] sm:$0xff]
    %v308 = vld [vmem:[#allocation5 + $0x358] sm:$0xff]
    %v309 = vld [vmem:[#allocation5 + $0x360] sm:$0xff]
    %v310 = vld [vmem:[#allocation5 + $0x368] sm:$0xff]
    %v311 = vld [vmem:[#allocation5 + $0x370] sm:$0xff]
    %v312 = vld [vmem:[#allocation5 + $0x378] sm:$0xff]
    %v313 = vld [vmem:[#allocation5 + $0x380] sm:$0xff]
    %v314 = vld [vmem:[#allocation5 + $0x388] sm:$0xff]
    %v315 = vld [vmem:[#allocation5 + $0x390] sm:$0xff]
    %v316 = vld [vmem:[#allocation5 + $0x398] sm:$0xff]
    %v317 = vld [vmem:[#allocation5 + $0x3a0] sm:$0xff]
    %v318 = vld [vmem:[#allocation5 + $0x3a8] sm:$0xff]
    %v319 = vld [vmem:[#allocation5 + $0x3b0] sm:$0xff]
    %v320 = vld [vmem:[#allocation5 + $0x3b8] sm:$0xff]
    %v321 = vld [vmem:[#allocation5 + $0x3c0] sm:$0xff]
    %v322 = vld [vmem:[#allocation5 + $0x3c8] sm:$0xff]
    %v323 = vld [vmem:[#allocation5 + $0x3d0] sm:$0xff]
    %v324 = vld [vmem:[#allocation5 + $0x3d8] sm:$0xff]
    %v325 = vld [vmem:[#allocation5 + $0x3e0] sm:$0xff]
    %v326 = vld [vmem:[#allocation5 + $0x3e8] sm:$0xff]
    %v327 = vld [vmem:[#allocation5 + $0x3f0] sm:$0xff]
    %v328 = vld [vmem:[#allocation5 + $0x3f8] sm:$0xff]
    %v329 = vld [vmem:[#allocation5 + $0x400] sm:$0xff]
    %v330 = vld [vmem:[#allocation5 + $0x408] sm:$0xff]
    %v331 = vld [vmem:[#allocation5 + $0x410] sm:$0xff]
    %v332 = vld [vmem:[#allocation5 + $0x418] sm:$0xff]
    %v333 = vld [vmem:[#allocation5 + $0x420] sm:$0xff]
    %v334 = vld [vmem:[#allocation5 + $0x428] sm:$0xff]
    %v335 = vld [vmem:[#allocation5 + $0x430] sm:$0xff]
    %v336 = vld [vmem:[#allocation5 + $0x438] sm:$0xff]
    %v337 = vld [vmem:[#allocation5 + $0x440] sm:$0xff]
    %v338 = vld [vmem:[#allocation5 + $0x448] sm:$0xff]
    %v339 = vld [vmem:[#allocation5 + $0x450] sm:$0xff]
    %v340 = vld [vmem:[#allocation5 + $0x458] sm:$0xff]
    %v341 = vld [vmem:[#allocation5 + $0x460] sm:$0xff]
    %v342 = vld [vmem:[#allocation5 + $0x468] sm:$0xff]
    %v343 = vld [vmem:[#allocation5 + $0x470] sm:$0xff]
    %v344 = vld [vmem:[#allocation5 + $0x478] sm:$0xff]
    %v345 = vld [vmem:[#allocation5 + $0x480] sm:$0xff]
    %v346 = vld [vmem:[#allocation5 + $0x488] sm:$0xff]
    %v347 = vld [vmem:[#allocation5 + $0x490] sm:$0xff]
    %v348 = vld [vmem:[#allocation5 + $0x498] sm:$0xff]
    %v349 = vld [vmem:[#allocation5 + $0x4a0] sm:$0xff]
    %v350 = vld [vmem:[#allocation5 + $0x4a8] sm:$0xff]
    %v351 = vld [vmem:[#allocation5 + $0x4b0] sm:$0xff]
    %v352 = vld [vmem:[#allocation5 + $0x4b8] sm:$0xff]
    %v353 = vld [vmem:[#allocation5 + $0x4c0] sm:$0xff]
    %v354 = vld [vmem:[#allocation5 + $0x4c8] sm:$0xff]
    %v355 = vld [vmem:[#allocation5 + $0x4d0] sm:$0xff]
    %v356 = vld [vmem:[#allocation5 + $0x4d8] sm:$0xff]
    %v357 = vld [vmem:[#allocation5 + $0x4e0] sm:$0xff]
    %v358 = vld [vmem:[#allocation5 + $0x4e8] sm:$0xff]
    %v359 = vld [vmem:[#allocation5 + $0x4f0] sm:$0xff]
    %v360 = vld [vmem:[#allocation5 + $0x4f8] sm:$0xff]
    %v361 = vld [vmem:[#allocation5 + $0x500] sm:$0xff]
    %v362 = vld [vmem:[#allocation5 + $0x508] sm:$0xff]
    %v363 = vld [vmem:[#allocation5 + $0x510] sm:$0xff]
    %v364 = vld [vmem:[#allocation5 + $0x518] sm:$0xff]
    %v365 = vld [vmem:[#allocation5 + $0x520] sm:$0xff]
    %v366 = vld [vmem:[#allocation5 + $0x528] sm:$0xff]
    %v367 = vld [vmem:[#allocation5 + $0x530] sm:$0xff]
    %v368 = vld [vmem:[#allocation5 + $0x538] sm:$0xff]
    %v369 = vld [vmem:[#allocation5 + $0x540] sm:$0xff]
    %v370 = vld [vmem:[#allocation5 + $0x548] sm:$0xff]
    %v371 = vld [vmem:[#allocation5 + $0x550] sm:$0xff]
    %v372 = vld [vmem:[#allocation5 + $0x558] sm:$0xff]
    %v373 = vld [vmem:[#allocation5 + $0x560] sm:$0xff]
    %v374 = vld [vmem:[#allocation5 + $0x568] sm:$0xff]
    %v375 = vld [vmem:[#allocation5 + $0x570] sm:$0xff]
    %v376 = vld [vmem:[#allocation5 + $0x578] sm:$0xff]
    %v377 = vld [vmem:[#allocation5 + $0x580] sm:$0xff]
    %v378 = vld [vmem:[#allocation5 + $0x588] sm:$0xff]
    %v379 = vld [vmem:[#allocation5 + $0x590] sm:$0xff]
    %v380 = vld [vmem:[#allocation5 + $0x598] sm:$0xff]
    %v381 = vld [vmem:[#allocation5 + $0x5a0] sm:$0xff]
    %v382 = vld [vmem:[#allocation5 + $0x5a8] sm:$0xff]
    %v383 = vld [vmem:[#allocation5 + $0x5b0] sm:$0xff]
    %v384 = vld [vmem:[#allocation5 + $0x5b8] sm:$0xff]
    %v385 = vld [vmem:[#allocation5 + $0x5c0] sm:$0xff]
    %v386 = vld [vmem:[#allocation5 + $0x5c8] sm:$0xff]
    %v387 = vld [vmem:[#allocation5 + $0x5d0] sm:$0xff]
    %v388 = vld [vmem:[#allocation5 + $0x5d8] sm:$0xff]
    %v389 = vld [vmem:[#allocation5 + $0x5e0] sm:$0xff]
    %v390 = vld [vmem:[#allocation5 + $0x5e8] sm:$0xff]
    %v391 = vld [vmem:[#allocation5 + $0x5f0] sm:$0xff]
    %v392 = vld [vmem:[#allocation5 + $0x5f8] sm:$0xff]
    %v393 = vld [vmem:[#allocation5 + $0x600] sm:$0xff]
    %v394 = vld [vmem:[#allocation5 + $0x608] sm:$0xff]
    %v395 = vld [vmem:[#allocation5 + $0x610] sm:$0xff]
    %v396 = vld [vmem:[#allocation5 + $0x618] sm:$0xff]
    %v397 = vld [vmem:[#allocation5 + $0x620] sm:$0xff]
    %v398 = vld [vmem:[#allocation5 + $0x628] sm:$0xff]
    %v399 = vld [vmem:[#allocation5 + $0x630] sm:$0xff]
    %v400 = vld [vmem:[#allocation5 + $0x638] sm:$0xff]
    %v401 = vld [vmem:[#allocation5 + $0x640] sm:$0xff]
    %v402 = vld [vmem:[#allocation5 + $0x648] sm:$0xff]
    %v403 = vld [vmem:[#allocation5 + $0x650] sm:$0xff]
    %v404 = vld [vmem:[#allocation5 + $0x658] sm:$0xff]
    %v405 = vld [vmem:[#allocation5 + $0x660] sm:$0xff]
    %v406 = vld [vmem:[#allocation5 + $0x668] sm:$0xff]
    %v407 = vld [vmem:[#allocation5 + $0x670] sm:$0xff]
    %v408 = vld [vmem:[#allocation5 + $0x678] sm:$0xff]
    %v409 = vld [vmem:[#allocation5 + $0x680] sm:$0xff]
    %v410 = vld [vmem:[#allocation5 + $0x688] sm:$0xff]
    %v411 = vld [vmem:[#allocation5 + $0x690] sm:$0xff]
    %v412 = vld [vmem:[#allocation5 + $0x698] sm:$0xff]
    %v413 = vld [vmem:[#allocation5 + $0x6a0] sm:$0xff]
    %v414 = vld [vmem:[#allocation5 + $0x6a8] sm:$0xff]
    %v415 = vld [vmem:[#allocation5 + $0x6b0] sm:$0xff]
    %v416 = vld [vmem:[#allocation5 + $0x6b8] sm:$0xff]
    %v417 = vld [vmem:[#allocation5 + $0x6c0] sm:$0xff]
    %v418 = vld [vmem:[#allocation5 + $0x6c8] sm:$0xff]
    %v419 = vld [vmem:[#allocation5 + $0x6d0] sm:$0xff]
    %v420 = vld [vmem:[#allocation5 + $0x6d8] sm:$0xff]
    %v421 = vld [vmem:[#allocation5 + $0x6e0] sm:$0xff]
    %v422 = vld [vmem:[#allocation5 + $0x6e8] sm:$0xff]
    %v423 = vld [vmem:[#allocation5 + $0x6f0] sm:$0xff]
    %v424 = vld [vmem:[#allocation5 + $0x6f8] sm:$0xff]
    %v425 = vld [vmem:[#allocation5 + $0x700] sm:$0xff]
    %v426 = vld [vmem:[#allocation5 + $0x708] sm:$0xff]
    %v427 = vld [vmem:[#allocation5 + $0x710] sm:$0xff]
    %v428 = vld [vmem:[#allocation5 + $0x718] sm:$0xff]
    %v429 = vld [vmem:[#allocation5 + $0x720] sm:$0xff]
    %v430 = vld [vmem:[#allocation5 + $0x728] sm:$0xff]
    %v431 = vld [vmem:[#allocation5 + $0x730] sm:$0xff]
    %v432 = vld [vmem:[#allocation5 + $0x738] sm:$0xff]
    %v433 = vld [vmem:[#allocation5 + $0x740] sm:$0xff]
    %v434 = vld [vmem:[#allocation5 + $0x748] sm:$0xff]
    %v435 = vld [vmem:[#allocation5 + $0x750] sm:$0xff]
    %v436 = vld [vmem:[#allocation5 + $0x758] sm:$0xff]
    %v437 = vld [vmem:[#allocation5 + $0x760] sm:$0xff]
    %v438 = vld [vmem:[#allocation5 + $0x768] sm:$0xff]
    %v439 = vld [vmem:[#allocation5 + $0x770] sm:$0xff]
    %v440 = vld [vmem:[#allocation5 + $0x778] sm:$0xff]
    %v441 = vld [vmem:[#allocation5 + $0x780] sm:$0xff]
    %v442 = vld [vmem:[#allocation5 + $0x788] sm:$0xff]
    %v443 = vld [vmem:[#allocation5 + $0x790] sm:$0xff]
    %v444 = vld [vmem:[#allocation5 + $0x798] sm:$0xff]
    %v445 = vld [vmem:[#allocation5 + $0x7a0] sm:$0xff]
    %v446 = vld [vmem:[#allocation5 + $0x7a8] sm:$0xff]
    %v447 = vld [vmem:[#allocation5 + $0x7b0] sm:$0xff]
    %v448 = vld [vmem:[#allocation5 + $0x7b8] sm:$0xff]
    %v449 = vld [vmem:[#allocation5 + $0x7c0] sm:$0xff]
    %v450 = vld [vmem:[#allocation5 + $0x7c8] sm:$0xff]
    %v451 = vld [vmem:[#allocation5 + $0x7d0] sm:$0xff]
    %v452 = vld [vmem:[#allocation5 + $0x7d8] sm:$0xff]
    %v453 = vld [vmem:[#allocation5 + $0x7e0] sm:$0xff]
    %v454 = vld [vmem:[#allocation5 + $0x7e8] sm:$0xff]
    %v455 = vld [vmem:[#allocation5 + $0x7f0] sm:$0xff]
    %v456 = vld [vmem:[#allocation5 + $0x7f8] sm:$0xff]
    %v457 = vld [vmem:[#allocation5 + $0x800] sm:$0xff]
    %v458 = vld [vmem:[#allocation5 + $0x808] sm:$0xff]
    %v459 = vld [vmem:[#allocation5 + $0x810] sm:$0xff]
    %v460 = vld [vmem:[#allocation5 + $0x818] sm:$0xff]
    %v461 = vld [vmem:[#allocation5 + $0x820] sm:$0xff]
    %v462 = vld [vmem:[#allocation5 + $0x828] sm:$0xff]
    %v463 = vld [vmem:[#allocation5 + $0x830] sm:$0xff]
    %v464 = vld [vmem:[#allocation5 + $0x838] sm:$0xff]
    %v465 = vld [vmem:[#allocation5 + $0x840] sm:$0xff]
    %v466 = vld [vmem:[#allocation5 + $0x848] sm:$0xff]
    %v467 = vld [vmem:[#allocation5 + $0x850] sm:$0xff]
    %v468 = vld [vmem:[#allocation5 + $0x858] sm:$0xff]
    %v469 = vld [vmem:[#allocation5 + $0x860] sm:$0xff]
    %v470 = vld [vmem:[#allocation5 + $0x868] sm:$0xff]
    %v471 = vld [vmem:[#allocation5 + $0x870] sm:$0xff]
    %v472 = vld [vmem:[#allocation5 + $0x878] sm:$0xff]
    %v473 = vld [vmem:[#allocation5 + $0x880] sm:$0xff]
    %v474 = vld [vmem:[#allocation5 + $0x888] sm:$0xff]
    %v475 = vld [vmem:[#allocation5 + $0x890] sm:$0xff]
    %v476 = vld [vmem:[#allocation5 + $0x898] sm:$0xff]
    %v477 = vld [vmem:[#allocation5 + $0x8a0] sm:$0xff]
    %v478 = vld [vmem:[#allocation5 + $0x8a8] sm:$0xff]
    %v479 = vld [vmem:[#allocation5 + $0x8b0] sm:$0xff]
    %v480 = vld [vmem:[#allocation5 + $0x8b8] sm:$0xff]
    %v481 = vld [vmem:[#allocation5 + $0x8c0] sm:$0xff]
    %v482 = vld [vmem:[#allocation5 + $0x8c8] sm:$0xff]
    %v483 = vld [vmem:[#allocation5 + $0x8d0] sm:$0xff]
    %v484 = vld [vmem:[#allocation5 + $0x8d8] sm:$0xff]
    %v485 = vld [vmem:[#allocation5 + $0x8e0] sm:$0xff]
    %v486 = vld [vmem:[#allocation5 + $0x8e8] sm:$0xff]
    %v487 = vld [vmem:[#allocation5 + $0x8f0] sm:$0xff]
    %v488 = vld [vmem:[#allocation5 + $0x8f8] sm:$0xff]
    %v489 = vld [vmem:[#allocation5 + $0x900] sm:$0xff]
    %v490 = vld [vmem:[#allocation5 + $0x908] sm:$0xff]
    %v491 = vld [vmem:[#allocation5 + $0x910] sm:$0xff]
    %v492 = vld [vmem:[#allocation5 + $0x918] sm:$0xff]
    %v493 = vld [vmem:[#allocation5 + $0x920] sm:$0xff]
    %v494 = vld [vmem:[#allocation5 + $0x928] sm:$0xff]
    %v495 = vld [vmem:[#allocation5 + $0x930] sm:$0xff]
    %v496 = vld [vmem:[#allocation5 + $0x938] sm:$0xff]
    %v497 = vld [vmem:[#allocation5 + $0x940] sm:$0xff]
    %v498 = vld [vmem:[#allocation5 + $0x948] sm:$0xff]
    %v499 = vld [vmem:[#allocation5 + $0x950] sm:$0xff]
    %v500 = vld [vmem:[#allocation5 + $0x958] sm:$0xff]
    %v501 = vld [vmem:[#allocation5 + $0x960] sm:$0xff]
    %v502 = vld [vmem:[#allocation5 + $0x968] sm:$0xff]
    %v503 = vld [vmem:[#allocation5 + $0x970] sm:$0xff]
    %v504 = vld [vmem:[#allocation5 + $0x978] sm:$0xff]
    %v505 = vld [vmem:[#allocation5 + $0x980] sm:$0xff]
    %v506 = vld [vmem:[#allocation5 + $0x988] sm:$0xff]
    %v507 = vld [vmem:[#allocation5 + $0x990] sm:$0xff]
    %v508 = vld [vmem:[#allocation5 + $0x998] sm:$0xff]
    %v509 = vld [vmem:[#allocation5 + $0x9a0] sm:$0xff]
    %v510 = vld [vmem:[#allocation5 + $0x9a8] sm:$0xff]
    %v511 = vld [vmem:[#allocation5 + $0x9b0] sm:$0xff]
    %v512 = vld [vmem:[#allocation5 + $0x9b8] sm:$0xff]
    %v513 = vld [vmem:[#allocation5 + $0x9c0] sm:$0xff]
    %v514 = vld [vmem:[#allocation5 + $0x9c8] sm:$0xff]
    %v515 = vld [vmem:[#allocation5 + $0x9d0] sm:$0xff]
    %v516 = vld [vmem:[#allocation5 + $0x9d8] sm:$0xff]
    %v517 = vld [vmem:[#allocation5 + $0x9e0] sm:$0xff]
    %v518 = vld [vmem:[#allocation5 + $0x9e8] sm:$0xff]
    %v519 = vld [vmem:[#allocation5 + $0x9f0] sm:$0xff]
    %v520 = vld [vmem:[#allocation5 + $0x9f8] sm:$0xff]
    %v521 = vld [vmem:[#allocation5 + $0xa00] sm:$0xff]
    %v522 = vld [vmem:[#allocation5 + $0xa08] sm:$0xff]
    %v523 = vld [vmem:[#allocation5 + $0xa10] sm:$0xff]
    %v524 = vld [vmem:[#allocation5 + $0xa18] sm:$0xff]
    %v525 = vld [vmem:[#allocation5 + $0xa20] sm:$0xff]
    %v526 = vld [vmem:[#allocation5 + $0xa28] sm:$0xff]
    %v527 = vld [vmem:[#allocation5 + $0xa30] sm:$0xff]
    %v528 = vld [vmem:[#allocation5 + $0xa38] sm:$0xff]
    %v529 = vld [vmem:[#allocation5 + $0xa40] sm:$0xff]
    %v530 = vld [vmem:[#allocation5 + $0xa48] sm:$0xff]
    %v531 = vld [vmem:[#allocation5 + $0xa50] sm:$0xff]
    %v532 = vld [vmem:[#allocation5 + $0xa58] sm:$0xff]
    %v533 = vld [vmem:[#allocation5 + $0xa60] sm:$0xff]
    %v534 = vld [vmem:[#allocation5 + $0xa68] sm:$0xff]
    %v535 = vld [vmem:[#allocation5 + $0xa70] sm:$0xff]
    %v536 = vld [vmem:[#allocation5 + $0xa78] sm:$0xff]
    %v537 = vld [vmem:[#allocation5 + $0xa80] sm:$0xff]
    %v538 = vld [vmem:[#allocation5 + $0xa88] sm:$0xff]
    %v539 = vld [vmem:[#allocation5 + $0xa90] sm:$0xff]
    %v540 = vld [vmem:[#allocation5 + $0xa98] sm:$0xff]
    %v541 = vld [vmem:[#allocation5 + $0xaa0] sm:$0xff]
    %v542 = vld [vmem:[#allocation5 + $0xaa8] sm:$0xff]
    %v543 = vld [vmem:[#allocation5 + $0xab0] sm:$0xff]
    %v544 = vld [vmem:[#allocation5 + $0xab8] sm:$0xff]
    %v545 = vld [vmem:[#allocation5 + $0xac0] sm:$0xff]
    %v546 = vld [vmem:[#allocation5 + $0xac8] sm:$0xff]
    %v547 = vld [vmem:[#allocation5 + $0xad0] sm:$0xff]
    %v548 = vld [vmem:[#allocation5 + $0xad8] sm:$0xff]
    %v549 = vld [vmem:[#allocation5 + $0xae0] sm:$0xff]
    %v550 = vld [vmem:[#allocation5 + $0xae8] sm:$0xff]
    %v551 = vld [vmem:[#allocation5 + $0xaf0] sm:$0xff]
    %v552 = vld [vmem:[#allocation5 + $0xaf8] sm:$0xff]
    %v553 = vld [vmem:[#allocation5 + $0xb00] sm:$0xff]
    %v554 = vld [vmem:[#allocation5 + $0xb08] sm:$0xff]
    %v555 = vld [vmem:[#allocation5 + $0xb10] sm:$0xff]
    %v556 = vld [vmem:[#allocation5 + $0xb18] sm:$0xff]
    %v557 = vld [vmem:[#allocation5 + $0xb20] sm:$0xff]
    %v558 = vld [vmem:[#allocation5 + $0xb28] sm:$0xff]
    %v559 = vld [vmem:[#allocation5 + $0xb30] sm:$0xff]
    %v560 = vld [vmem:[#allocation5 + $0xb38] sm:$0xff]
    %v561 = vld [vmem:[#allocation5 + $0xb40] sm:$0xff]
    %v562 = vld [vmem:[#allocation5 + $0xb48] sm:$0xff]
    %v563 = vld [vmem:[#allocation5 + $0xb50] sm:$0xff]
    %v564 = vld [vmem:[#allocation5 + $0xb58] sm:$0xff]
    %v565 = vld [vmem:[#allocation5 + $0xb60] sm:$0xff]
    %v566 = vld [vmem:[#allocation5 + $0xb68] sm:$0xff]
    %v567 = vld [vmem:[#allocation5 + $0xb70] sm:$0xff]
    %v568 = vld [vmem:[#allocation5 + $0xb78] sm:$0xff]
    %v569 = vld [vmem:[#allocation5 + $0xb80] sm:$0xff]
    %v570 = vld [vmem:[#allocation5 + $0xb88] sm:$0xff]
    %v571 = vld [vmem:[#allocation5 + $0xb90] sm:$0xff]
    %v572 = vld [vmem:[#allocation5 + $0xb98] sm:$0xff]
    %v573 = vld [vmem:[#allocation5 + $0xba0] sm:$0xff]
    %v574 = vld [vmem:[#allocation5 + $0xba8] sm:$0xff]
    %v575 = vld [vmem:[#allocation5 + $0xbb0] sm:$0xff]
    %v576 = vld [vmem:[#allocation5 + $0xbb8] sm:$0xff]
    %v577 = vld [vmem:[#allocation5 + $0xbc0] sm:$0xff]
    %v578 = vld [vmem:[#allocation5 + $0xbc8] sm:$0xff]
    %v579 = vld [vmem:[#allocation5 + $0xbd0] sm:$0xff]
    %v580 = vld [vmem:[#allocation5 + $0xbd8] sm:$0xff]
    %v581 = vld [vmem:[#allocation5 + $0xbe0] sm:$0xff]
    %v582 = vld [vmem:[#allocation5 + $0xbe8] sm:$0xff]
    %v583 = vld [vmem:[#allocation5 + $0xbf0] sm:$0xff]
    %v584 = vld [vmem:[#allocation5 + $0xbf8] sm:$0xff]
    %v585 = vld [vmem:[#allocation7] sm:$0xff]
    %v586 = vld [vmem:[#allocation7 + $0x8] sm:$0xff]
    %v587 = vld [vmem:[#allocation7 + $0x10] sm:$0xff]
    %v588 = vld [vmem:[#allocation7 + $0x18] sm:$0xff]
    %v589 = vld [vmem:[#allocation7 + $0x20] sm:$0xff]
    %v590 = vld [vmem:[#allocation7 + $0x28] sm:$0xff]
    %v591 = vld [vmem:[#allocation7 + $0x30] sm:$0xff]
    %v592 = vld [vmem:[#allocation7 + $0x38] sm:$0xff]
    %v593 = vld [vmem:[#allocation7 + $0x40] sm:$0xff]
    %v594 = vld [vmem:[#allocation7 + $0x48] sm:$0xff]
    %v595 = vld [vmem:[#allocation7 + $0x50] sm:$0xff]
    %v596 = vld [vmem:[#allocation7 + $0x58] sm:$0xff]
    %v597 = vld [vmem:[#allocation7 + $0x60] sm:$0xff]
    %v598 = vld [vmem:[#allocation7 + $0x68] sm:$0xff]
    %v599 = vld [vmem:[#allocation7 + $0x70] sm:$0xff]
    %v600 = vld [vmem:[#allocation7 + $0x78] sm:$0xff]
    %v601 = vld [vmem:[#allocation7 + $0x80] sm:$0xff]
    %v602 = vld [vmem:[#allocation7 + $0x88] sm:$0xff]
    %v603 = vld [vmem:[#allocation7 + $0x90] sm:$0xff]
    %v604 = vld [vmem:[#allocation7 + $0x98] sm:$0xff]
    %v605 = vld [vmem:[#allocation7 + $0xa0] sm:$0xff]
    %v606 = vld [vmem:[#allocation7 + $0xa8] sm:$0xff]
    %v607 = vld [vmem:[#allocation7 + $0xb0] sm:$0xff]
    %v608 = vld [vmem:[#allocation7 + $0xb8] sm:$0xff]
    %v609 = vld [vmem:[#allocation7 + $0xc0] sm:$0xff]
    %v610 = vld [vmem:[#allocation7 + $0xc8] sm:$0xff]
    %v611 = vld [vmem:[#allocation7 + $0xd0] sm:$0xff]
    %v612 = vld [vmem:[#allocation7 + $0xd8] sm:$0xff]
    %v613 = vld [vmem:[#allocation7 + $0xe0] sm:$0xff]
    %v614 = vld [vmem:[#allocation7 + $0xe8] sm:$0xff]
    %v615 = vld [vmem:[#allocation7 + $0xf0] sm:$0xff]
    %v616 = vld [vmem:[#allocation7 + $0xf8] sm:$0xff]
    %v617 = vld [vmem:[#allocation7 + $0x100] sm:$0xff]
    %v618 = vld [vmem:[#allocation7 + $0x108] sm:$0xff]
    %v619 = vld [vmem:[#allocation7 + $0x110] sm:$0xff]
    %v620 = vld [vmem:[#allocation7 + $0x118] sm:$0xff]
    %v621 = vld [vmem:[#allocation7 + $0x120] sm:$0xff]
    %v622 = vld [vmem:[#allocation7 + $0x128] sm:$0xff]
    %v623 = vld [vmem:[#allocation7 + $0x130] sm:$0xff]
    %v624 = vld [vmem:[#allocation7 + $0x138] sm:$0xff]
    %v625 = vld [vmem:[#allocation7 + $0x140] sm:$0xff]
    %v626 = vld [vmem:[#allocation7 + $0x148] sm:$0xff]
    %v627 = vld [vmem:[#allocation7 + $0x150] sm:$0xff]
    %v628 = vld [vmem:[#allocation7 + $0x158] sm:$0xff]
    %v629 = vld [vmem:[#allocation7 + $0x160] sm:$0xff]
    %v630 = vld [vmem:[#allocation7 + $0x168] sm:$0xff]
    %v631 = vld [vmem:[#allocation7 + $0x170] sm:$0xff]
    %v632 = vld [vmem:[#allocation7 + $0x178] sm:$0xff]
    %v633 = vld [vmem:[#allocation7 + $0x180] sm:$0xff]
    %v634 = vld [vmem:[#allocation7 + $0x188] sm:$0xff]
    %v635 = vld [vmem:[#allocation7 + $0x190] sm:$0xff]
    %v636 = vld [vmem:[#allocation7 + $0x198] sm:$0xff]
    %v637 = vld [vmem:[#allocation7 + $0x1a0] sm:$0xff]
    %v638 = vld [vmem:[#allocation7 + $0x1a8] sm:$0xff]
    %v639 = vld [vmem:[#allocation7 + $0x1b0] sm:$0xff]
    %v640 = vld [vmem:[#allocation7 + $0x1b8] sm:$0xff]
    %v641 = vld [vmem:[#allocation7 + $0x1c0] sm:$0xff]
    %v642 = vld [vmem:[#allocation7 + $0x1c8] sm:$0xff]
    %v643 = vld [vmem:[#allocation7 + $0x1d0] sm:$0xff]
    %v644 = vld [vmem:[#allocation7 + $0x1d8] sm:$0xff]
    %v645 = vld [vmem:[#allocation7 + $0x1e0] sm:$0xff]
    %v646 = vld [vmem:[#allocation7 + $0x1e8] sm:$0xff]
    %v647 = vld [vmem:[#allocation7 + $0x1f0] sm:$0xff]
    %v648 = vld [vmem:[#allocation7 + $0x1f8] sm:$0xff]
    %v649 = vld [vmem:[#allocation7 + $0x200] sm:$0xff]
    %v650 = vld [vmem:[#allocation7 + $0x208] sm:$0xff]
    %v651 = vld [vmem:[#allocation7 + $0x210] sm:$0xff]
    %v652 = vld [vmem:[#allocation7 + $0x218] sm:$0xff]
    %v653 = vld [vmem:[#allocation7 + $0x220] sm:$0xff]
    %v654 = vld [vmem:[#allocation7 + $0x228] sm:$0xff]
    %v655 = vld [vmem:[#allocation7 + $0x230] sm:$0xff]
    %v656 = vld [vmem:[#allocation7 + $0x238] sm:$0xff]
    %v657 = vld [vmem:[#allocation7 + $0x240] sm:$0xff]
    %v658 = vld [vmem:[#allocation7 + $0x248] sm:$0xff]
    %v659 = vld [vmem:[#allocation7 + $0x250] sm:$0xff]
    %v660 = vld [vmem:[#allocation7 + $0x258] sm:$0xff]
    %v661 = vld [vmem:[#allocation7 + $0x260] sm:$0xff]
    %v662 = vld [vmem:[#allocation7 + $0x268] sm:$0xff]
    %v663 = vld [vmem:[#allocation7 + $0x270] sm:$0xff]
    %v664 = vld [vmem:[#allocation7 + $0x278] sm:$0xff]
    %v665 = vld [vmem:[#allocation7 + $0x280] sm:$0xff]
    %v666 = vld [vmem:[#allocation7 + $0x288] sm:$0xff]
    %v667 = vld [vmem:[#allocation7 + $0x290] sm:$0xff]
    %v668 = vld [vmem:[#allocation7 + $0x298] sm:$0xff]
    %v669 = vld [vmem:[#allocation7 + $0x2a0] sm:$0xff]
    %v670 = vld [vmem:[#allocation7 + $0x2a8] sm:$0xff]
    %v671 = vld [vmem:[#allocation7 + $0x2b0] sm:$0xff]
    %v672 = vld [vmem:[#allocation7 + $0x2b8] sm:$0xff]
    %v673 = vld [vmem:[#allocation7 + $0x2c0] sm:$0xff]
    %v674 = vld [vmem:[#allocation7 + $0x2c8] sm:$0xff]
    %v675 = vld [vmem:[#allocation7 + $0x2d0] sm:$0xff]
    %v676 = vld [vmem:[#allocation7 + $0x2d8] sm:$0xff]
    %v677 = vld [vmem:[#allocation7 + $0x2e0] sm:$0xff]
    %v678 = vld [vmem:[#allocation7 + $0x2e8] sm:$0xff]
    %v679 = vld [vmem:[#allocation7 + $0x2f0] sm:$0xff]
    %v680 = vld [vmem:[#allocation7 + $0x2f8] sm:$0xff]
    %v681 = vld [vmem:[#allocation7 + $0x300] sm:$0xff]
    %v682 = vld [vmem:[#allocation7 + $0x308] sm:$0xff]
    %v683 = vld [vmem:[#allocation7 + $0x310] sm:$0xff]
    %v684 = vld [vmem:[#allocation7 + $0x318] sm:$0xff]
    %v685 = vld [vmem:[#allocation7 + $0x320] sm:$0xff]
    %v686 = vld [vmem:[#allocation7 + $0x328] sm:$0xff]
    %v687 = vld [vmem:[#allocation7 + $0x330] sm:$0xff]
    %v688 = vld [vmem:[#allocation7 + $0x338] sm:$0xff]
    %v689 = vld [vmem:[#allocation7 + $0x340] sm:$0xff]
    %v690 = vld [vmem:[#allocation7 + $0x348] sm:$0xff]
    %v691 = vld [vmem:[#allocation7 + $0x350] sm:$0xff]
    %v692 = vld [vmem:[#allocation7 + $0x358] sm:$0xff]
    %v693 = vld [vmem:[#allocation7 + $0x360] sm:$0xff]
    %v694 = vld [vmem:[#allocation7 + $0x368] sm:$0xff]
    %v695 = vld [vmem:[#allocation7 + $0x370] sm:$0xff]
    %v696 = vld [vmem:[#allocation7 + $0x378] sm:$0xff]
    %v697 = vld [vmem:[#allocation7 + $0x380] sm:$0xff]
    %v698 = vld [vmem:[#allocation7 + $0x388] sm:$0xff]
    %v699 = vld [vmem:[#allocation7 + $0x390] sm:$0xff]
    %v700 = vld [vmem:[#allocation7 + $0x398] sm:$0xff]
    %v701 = vld [vmem:[#allocation7 + $0x3a0] sm:$0xff]
    %v702 = vld [vmem:[#allocation7 + $0x3a8] sm:$0xff]
    %v703 = vld [vmem:[#allocation7 + $0x3b0] sm:$0xff]
    %v704 = vld [vmem:[#allocation7 + $0x3b8] sm:$0xff]
    %v705 = vld [vmem:[#allocation7 + $0x3c0] sm:$0xff]
    %v706 = vld [vmem:[#allocation7 + $0x3c8] sm:$0xff]
    %v707 = vld [vmem:[#allocation7 + $0x3d0] sm:$0xff]
    %v708 = vld [vmem:[#allocation7 + $0x3d8] sm:$0xff]
    %v709 = vld [vmem:[#allocation7 + $0x3e0] sm:$0xff]
    %v710 = vld [vmem:[#allocation7 + $0x3e8] sm:$0xff]
    %v711 = vld [vmem:[#allocation7 + $0x3f0] sm:$0xff]
    %v712 = vld [vmem:[#allocation7 + $0x3f8] sm:$0xff]
    %v713 = vld [vmem:[#allocation7 + $0x400] sm:$0xff]
    %v714 = vld [vmem:[#allocation7 + $0x408] sm:$0xff]
    %v715 = vld [vmem:[#allocation7 + $0x410] sm:$0xff]
    %v716 = vld [vmem:[#allocation7 + $0x418] sm:$0xff]
    %v717 = vld [vmem:[#allocation7 + $0x420] sm:$0xff]
    %v718 = vld [vmem:[#allocation7 + $0x428] sm:$0xff]
    %v719 = vld [vmem:[#allocation7 + $0x430] sm:$0xff]
    %v720 = vld [vmem:[#allocation7 + $0x438] sm:$0xff]
    %v721 = vld [vmem:[#allocation7 + $0x440] sm:$0xff]
    %v722 = vld [vmem:[#allocation7 + $0x448] sm:$0xff]
    %v723 = vld [vmem:[#allocation7 + $0x450] sm:$0xff]
    %v724 = vld [vmem:[#allocation7 + $0x458] sm:$0xff]
    %v725 = vld [vmem:[#allocation7 + $0x460] sm:$0xff]
    %v726 = vld [vmem:[#allocation7 + $0x468] sm:$0xff]
    %v727 = vld [vmem:[#allocation7 + $0x470] sm:$0xff]
    %v728 = vld [vmem:[#allocation7 + $0x478] sm:$0xff]
    %v729 = vld [vmem:[#allocation7 + $0x480] sm:$0xff]
    %v730 = vld [vmem:[#allocation7 + $0x488] sm:$0xff]
    %v731 = vld [vmem:[#allocation7 + $0x490] sm:$0xff]
    %v732 = vld [vmem:[#allocation7 + $0x498] sm:$0xff]
    %v733 = vld [vmem:[#allocation7 + $0x4a0] sm:$0xff]
    %v734 = vld [vmem:[#allocation7 + $0x4a8] sm:$0xff]
    %v735 = vld [vmem:[#allocation7 + $0x4b0] sm:$0xff]
    %v736 = vld [vmem:[#allocation7 + $0x4b8] sm:$0xff]
    %v737 = vld [vmem:[#allocation7 + $0x4c0] sm:$0xff]
    %v738 = vld [vmem:[#allocation7 + $0x4c8] sm:$0xff]
    %v739 = vld [vmem:[#allocation7 + $0x4d0] sm:$0xff]
    %v740 = vld [vmem:[#allocation7 + $0x4d8] sm:$0xff]
    %v741 = vld [vmem:[#allocation7 + $0x4e0] sm:$0xff]
    %v742 = vld [vmem:[#allocation7 + $0x4e8] sm:$0xff]
    %v743 = vld [vmem:[#allocation7 + $0x4f0] sm:$0xff]
    %v744 = vld [vmem:[#allocation7 + $0x4f8] sm:$0xff]
    %v745 = vld [vmem:[#allocation7 + $0x500] sm:$0xff]
    %v746 = vld [vmem:[#allocation7 + $0x508] sm:$0xff]
    %v747 = vld [vmem:[#allocation7 + $0x510] sm:$0xff]
    %v748 = vld [vmem:[#allocation7 + $0x518] sm:$0xff]
    %v749 = vld [vmem:[#allocation7 + $0x520] sm:$0xff]
    %v750 = vld [vmem:[#allocation7 + $0x528] sm:$0xff]
    %v751 = vld [vmem:[#allocation7 + $0x530] sm:$0xff]
    %v752 = vld [vmem:[#allocation7 + $0x538] sm:$0xff]
    %v753 = vld [vmem:[#allocation7 + $0x540] sm:$0xff]
    %v754 = vld [vmem:[#allocation7 + $0x548] sm:$0xff]
    %v755 = vld [vmem:[#allocation7 + $0x550] sm:$0xff]
    %v756 = vld [vmem:[#allocation7 + $0x558] sm:$0xff]
    %v757 = vld [vmem:[#allocation7 + $0x560] sm:$0xff]
    %v758 = vld [vmem:[#allocation7 + $0x568] sm:$0xff]
    %v759 = vld [vmem:[#allocation7 + $0x570] sm:$0xff]
    %v760 = vld [vmem:[#allocation7 + $0x578] sm:$0xff]
    %v761 = vld [vmem:[#allocation7 + $0x580] sm:$0xff]
    %v762 = vld [vmem:[#allocation7 + $0x588] sm:$0xff]
    %v763 = vld [vmem:[#allocation7 + $0x590] sm:$0xff]
    %v764 = vld [vmem:[#allocation7 + $0x598] sm:$0xff]
    %v765 = vld [vmem:[#allocation7 + $0x5a0] sm:$0xff]
    %v766 = vld [vmem:[#allocation7 + $0x5a8] sm:$0xff]
    %v767 = vld [vmem:[#allocation7 + $0x5b0] sm:$0xff]
    %v768 = vld [vmem:[#allocation7 + $0x5b8] sm:$0xff]
    %v769 = vld [vmem:[#allocation7 + $0x5c0] sm:$0xff]
    %v770 = vld [vmem:[#allocation7 + $0x5c8] sm:$0xff]
    %v771 = vld [vmem:[#allocation7 + $0x5d0] sm:$0xff]
    %v772 = vld [vmem:[#allocation7 + $0x5d8] sm:$0xff]
    %v773 = vld [vmem:[#allocation7 + $0x5e0] sm:$0xff]
    %v774 = vld [vmem:[#allocation7 + $0x5e8] sm:$0xff]
    %v775 = vld [vmem:[#allocation7 + $0x5f0] sm:$0xff]
    %v776 = vld [vmem:[#allocation7 + $0x5f8] sm:$0xff]
    %v777 = vld [vmem:[#allocation7 + $0x600] sm:$0xff]
    %v778 = vld [vmem:[#allocation7 + $0x608] sm:$0xff]
    %v779 = vld [vmem:[#allocation7 + $0x610] sm:$0xff]
    %v780 = vld [vmem:[#allocation7 + $0x618] sm:$0xff]
    %v781 = vld [vmem:[#allocation7 + $0x620] sm:$0xff]
    %v782 = vld [vmem:[#allocation7 + $0x628] sm:$0xff]
    %v783 = vld [vmem:[#allocation7 + $0x630] sm:$0xff]
    %v784 = vld [vmem:[#allocation7 + $0x638] sm:$0xff]
    %v785 = vld [vmem:[#allocation7 + $0x640] sm:$0xff]
    %v786 = vld [vmem:[#allocation7 + $0x648] sm:$0xff]
    %v787 = vld [vmem:[#allocation7 + $0x650] sm:$0xff]
    %v788 = vld [vmem:[#allocation7 + $0x658] sm:$0xff]
    %v789 = vld [vmem:[#allocation7 + $0x660] sm:$0xff]
    %v790 = vld [vmem:[#allocation7 + $0x668] sm:$0xff]
    %v791 = vld [vmem:[#allocation7 + $0x670] sm:$0xff]
    %v792 = vld [vmem:[#allocation7 + $0x678] sm:$0xff]
    %v793 = vld [vmem:[#allocation7 + $0x680] sm:$0xff]
    %v794 = vld [vmem:[#allocation7 + $0x688] sm:$0xff]
    %v795 = vld [vmem:[#allocation7 + $0x690] sm:$0xff]
    %v796 = vld [vmem:[#allocation7 + $0x698] sm:$0xff]
    %v797 = vld [vmem:[#allocation7 + $0x6a0] sm:$0xff]
    %v798 = vld [vmem:[#allocation7 + $0x6a8] sm:$0xff]
    %v799 = vld [vmem:[#allocation7 + $0x6b0] sm:$0xff]
    %v800 = vld [vmem:[#allocation7 + $0x6b8] sm:$0xff]
    %v801 = vld [vmem:[#allocation7 + $0x6c0] sm:$0xff]
    %v802 = vld [vmem:[#allocation7 + $0x6c8] sm:$0xff]
    %v803 = vld [vmem:[#allocation7 + $0x6d0] sm:$0xff]
    %v804 = vld [vmem:[#allocation7 + $0x6d8] sm:$0xff]
    %v805 = vld [vmem:[#allocation7 + $0x6e0] sm:$0xff]
    %v806 = vld [vmem:[#allocation7 + $0x6e8] sm:$0xff]
    %v807 = vld [vmem:[#allocation7 + $0x6f0] sm:$0xff]
    %v808 = vld [vmem:[#allocation7 + $0x6f8] sm:$0xff]
    %v809 = vld [vmem:[#allocation7 + $0x700] sm:$0xff]
    %v810 = vld [vmem:[#allocation7 + $0x708] sm:$0xff]
    %v811 = vld [vmem:[#allocation7 + $0x710] sm:$0xff]
    %v812 = vld [vmem:[#allocation7 + $0x718] sm:$0xff]
    %v813 = vld [vmem:[#allocation7 + $0x720] sm:$0xff]
    %v814 = vld [vmem:[#allocation7 + $0x728] sm:$0xff]
    %v815 = vld [vmem:[#allocation7 + $0x730] sm:$0xff]
    %v816 = vld [vmem:[#allocation7 + $0x738] sm:$0xff]
    %v817 = vld [vmem:[#allocation7 + $0x740] sm:$0xff]
    %v818 = vld [vmem:[#allocation7 + $0x748] sm:$0xff]
    %v819 = vld [vmem:[#allocation7 + $0x750] sm:$0xff]
    %v820 = vld [vmem:[#allocation7 + $0x758] sm:$0xff]
    %v821 = vld [vmem:[#allocation7 + $0x760] sm:$0xff]
    %v822 = vld [vmem:[#allocation7 + $0x768] sm:$0xff]
    %v823 = vld [vmem:[#allocation7 + $0x770] sm:$0xff]
    %v824 = vld [vmem:[#allocation7 + $0x778] sm:$0xff]
    %v825 = vld [vmem:[#allocation7 + $0x780] sm:$0xff]
    %v826 = vld [vmem:[#allocation7 + $0x788] sm:$0xff]
    %v827 = vld [vmem:[#allocation7 + $0x790] sm:$0xff]
    %v828 = vld [vmem:[#allocation7 + $0x798] sm:$0xff]
    %v829 = vld [vmem:[#allocation7 + $0x7a0] sm:$0xff]
    %v830 = vld [vmem:[#allocation7 + $0x7a8] sm:$0xff]
    %v831 = vld [vmem:[#allocation7 + $0x7b0] sm:$0xff]
    %v832 = vld [vmem:[#allocation7 + $0x7b8] sm:$0xff]
    %v833 = vld [vmem:[#allocation7 + $0x7c0] sm:$0xff]
    %v834 = vld [vmem:[#allocation7 + $0x7c8] sm:$0xff]
    %v835 = vld [vmem:[#allocation7 + $0x7d0] sm:$0xff]
    %v836 = vld [vmem:[#allocation7 + $0x7d8] sm:$0xff]
    %v837 = vld [vmem:[#allocation7 + $0x7e0] sm:$0xff]
    %v838 = vld [vmem:[#allocation7 + $0x7e8] sm:$0xff]
    %v839 = vld [vmem:[#allocation7 + $0x7f0] sm:$0xff]
    %v840 = vld [vmem:[#allocation7 + $0x7f8] sm:$0xff]
    %v841 = vld [vmem:[#allocation7 + $0x800] sm:$0xff]
    %v842 = vld [vmem:[#allocation7 + $0x808] sm:$0xff]
    %v843 = vld [vmem:[#allocation7 + $0x810] sm:$0xff]
    %v844 = vld [vmem:[#allocation7 + $0x818] sm:$0xff]
    %v845 = vld [vmem:[#allocation7 + $0x820] sm:$0xff]
    %v846 = vld [vmem:[#allocation7 + $0x828] sm:$0xff]
    %v847 = vld [vmem:[#allocation7 + $0x830] sm:$0xff]
    %v848 = vld [vmem:[#allocation7 + $0x838] sm:$0xff]
    %v849 = vld [vmem:[#allocation7 + $0x840] sm:$0xff]
    %v850 = vld [vmem:[#allocation7 + $0x848] sm:$0xff]
    %v851 = vld [vmem:[#allocation7 + $0x850] sm:$0xff]
    %v852 = vld [vmem:[#allocation7 + $0x858] sm:$0xff]
    %v853 = vld [vmem:[#allocation7 + $0x860] sm:$0xff]
    %v854 = vld [vmem:[#allocation7 + $0x868] sm:$0xff]
    %v855 = vld [vmem:[#allocation7 + $0x870] sm:$0xff]
    %v856 = vld [vmem:[#allocation7 + $0x878] sm:$0xff]
    %v857 = vld [vmem:[#allocation7 + $0x880] sm:$0xff]
    %v858 = vld [vmem:[#allocation7 + $0x888] sm:$0xff]
    %v859 = vld [vmem:[#allocation7 + $0x890] sm:$0xff]
    %v860 = vld [vmem:[#allocation7 + $0x898] sm:$0xff]
    %v861 = vld [vmem:[#allocation7 + $0x8a0] sm:$0xff]
    %v862 = vld [vmem:[#allocation7 + $0x8a8] sm:$0xff]
    %v863 = vld [vmem:[#allocation7 + $0x8b0] sm:$0xff]
    %v864 = vld [vmem:[#allocation7 + $0x8b8] sm:$0xff]
    %v865 = vld [vmem:[#allocation7 + $0x8c0] sm:$0xff]
    %v866 = vld [vmem:[#allocation7 + $0x8c8] sm:$0xff]
    %v867 = vld [vmem:[#allocation7 + $0x8d0] sm:$0xff]
    %v868 = vld [vmem:[#allocation7 + $0x8d8] sm:$0xff]
    %v869 = vld [vmem:[#allocation7 + $0x8e0] sm:$0xff]
    %v870 = vld [vmem:[#allocation7 + $0x8e8] sm:$0xff]
    %v871 = vld [vmem:[#allocation7 + $0x8f0] sm:$0xff]
    %v872 = vld [vmem:[#allocation7 + $0x8f8] sm:$0xff]
    %v873 = vld [vmem:[#allocation7 + $0x900] sm:$0xff]
    %v874 = vld [vmem:[#allocation7 + $0x908] sm:$0xff]
    %v875 = vld [vmem:[#allocation7 + $0x910] sm:$0xff]
    %v876 = vld [vmem:[#allocation7 + $0x918] sm:$0xff]
    %v877 = vld [vmem:[#allocation7 + $0x920] sm:$0xff]
    %v878 = vld [vmem:[#allocation7 + $0x928] sm:$0xff]
    %v879 = vld [vmem:[#allocation7 + $0x930] sm:$0xff]
    %v880 = vld [vmem:[#allocation7 + $0x938] sm:$0xff]
    %v881 = vld [vmem:[#allocation7 + $0x940] sm:$0xff]
    %v882 = vld [vmem:[#allocation7 + $0x948] sm:$0xff]
    %v883 = vld [vmem:[#allocation7 + $0x950] sm:$0xff]
    %v884 = vld [vmem:[#allocation7 + $0x958] sm:$0xff]
    %v885 = vld [vmem:[#allocation7 + $0x960] sm:$0xff]
    %v886 = vld [vmem:[#allocation7 + $0x968] sm:$0xff]
    %v887 = vld [vmem:[#allocation7 + $0x970] sm:$0xff]
    %v888 = vld [vmem:[#allocation7 + $0x978] sm:$0xff]
    %v889 = vld [vmem:[#allocation7 + $0x980] sm:$0xff]
    %v890 = vld [vmem:[#allocation7 + $0x988] sm:$0xff]
    %v891 = vld [vmem:[#allocation7 + $0x990] sm:$0xff]
    %v892 = vld [vmem:[#allocation7 + $0x998] sm:$0xff]
    %v893 = vld [vmem:[#allocation7 + $0x9a0] sm:$0xff]
    %v894 = vld [vmem:[#allocation7 + $0x9a8] sm:$0xff]
    %v895 = vld [vmem:[#allocation7 + $0x9b0] sm:$0xff]
    %v896 = vld [vmem:[#allocation7 + $0x9b8] sm:$0xff]
    %v897 = vld [vmem:[#allocation7 + $0x9c0] sm:$0xff]
    %v898 = vld [vmem:[#allocation7 + $0x9c8] sm:$0xff]
    %v899 = vld [vmem:[#allocation7 + $0x9d0] sm:$0xff]
    %v900 = vld [vmem:[#allocation7 + $0x9d8] sm:$0xff]
    %v901 = vld [vmem:[#allocation7 + $0x9e0] sm:$0xff]
    %v902 = vld [vmem:[#allocation7 + $0x9e8] sm:$0xff]
    %v903 = vld [vmem:[#allocation7 + $0x9f0] sm:$0xff]
    %v904 = vld [vmem:[#allocation7 + $0x9f8] sm:$0xff]
    %v905 = vld [vmem:[#allocation7 + $0xa00] sm:$0xff]
    %v906 = vld [vmem:[#allocation7 + $0xa08] sm:$0xff]
    %v907 = vld [vmem:[#allocation7 + $0xa10] sm:$0xff]
    %v908 = vld [vmem:[#allocation7 + $0xa18] sm:$0xff]
    %v909 = vld [vmem:[#allocation7 + $0xa20] sm:$0xff]
    %v910 = vld [vmem:[#allocation7 + $0xa28] sm:$0xff]
    %v911 = vld [vmem:[#allocation7 + $0xa30] sm:$0xff]
    %v912 = vld [vmem:[#allocation7 + $0xa38] sm:$0xff]
    %v913 = vld [vmem:[#allocation7 + $0xa40] sm:$0xff]
    %v914 = vld [vmem:[#allocation7 + $0xa48] sm:$0xff]
    %v915 = vld [vmem:[#allocation7 + $0xa50] sm:$0xff]
    %v916 = vld [vmem:[#allocation7 + $0xa58] sm:$0xff]
    %v917 = vld [vmem:[#allocation7 + $0xa60] sm:$0xff]
    %v918 = vld [vmem:[#allocation7 + $0xa68] sm:$0xff]
    %v919 = vld [vmem:[#allocation7 + $0xa70] sm:$0xff]
    %v920 = vld [vmem:[#allocation7 + $0xa78] sm:$0xff]
    %v921 = vld [vmem:[#allocation7 + $0xa80] sm:$0xff]
    %v922 = vld [vmem:[#allocation7 + $0xa88] sm:$0xff]
    %v923 = vld [vmem:[#allocation7 + $0xa90] sm:$0xff]
    %v924 = vld [vmem:[#allocation7 + $0xa98] sm:$0xff]
    %v925 = vld [vmem:[#allocation7 + $0xaa0] sm:$0xff]
    %v926 = vld [vmem:[#allocation7 + $0xaa8] sm:$0xff]
    %v927 = vld [vmem:[#allocation7 + $0xab0] sm:$0xff]
    %v928 = vld [vmem:[#allocation7 + $0xab8] sm:$0xff]
    %v929 = vld [vmem:[#allocation7 + $0xac0] sm:$0xff]
    %v930 = vld [vmem:[#allocation7 + $0xac8] sm:$0xff]
    %v931 = vld [vmem:[#allocation7 + $0xad0] sm:$0xff]
    %v932 = vld [vmem:[#allocation7 + $0xad8] sm:$0xff]
    %v933 = vld [vmem:[#allocation7 + $0xae0] sm:$0xff]
    %v934 = vld [vmem:[#allocation7 + $0xae8] sm:$0xff]
    %v935 = vld [vmem:[#allocation7 + $0xaf0] sm:$0xff]
    %v936 = vld [vmem:[#allocation7 + $0xaf8] sm:$0xff]
    %v937 = vld [vmem:[#allocation7 + $0xb00] sm:$0xff]
    %v938 = vld [vmem:[#allocation7 + $0xb08] sm:$0xff]
    %v939 = vld [vmem:[#allocation7 + $0xb10] sm:$0xff]
    %v940 = vld [vmem:[#allocation7 + $0xb18] sm:$0xff]
    %v941 = vld [vmem:[#allocation7 + $0xb20] sm:$0xff]
    %v942 = vld [vmem:[#allocation7 + $0xb28] sm:$0xff]
    %v943 = vld [vmem:[#allocation7 + $0xb30] sm:$0xff]
    %v944 = vld [vmem:[#allocation7 + $0xb38] sm:$0xff]
    %v945 = vld [vmem:[#allocation7 + $0xb40] sm:$0xff]
    %v946 = vld [vmem:[#allocation7 + $0xb48] sm:$0xff]
    %v947 = vld [vmem:[#allocation7 + $0xb50] sm:$0xff]
    %v948 = vld [vmem:[#allocation7 + $0xb58] sm:$0xff]
    %v949 = vld [vmem:[#allocation7 + $0xb60] sm:$0xff]
    %v950 = vld [vmem:[#allocation7 + $0xb68] sm:$0xff]
    %v951 = vld [vmem:[#allocation7 + $0xb70] sm:$0xff]
    %v952 = vld [vmem:[#allocation7 + $0xb78] sm:$0xff]
    %v953 = vld [vmem:[#allocation7 + $0xb80] sm:$0xff]
    %v954 = vld [vmem:[#allocation7 + $0xb88] sm:$0xff]
    %v955 = vld [vmem:[#allocation7 + $0xb90] sm:$0xff]
    %v956 = vld [vmem:[#allocation7 + $0xb98] sm:$0xff]
    %v957 = vld [vmem:[#allocation7 + $0xba0] sm:$0xff]
    %v958 = vld [vmem:[#allocation7 + $0xba8] sm:$0xff]
    %v959 = vld [vmem:[#allocation7 + $0xbb0] sm:$0xff]
    %v960 = vld [vmem:[#allocation7 + $0xbb8] sm:$0xff]
    %v961 = vld [vmem:[#allocation7 + $0xbc0] sm:$0xff]
    %v962 = vld [vmem:[#allocation7 + $0xbc8] sm:$0xff]
    %v963 = vld [vmem:[#allocation7 + $0xbd0] sm:$0xff]
    %v964 = vld [vmem:[#allocation7 + $0xbd8] sm:$0xff]
    %v965 = vld [vmem:[#allocation7 + $0xbe0] sm:$0xff]
    %v966 = vld [vmem:[#allocation7 + $0xbe8] sm:$0xff]
    %v967 = vld [vmem:[#allocation7 + $0xbf0] sm:$0xff]
    %v968 = vld [vmem:[#allocation7 + $0xbf8] sm:$0xff]
    %v1353 = vunpack.c.l.b16 %v201
    %v1354 = vunpack.c.h.b16 %v201
    %v1355 = vunpack.c.l.b16 %v202
    %v1356 = vunpack.c.h.b16 %v202
    %v1357 = vunpack.c.l.b16 %v203
    %v1358 = vunpack.c.h.b16 %v203
    %v1359 = vunpack.c.l.b16 %v204
    %v1360 = vunpack.c.h.b16 %v204
    %v1361 = vunpack.c.l.b16 %v205
    %v1362 = vunpack.c.h.b16 %v205
    %v1363 = vunpack.c.l.b16 %v206
    %v1364 = vunpack.c.h.b16 %v206
    %v1365 = vunpack.c.l.b16 %v207
    %v1366 = vunpack.c.h.b16 %v207
    %v1367 = vunpack.c.l.b16 %v208
    %v1368 = vunpack.c.h.b16 %v208
    %v1369 = vunpack.c.l.b16 %v209
    %v1370 = vunpack.c.h.b16 %v209
    %v1371 = vunpack.c.l.b16 %v210
    %v1372 = vunpack.c.h.b16 %v210
    %v1373 = vunpack.c.l.b16 %v211
    %v1374 = vunpack.c.h.b16 %v211
    %v1375 = vunpack.c.l.b16 %v212
    %v1376 = vunpack.c.h.b16 %v212
    %v1377 = vunpack.c.l.b16 %v213
    %v1378 = vunpack.c.h.b16 %v213
    %v1379 = vunpack.c.l.b16 %v214
    %v1380 = vunpack.c.h.b16 %v214
    %v1381 = vunpack.c.l.b16 %v215
    %v1382 = vunpack.c.h.b16 %v215
    %v1383 = vunpack.c.l.b16 %v216
    %v1384 = vunpack.c.h.b16 %v216
    %v1385 = vunpack.c.l.b16 %v217
    %v1386 = vunpack.c.h.b16 %v217
    %v1387 = vunpack.c.l.b16 %v218
    %v1388 = vunpack.c.h.b16 %v218
    %v1389 = vunpack.c.l.b16 %v219
    %v1390 = vunpack.c.h.b16 %v219
    %v1391 = vunpack.c.l.b16 %v220
    %v1392 = vunpack.c.h.b16 %v220
    %v1393 = vunpack.c.l.b16 %v221
    %v1394 = vunpack.c.h.b16 %v221
    %v1395 = vunpack.c.l.b16 %v222
    %v1396 = vunpack.c.h.b16 %v222
    %v1397 = vunpack.c.l.b16 %v223
    %v1398 = vunpack.c.h.b16 %v223
    %v1399 = vunpack.c.l.b16 %v224
    %v1400 = vunpack.c.h.b16 %v224
    %v1401 = vunpack.c.l.b16 %v225
    %v1402 = vunpack.c.h.b16 %v225
    %v1403 = vunpack.c.l.b16 %v226
    %v1404 = vunpack.c.h.b16 %v226
    %v1405 = vunpack.c.l.b16 %v227
    %v1406 = vunpack.c.h.b16 %v227
    %v1407 = vunpack.c.l.b16 %v228
    %v1408 = vunpack.c.h.b16 %v228
    %v1409 = vunpack.c.l.b16 %v229
    %v1410 = vunpack.c.h.b16 %v229
    %v1411 = vunpack.c.l.b16 %v230
    %v1412 = vunpack.c.h.b16 %v230
    %v1413 = vunpack.c.l.b16 %v231
    %v1414 = vunpack.c.h.b16 %v231
    %v1415 = vunpack.c.l.b16 %v232
    %v1416 = vunpack.c.h.b16 %v232
    %v1417 = vunpack.c.l.b16 %v233
    %v1418 = vunpack.c.h.b16 %v233
    %v1419 = vunpack.c.l.b16 %v234
    %v1420 = vunpack.c.h.b16 %v234
    %v1421 = vunpack.c.l.b16 %v235
    %v1422 = vunpack.c.h.b16 %v235
    %v1423 = vunpack.c.l.b16 %v236
    %v1424 = vunpack.c.h.b16 %v236
    %v1425 = vunpack.c.l.b16 %v237
    %v1426 = vunpack.c.h.b16 %v237
    %v1427 = vunpack.c.l.b16 %v238
    %v1428 = vunpack.c.h.b16 %v238
    %v1429 = vunpack.c.l.b16 %v239
    %v1430 = vunpack.c.h.b16 %v239
    %v1431 = vunpack.c.l.b16 %v240
    %v1432 = vunpack.c.h.b16 %v240
    %v1433 = vunpack.c.l.b16 %v241
    %v1434 = vunpack.c.h.b16 %v241
    %v1435 = vunpack.c.l.b16 %v242
    %v1436 = vunpack.c.h.b16 %v242
    %v1437 = vunpack.c.l.b16 %v243
    %v1438 = vunpack.c.h.b16 %v243
    %v1439 = vunpack.c.l.b16 %v244
    %v1440 = vunpack.c.h.b16 %v244
    %v1441 = vunpack.c.l.b16 %v245
    %v1442 = vunpack.c.h.b16 %v245
    %v1443 = vunpack.c.l.b16 %v246
    %v1444 = vunpack.c.h.b16 %v246
    %v1445 = vunpack.c.l.b16 %v247
    %v1446 = vunpack.c.h.b16 %v247
    %v1447 = vunpack.c.l.b16 %v248
    %v1448 = vunpack.c.h.b16 %v248
    %v1449 = vunpack.c.l.b16 %v249
    %v1450 = vunpack.c.h.b16 %v249
    %v1451 = vunpack.c.l.b16 %v250
    %v1452 = vunpack.c.h.b16 %v250
    %v1453 = vunpack.c.l.b16 %v251
    %v1454 = vunpack.c.h.b16 %v251
    %v1455 = vunpack.c.l.b16 %v252
    %v1456 = vunpack.c.h.b16 %v252
    %v1457 = vunpack.c.l.b16 %v253
    %v1458 = vunpack.c.h.b16 %v253
    %v1459 = vunpack.c.l.b16 %v254
    %v1460 = vunpack.c.h.b16 %v254
    %v1461 = vunpack.c.l.b16 %v255
    %v1462 = vunpack.c.h.b16 %v255
    %v1463 = vunpack.c.l.b16 %v256
    %v1464 = vunpack.c.h.b16 %v256
    %v1465 = vunpack.c.l.b16 %v257
    %v1466 = vunpack.c.h.b16 %v257
    %v1467 = vunpack.c.l.b16 %v258
    %v1468 = vunpack.c.h.b16 %v258
    %v1469 = vunpack.c.l.b16 %v259
    %v1470 = vunpack.c.h.b16 %v259
    %v1471 = vunpack.c.l.b16 %v260
    %v1472 = vunpack.c.h.b16 %v260
    %v1473 = vunpack.c.l.b16 %v261
    %v1474 = vunpack.c.h.b16 %v261
    %v1475 = vunpack.c.l.b16 %v262
    %v1476 = vunpack.c.h.b16 %v262
    %v1477 = vunpack.c.l.b16 %v263
    %v1478 = vunpack.c.h.b16 %v263
    %v1479 = vunpack.c.l.b16 %v264
    %v1480 = vunpack.c.h.b16 %v264
    %v1481 = vunpack.c.l.b16 %v265
    %v1482 = vunpack.c.h.b16 %v265
    %v1483 = vunpack.c.l.b16 %v266
    %v1484 = vunpack.c.h.b16 %v266
    %v1485 = vunpack.c.l.b16 %v267
    %v1486 = vunpack.c.h.b16 %v267
    %v1487 = vunpack.c.l.b16 %v268
    %v1488 = vunpack.c.h.b16 %v268
    %v1489 = vunpack.c.l.b16 %v269
    %v1490 = vunpack.c.h.b16 %v269
    %v1491 = vunpack.c.l.b16 %v270
    %v1492 = vunpack.c.h.b16 %v270
    %v1493 = vunpack.c.l.b16 %v271
    %v1494 = vunpack.c.h.b16 %v271
    %v1495 = vunpack.c.l.b16 %v272
    %v1496 = vunpack.c.h.b16 %v272
    %v1497 = vunpack.c.l.b16 %v273
    %v1498 = vunpack.c.h.b16 %v273
    %v1499 = vunpack.c.l.b16 %v274
    %v1500 = vunpack.c.h.b16 %v274
    %v1501 = vunpack.c.l.b16 %v275
    %v1502 = vunpack.c.h.b16 %v275
    %v1503 = vunpack.c.l.b16 %v276
    %v1504 = vunpack.c.h.b16 %v276
    %v1505 = vunpack.c.l.b16 %v277
    %v1506 = vunpack.c.h.b16 %v277
    %v1507 = vunpack.c.l.b16 %v278
    %v1508 = vunpack.c.h.b16 %v278
    %v1509 = vunpack.c.l.b16 %v279
    %v1510 = vunpack.c.h.b16 %v279
    %v1511 = vunpack.c.l.b16 %v280
    %v1512 = vunpack.c.h.b16 %v280
    %v1513 = vunpack.c.l.b16 %v281
    %v1514 = vunpack.c.h.b16 %v281
    %v1515 = vunpack.c.l.b16 %v282
    %v1516 = vunpack.c.h.b16 %v282
    %v1517 = vunpack.c.l.b16 %v283
    %v1518 = vunpack.c.h.b16 %v283
    %v1519 = vunpack.c.l.b16 %v284
    %v1520 = vunpack.c.h.b16 %v284
    %v1521 = vunpack.c.l.b16 %v285
    %v1522 = vunpack.c.h.b16 %v285
    %v1523 = vunpack.c.l.b16 %v286
    %v1524 = vunpack.c.h.b16 %v286
    %v1525 = vunpack.c.l.b16 %v287
    %v1526 = vunpack.c.h.b16 %v287
    %v1527 = vunpack.c.l.b16 %v288
    %v1528 = vunpack.c.h.b16 %v288
    %v1529 = vunpack.c.l.b16 %v289
    %v1530 = vunpack.c.h.b16 %v289
    %v1531 = vunpack.c.l.b16 %v290
    %v1532 = vunpack.c.h.b16 %v290
    %v1533 = vunpack.c.l.b16 %v291
    %v1534 = vunpack.c.h.b16 %v291
    %v1535 = vunpack.c.l.b16 %v292
    %v1536 = vunpack.c.h.b16 %v292
    %v1537 = vunpack.c.l.b16 %v293
    %v1538 = vunpack.c.h.b16 %v293
    %v1539 = vunpack.c.l.b16 %v294
    %v1540 = vunpack.c.h.b16 %v294
    %v1541 = vunpack.c.l.b16 %v295
    %v1542 = vunpack.c.h.b16 %v295
    %v1543 = vunpack.c.l.b16 %v296
    %v1544 = vunpack.c.h.b16 %v296
    %v1545 = vunpack.c.l.b16 %v297
    %v1546 = vunpack.c.h.b16 %v297
    %v1547 = vunpack.c.l.b16 %v298
    %v1548 = vunpack.c.h.b16 %v298
    %v1549 = vunpack.c.l.b16 %v299
    %v1550 = vunpack.c.h.b16 %v299
    %v1551 = vunpack.c.l.b16 %v300
    %v1552 = vunpack.c.h.b16 %v300
    %v1553 = vunpack.c.l.b16 %v301
    %v1554 = vunpack.c.h.b16 %v301
    %v1555 = vunpack.c.l.b16 %v302
    %v1556 = vunpack.c.h.b16 %v302
    %v1557 = vunpack.c.l.b16 %v303
    %v1558 = vunpack.c.h.b16 %v303
    %v1559 = vunpack.c.l.b16 %v304
    %v1560 = vunpack.c.h.b16 %v304
    %v1561 = vunpack.c.l.b16 %v305
    %v1562 = vunpack.c.h.b16 %v305
    %v1563 = vunpack.c.l.b16 %v306
    %v1564 = vunpack.c.h.b16 %v306
    %v1565 = vunpack.c.l.b16 %v307
    %v1566 = vunpack.c.h.b16 %v307
    %v1567 = vunpack.c.l.b16 %v308
    %v1568 = vunpack.c.h.b16 %v308
    %v1569 = vunpack.c.l.b16 %v309
    %v1570 = vunpack.c.h.b16 %v309
    %v1571 = vunpack.c.l.b16 %v310
    %v1572 = vunpack.c.h.b16 %v310
    %v1573 = vunpack.c.l.b16 %v311
    %v1574 = vunpack.c.h.b16 %v311
    %v1575 = vunpack.c.l.b16 %v312
    %v1576 = vunpack.c.h.b16 %v312
    %v1577 = vunpack.c.l.b16 %v313
    %v1578 = vunpack.c.h.b16 %v313
    %v1579 = vunpack.c.l.b16 %v314
    %v1580 = vunpack.c.h.b16 %v314
    %v1581 = vunpack.c.l.b16 %v315
    %v1582 = vunpack.c.h.b16 %v315
    %v1583 = vunpack.c.l.b16 %v316
    %v1584 = vunpack.c.h.b16 %v316
    %v1585 = vunpack.c.l.b16 %v317
    %v1586 = vunpack.c.h.b16 %v317
    %v1587 = vunpack.c.l.b16 %v318
    %v1588 = vunpack.c.h.b16 %v318
    %v1589 = vunpack.c.l.b16 %v319
    %v1590 = vunpack.c.h.b16 %v319
    %v1591 = vunpack.c.l.b16 %v320
    %v1592 = vunpack.c.h.b16 %v320
    %v1593 = vunpack.c.l.b16 %v321
    %v1594 = vunpack.c.h.b16 %v321
    %v1595 = vunpack.c.l.b16 %v322
    %v1596 = vunpack.c.h.b16 %v322
    %v1597 = vunpack.c.l.b16 %v323
    %v1598 = vunpack.c.h.b16 %v323
    %v1599 = vunpack.c.l.b16 %v324
    %v1600 = vunpack.c.h.b16 %v324
    %v1601 = vunpack.c.l.b16 %v325
    %v1602 = vunpack.c.h.b16 %v325
    %v1603 = vunpack.c.l.b16 %v326
    %v1604 = vunpack.c.h.b16 %v326
    %v1605 = vunpack.c.l.b16 %v327
    %v1606 = vunpack.c.h.b16 %v327
    %v1607 = vunpack.c.l.b16 %v328
    %v1608 = vunpack.c.h.b16 %v328
    %v1609 = vunpack.c.l.b16 %v329
    %v1610 = vunpack.c.h.b16 %v329
    %v1611 = vunpack.c.l.b16 %v330
    %v1612 = vunpack.c.h.b16 %v330
    %v1613 = vunpack.c.l.b16 %v331
    %v1614 = vunpack.c.h.b16 %v331
    %v1615 = vunpack.c.l.b16 %v332
    %v1616 = vunpack.c.h.b16 %v332
    %v1617 = vunpack.c.l.b16 %v333
    %v1618 = vunpack.c.h.b16 %v333
    %v1619 = vunpack.c.l.b16 %v334
    %v1620 = vunpack.c.h.b16 %v334
    %v1621 = vunpack.c.l.b16 %v335
    %v1622 = vunpack.c.h.b16 %v335
    %v1623 = vunpack.c.l.b16 %v336
    %v1624 = vunpack.c.h.b16 %v336
    %v1625 = vunpack.c.l.b16 %v337
    %v1626 = vunpack.c.h.b16 %v337
    %v1627 = vunpack.c.l.b16 %v338
    %v1628 = vunpack.c.h.b16 %v338
    %v1629 = vunpack.c.l.b16 %v339
    %v1630 = vunpack.c.h.b16 %v339
    %v1631 = vunpack.c.l.b16 %v340
    %v1632 = vunpack.c.h.b16 %v340
    %v1633 = vunpack.c.l.b16 %v341
    %v1634 = vunpack.c.h.b16 %v341
    %v1635 = vunpack.c.l.b16 %v342
    %v1636 = vunpack.c.h.b16 %v342
    %v1637 = vunpack.c.l.b16 %v343
    %v1638 = vunpack.c.h.b16 %v343
    %v1639 = vunpack.c.l.b16 %v344
    %v1640 = vunpack.c.h.b16 %v344
    %v1641 = vunpack.c.l.b16 %v345
    %v1642 = vunpack.c.h.b16 %v345
    %v1643 = vunpack.c.l.b16 %v346
    %v1644 = vunpack.c.h.b16 %v346
    %v1645 = vunpack.c.l.b16 %v347
    %v1646 = vunpack.c.h.b16 %v347
    %v1647 = vunpack.c.l.b16 %v348
    %v1648 = vunpack.c.h.b16 %v348
    %v1649 = vunpack.c.l.b16 %v349
    %v1650 = vunpack.c.h.b16 %v349
    %v1651 = vunpack.c.l.b16 %v350
    %v1652 = vunpack.c.h.b16 %v350
    %v1653 = vunpack.c.l.b16 %v351
    %v1654 = vunpack.c.h.b16 %v351
    %v1655 = vunpack.c.l.b16 %v352
    %v1656 = vunpack.c.h.b16 %v352
    %v1657 = vunpack.c.l.b16 %v353
    %v1658 = vunpack.c.h.b16 %v353
    %v1659 = vunpack.c.l.b16 %v354
    %v1660 = vunpack.c.h.b16 %v354
    %v1661 = vunpack.c.l.b16 %v355
    %v1662 = vunpack.c.h.b16 %v355
    %v1663 = vunpack.c.l.b16 %v356
    %v1664 = vunpack.c.h.b16 %v356
    %v1665 = vunpack.c.l.b16 %v357
    %v1666 = vunpack.c.h.b16 %v357
    %v1667 = vunpack.c.l.b16 %v358
    %v1668 = vunpack.c.h.b16 %v358
    %v1669 = vunpack.c.l.b16 %v359
    %v1670 = vunpack.c.h.b16 %v359
    %v1671 = vunpack.c.l.b16 %v360
    %v1672 = vunpack.c.h.b16 %v360
    %v1673 = vunpack.c.l.b16 %v361
    %v1674 = vunpack.c.h.b16 %v361
    %v1675 = vunpack.c.l.b16 %v362
    %v1676 = vunpack.c.h.b16 %v362
    %v1677 = vunpack.c.l.b16 %v363
    %v1678 = vunpack.c.h.b16 %v363
    %v1679 = vunpack.c.l.b16 %v364
    %v1680 = vunpack.c.h.b16 %v364
    %v1681 = vunpack.c.l.b16 %v365
    %v1682 = vunpack.c.h.b16 %v365
    %v1683 = vunpack.c.l.b16 %v366
    %v1684 = vunpack.c.h.b16 %v366
    %v1685 = vunpack.c.l.b16 %v367
    %v1686 = vunpack.c.h.b16 %v367
    %v1687 = vunpack.c.l.b16 %v368
    %v1688 = vunpack.c.h.b16 %v368
    %v1689 = vunpack.c.l.b16 %v369
    %v1690 = vunpack.c.h.b16 %v369
    %v1691 = vunpack.c.l.b16 %v370
    %v1692 = vunpack.c.h.b16 %v370
    %v1693 = vunpack.c.l.b16 %v371
    %v1694 = vunpack.c.h.b16 %v371
    %v1695 = vunpack.c.l.b16 %v372
    %v1696 = vunpack.c.h.b16 %v372
    %v1697 = vunpack.c.l.b16 %v373
    %v1698 = vunpack.c.h.b16 %v373
    %v1699 = vunpack.c.l.b16 %v374
    %v1700 = vunpack.c.h.b16 %v374
    %v1701 = vunpack.c.l.b16 %v375
    %v1702 = vunpack.c.h.b16 %v375
    %v1703 = vunpack.c.l.b16 %v376
    %v1704 = vunpack.c.h.b16 %v376
    %v1705 = vunpack.c.l.b16 %v377
    %v1706 = vunpack.c.h.b16 %v377
    %v1707 = vunpack.c.l.b16 %v378
    %v1708 = vunpack.c.h.b16 %v378
    %v1709 = vunpack.c.l.b16 %v379
    %v1710 = vunpack.c.h.b16 %v379
    %v1711 = vunpack.c.l.b16 %v380
    %v1712 = vunpack.c.h.b16 %v380
    %v1713 = vunpack.c.l.b16 %v381
    %v1714 = vunpack.c.h.b16 %v381
    %v1715 = vunpack.c.l.b16 %v382
    %v1716 = vunpack.c.h.b16 %v382
    %v1717 = vunpack.c.l.b16 %v383
    %v1718 = vunpack.c.h.b16 %v383
    %v1719 = vunpack.c.l.b16 %v384
    %v1720 = vunpack.c.h.b16 %v384
    %v1721 = vunpack.c.l.b16 %v385
    %v1722 = vunpack.c.h.b16 %v385
    %v1723 = vunpack.c.l.b16 %v386
    %v1724 = vunpack.c.h.b16 %v386
    %v1725 = vunpack.c.l.b16 %v387
    %v1726 = vunpack.c.h.b16 %v387
    %v1727 = vunpack.c.l.b16 %v388
    %v1728 = vunpack.c.h.b16 %v388
    %v1729 = vunpack.c.l.b16 %v389
    %v1730 = vunpack.c.h.b16 %v389
    %v1731 = vunpack.c.l.b16 %v390
    %v1732 = vunpack.c.h.b16 %v390
    %v1733 = vunpack.c.l.b16 %v391
    %v1734 = vunpack.c.h.b16 %v391
    %v1735 = vunpack.c.l.b16 %v392
    %v1736 = vunpack.c.h.b16 %v392
    %v1737 = vunpack.c.l.b16 %v393
    %v1738 = vunpack.c.h.b16 %v393
    %v1739 = vunpack.c.l.b16 %v394
    %v1740 = vunpack.c.h.b16 %v394
    %v1741 = vunpack.c.l.b16 %v395
    %v1742 = vunpack.c.h.b16 %v395
    %v1743 = vunpack.c.l.b16 %v396
    %v1744 = vunpack.c.h.b16 %v396
    %v1745 = vunpack.c.l.b16 %v397
    %v1746 = vunpack.c.h.b16 %v397
    %v1747 = vunpack.c.l.b16 %v398
    %v1748 = vunpack.c.h.b16 %v398
    %v1749 = vunpack.c.l.b16 %v399
    %v1750 = vunpack.c.h.b16 %v399
    %v1751 = vunpack.c.l.b16 %v400
    %v1752 = vunpack.c.h.b16 %v400
    %v1753 = vunpack.c.l.b16 %v401
    %v1754 = vunpack.c.h.b16 %v401
    %v1755 = vunpack.c.l.b16 %v402
    %v1756 = vunpack.c.h.b16 %v402
    %v1757 = vunpack.c.l.b16 %v403
    %v1758 = vunpack.c.h.b16 %v403
    %v1759 = vunpack.c.l.b16 %v404
    %v1760 = vunpack.c.h.b16 %v404
    %v1761 = vunpack.c.l.b16 %v405
    %v1762 = vunpack.c.h.b16 %v405
    %v1763 = vunpack.c.l.b16 %v406
    %v1764 = vunpack.c.h.b16 %v406
    %v1765 = vunpack.c.l.b16 %v407
    %v1766 = vunpack.c.h.b16 %v407
    %v1767 = vunpack.c.l.b16 %v408
    %v1768 = vunpack.c.h.b16 %v408
    %v1769 = vunpack.c.l.b16 %v409
    %v1770 = vunpack.c.h.b16 %v409
    %v1771 = vunpack.c.l.b16 %v410
    %v1772 = vunpack.c.h.b16 %v410
    %v1773 = vunpack.c.l.b16 %v411
    %v1774 = vunpack.c.h.b16 %v411
    %v1775 = vunpack.c.l.b16 %v412
    %v1776 = vunpack.c.h.b16 %v412
    %v1777 = vunpack.c.l.b16 %v413
    %v1778 = vunpack.c.h.b16 %v413
    %v1779 = vunpack.c.l.b16 %v414
    %v1780 = vunpack.c.h.b16 %v414
    %v1781 = vunpack.c.l.b16 %v415
    %v1782 = vunpack.c.h.b16 %v415
    %v1783 = vunpack.c.l.b16 %v416
    %v1784 = vunpack.c.h.b16 %v416
    %v1785 = vunpack.c.l.b16 %v417
    %v1786 = vunpack.c.h.b16 %v417
    %v1787 = vunpack.c.l.b16 %v418
    %v1788 = vunpack.c.h.b16 %v418
    %v1789 = vunpack.c.l.b16 %v419
    %v1790 = vunpack.c.h.b16 %v419
    %v1791 = vunpack.c.l.b16 %v420
    %v1792 = vunpack.c.h.b16 %v420
    %v1793 = vunpack.c.l.b16 %v421
    %v1794 = vunpack.c.h.b16 %v421
    %v1795 = vunpack.c.l.b16 %v422
    %v1796 = vunpack.c.h.b16 %v422
    %v1797 = vunpack.c.l.b16 %v423
    %v1798 = vunpack.c.h.b16 %v423
    %v1799 = vunpack.c.l.b16 %v424
    %v1800 = vunpack.c.h.b16 %v424
    %v1801 = vunpack.c.l.b16 %v425
    %v1802 = vunpack.c.h.b16 %v425
    %v1803 = vunpack.c.l.b16 %v426
    %v1804 = vunpack.c.h.b16 %v426
    %v1805 = vunpack.c.l.b16 %v427
    %v1806 = vunpack.c.h.b16 %v427
    %v1807 = vunpack.c.l.b16 %v428
    %v1808 = vunpack.c.h.b16 %v428
    %v1809 = vunpack.c.l.b16 %v429
    %v1810 = vunpack.c.h.b16 %v429
    %v1811 = vunpack.c.l.b16 %v430
    %v1812 = vunpack.c.h.b16 %v430
    %v1813 = vunpack.c.l.b16 %v431
    %v1814 = vunpack.c.h.b16 %v431
    %v1815 = vunpack.c.l.b16 %v432
    %v1816 = vunpack.c.h.b16 %v432
    %v1817 = vunpack.c.l.b16 %v433
    %v1818 = vunpack.c.h.b16 %v433
    %v1819 = vunpack.c.l.b16 %v434
    %v1820 = vunpack.c.h.b16 %v434
    %v1821 = vunpack.c.l.b16 %v435
    %v1822 = vunpack.c.h.b16 %v435
    %v1823 = vunpack.c.l.b16 %v436
    %v1824 = vunpack.c.h.b16 %v436
    %v1825 = vunpack.c.l.b16 %v437
    %v1826 = vunpack.c.h.b16 %v437
    %v1827 = vunpack.c.l.b16 %v438
    %v1828 = vunpack.c.h.b16 %v438
    %v1829 = vunpack.c.l.b16 %v439
    %v1830 = vunpack.c.h.b16 %v439
    %v1831 = vunpack.c.l.b16 %v440
    %v1832 = vunpack.c.h.b16 %v440
    %v1833 = vunpack.c.l.b16 %v441
    %v1834 = vunpack.c.h.b16 %v441
    %v1835 = vunpack.c.l.b16 %v442
    %v1836 = vunpack.c.h.b16 %v442
    %v1837 = vunpack.c.l.b16 %v443
    %v1838 = vunpack.c.h.b16 %v443
    %v1839 = vunpack.c.l.b16 %v444
    %v1840 = vunpack.c.h.b16 %v444
    %v1841 = vunpack.c.l.b16 %v445
    %v1842 = vunpack.c.h.b16 %v445
    %v1843 = vunpack.c.l.b16 %v446
    %v1844 = vunpack.c.h.b16 %v446
    %v1845 = vunpack.c.l.b16 %v447
    %v1846 = vunpack.c.h.b16 %v447
    %v1847 = vunpack.c.l.b16 %v448
    %v1848 = vunpack.c.h.b16 %v448
    %v1849 = vunpack.c.l.b16 %v449
    %v1850 = vunpack.c.h.b16 %v449
    %v1851 = vunpack.c.l.b16 %v450
    %v1852 = vunpack.c.h.b16 %v450
    %v1853 = vunpack.c.l.b16 %v451
    %v1854 = vunpack.c.h.b16 %v451
    %v1855 = vunpack.c.l.b16 %v452
    %v1856 = vunpack.c.h.b16 %v452
    %v1857 = vunpack.c.l.b16 %v453
    %v1858 = vunpack.c.h.b16 %v453
    %v1859 = vunpack.c.l.b16 %v454
    %v1860 = vunpack.c.h.b16 %v454
    %v1861 = vunpack.c.l.b16 %v455
    %v1862 = vunpack.c.h.b16 %v455
    %v1863 = vunpack.c.l.b16 %v456
    %v1864 = vunpack.c.h.b16 %v456
    %v1865 = vunpack.c.l.b16 %v457
    %v1866 = vunpack.c.h.b16 %v457
    %v1867 = vunpack.c.l.b16 %v458
    %v1868 = vunpack.c.h.b16 %v458
    %v1869 = vunpack.c.l.b16 %v459
    %v1870 = vunpack.c.h.b16 %v459
    %v1871 = vunpack.c.l.b16 %v460
    %v1872 = vunpack.c.h.b16 %v460
    %v1873 = vunpack.c.l.b16 %v461
    %v1874 = vunpack.c.h.b16 %v461
    %v1875 = vunpack.c.l.b16 %v462
    %v1876 = vunpack.c.h.b16 %v462
    %v1877 = vunpack.c.l.b16 %v463
    %v1878 = vunpack.c.h.b16 %v463
    %v1879 = vunpack.c.l.b16 %v464
    %v1880 = vunpack.c.h.b16 %v464
    %v1881 = vunpack.c.l.b16 %v465
    %v1882 = vunpack.c.h.b16 %v465
    %v1883 = vunpack.c.l.b16 %v466
    %v1884 = vunpack.c.h.b16 %v466
    %v1885 = vunpack.c.l.b16 %v467
    %v1886 = vunpack.c.h.b16 %v467
    %v1887 = vunpack.c.l.b16 %v468
    %v1888 = vunpack.c.h.b16 %v468
    %v1889 = vunpack.c.l.b16 %v469
    %v1890 = vunpack.c.h.b16 %v469
    %v1891 = vunpack.c.l.b16 %v470
    %v1892 = vunpack.c.h.b16 %v470
    %v1893 = vunpack.c.l.b16 %v471
    %v1894 = vunpack.c.h.b16 %v471
    %v1895 = vunpack.c.l.b16 %v472
    %v1896 = vunpack.c.h.b16 %v472
    %v1897 = vunpack.c.l.b16 %v473
    %v1898 = vunpack.c.h.b16 %v473
    %v1899 = vunpack.c.l.b16 %v474
    %v1900 = vunpack.c.h.b16 %v474
    %v1901 = vunpack.c.l.b16 %v475
    %v1902 = vunpack.c.h.b16 %v475
    %v1903 = vunpack.c.l.b16 %v476
    %v1904 = vunpack.c.h.b16 %v476
    %v1905 = vunpack.c.l.b16 %v477
    %v1906 = vunpack.c.h.b16 %v477
    %v1907 = vunpack.c.l.b16 %v478
    %v1908 = vunpack.c.h.b16 %v478
    %v1909 = vunpack.c.l.b16 %v479
    %v1910 = vunpack.c.h.b16 %v479
    %v1911 = vunpack.c.l.b16 %v480
    %v1912 = vunpack.c.h.b16 %v480
    %v1913 = vunpack.c.l.b16 %v481
    %v1914 = vunpack.c.h.b16 %v481
    %v1915 = vunpack.c.l.b16 %v482
    %v1916 = vunpack.c.h.b16 %v482
    %v1917 = vunpack.c.l.b16 %v483
    %v1918 = vunpack.c.h.b16 %v483
    %v1919 = vunpack.c.l.b16 %v484
    %v1920 = vunpack.c.h.b16 %v484
    %v1921 = vunpack.c.l.b16 %v485
    %v1922 = vunpack.c.h.b16 %v485
    %v1923 = vunpack.c.l.b16 %v486
    %v1924 = vunpack.c.h.b16 %v486
    %v1925 = vunpack.c.l.b16 %v487
    %v1926 = vunpack.c.h.b16 %v487
    %v1927 = vunpack.c.l.b16 %v488
    %v1928 = vunpack.c.h.b16 %v488
    %v1929 = vunpack.c.l.b16 %v489
    %v1930 = vunpack.c.h.b16 %v489
    %v1931 = vunpack.c.l.b16 %v490
    %v1932 = vunpack.c.h.b16 %v490
    %v1933 = vunpack.c.l.b16 %v491
    %v1934 = vunpack.c.h.b16 %v491
    %v1935 = vunpack.c.l.b16 %v492
    %v1936 = vunpack.c.h.b16 %v492
    %v1937 = vunpack.c.l.b16 %v493
    %v1938 = vunpack.c.h.b16 %v493
    %v1939 = vunpack.c.l.b16 %v494
    %v1940 = vunpack.c.h.b16 %v494
    %v1941 = vunpack.c.l.b16 %v495
    %v1942 = vunpack.c.h.b16 %v495
    %v1943 = vunpack.c.l.b16 %v496
    %v1944 = vunpack.c.h.b16 %v496
    %v1945 = vunpack.c.l.b16 %v497
    %v1946 = vunpack.c.h.b16 %v497
    %v1947 = vunpack.c.l.b16 %v498
    %v1948 = vunpack.c.h.b16 %v498
    %v1949 = vunpack.c.l.b16 %v499
    %v1950 = vunpack.c.h.b16 %v499
    %v1951 = vunpack.c.l.b16 %v500
    %v1952 = vunpack.c.h.b16 %v500
    %v1953 = vunpack.c.l.b16 %v501
    %v1954 = vunpack.c.h.b16 %v501
    %v1955 = vunpack.c.l.b16 %v502
    %v1956 = vunpack.c.h.b16 %v502
    %v1957 = vunpack.c.l.b16 %v503
    %v1958 = vunpack.c.h.b16 %v503
    %v1959 = vunpack.c.l.b16 %v504
    %v1960 = vunpack.c.h.b16 %v504
    %v1961 = vunpack.c.l.b16 %v505
    %v1962 = vunpack.c.h.b16 %v505
    %v1963 = vunpack.c.l.b16 %v506
    %v1964 = vunpack.c.h.b16 %v506
    %v1965 = vunpack.c.l.b16 %v507
    %v1966 = vunpack.c.h.b16 %v507
    %v1967 = vunpack.c.l.b16 %v508
    %v1968 = vunpack.c.h.b16 %v508
    %v1969 = vunpack.c.l.b16 %v509
    %v1970 = vunpack.c.h.b16 %v509
    %v1971 = vunpack.c.l.b16 %v510
    %v1972 = vunpack.c.h.b16 %v510
    %v1973 = vunpack.c.l.b16 %v511
    %v1974 = vunpack.c.h.b16 %v511
    %v1975 = vunpack.c.l.b16 %v512
    %v1976 = vunpack.c.h.b16 %v512
    %v1977 = vunpack.c.l.b16 %v513
    %v1978 = vunpack.c.h.b16 %v513
    %v1979 = vunpack.c.l.b16 %v514
    %v1980 = vunpack.c.h.b16 %v514
    %v1981 = vunpack.c.l.b16 %v515
    %v1982 = vunpack.c.h.b16 %v515
    %v1983 = vunpack.c.l.b16 %v516
    %v1984 = vunpack.c.h.b16 %v516
    %v1985 = vunpack.c.l.b16 %v517
    %v1986 = vunpack.c.h.b16 %v517
    %v1987 = vunpack.c.l.b16 %v518
    %v1988 = vunpack.c.h.b16 %v518
    %v1989 = vunpack.c.l.b16 %v519
    %v1990 = vunpack.c.h.b16 %v519
    %v1991 = vunpack.c.l.b16 %v520
    %v1992 = vunpack.c.h.b16 %v520
    %v1993 = vunpack.c.l.b16 %v521
    %v1994 = vunpack.c.h.b16 %v521
    %v1995 = vunpack.c.l.b16 %v522
    %v1996 = vunpack.c.h.b16 %v522
    %v1997 = vunpack.c.l.b16 %v523
    %v1998 = vunpack.c.h.b16 %v523
    %v1999 = vunpack.c.l.b16 %v524
    %v2000 = vunpack.c.h.b16 %v524
    %v2001 = vunpack.c.l.b16 %v525
    %v2002 = vunpack.c.h.b16 %v525
    %v2003 = vunpack.c.l.b16 %v526
    %v2004 = vunpack.c.h.b16 %v526
    %v2005 = vunpack.c.l.b16 %v527
    %v2006 = vunpack.c.h.b16 %v527
    %v2007 = vunpack.c.l.b16 %v528
    %v2008 = vunpack.c.h.b16 %v528
    %v2009 = vunpack.c.l.b16 %v529
    %v2010 = vunpack.c.h.b16 %v529
    %v2011 = vunpack.c.l.b16 %v530
    %v2012 = vunpack.c.h.b16 %v530
    %v2013 = vunpack.c.l.b16 %v531
    %v2014 = vunpack.c.h.b16 %v531
    %v2015 = vunpack.c.l.b16 %v532
    %v2016 = vunpack.c.h.b16 %v532
    %v2017 = vunpack.c.l.b16 %v533
    %v2018 = vunpack.c.h.b16 %v533
    %v2019 = vunpack.c.l.b16 %v534
    %v2020 = vunpack.c.h.b16 %v534
    %v2021 = vunpack.c.l.b16 %v535
    %v2022 = vunpack.c.h.b16 %v535
    %v2023 = vunpack.c.l.b16 %v536
    %v2024 = vunpack.c.h.b16 %v536
    %v2025 = vunpack.c.l.b16 %v537
    %v2026 = vunpack.c.h.b16 %v537
    %v2027 = vunpack.c.l.b16 %v538
    %v2028 = vunpack.c.h.b16 %v538
    %v2029 = vunpack.c.l.b16 %v539
    %v2030 = vunpack.c.h.b16 %v539
    %v2031 = vunpack.c.l.b16 %v540
    %v2032 = vunpack.c.h.b16 %v540
    %v2033 = vunpack.c.l.b16 %v541
    %v2034 = vunpack.c.h.b16 %v541
    %v2035 = vunpack.c.l.b16 %v542
    %v2036 = vunpack.c.h.b16 %v542
    %v2037 = vunpack.c.l.b16 %v543
    %v2038 = vunpack.c.h.b16 %v543
    %v2039 = vunpack.c.l.b16 %v544
    %v2040 = vunpack.c.h.b16 %v544
    %v2041 = vunpack.c.l.b16 %v545
    %v2042 = vunpack.c.h.b16 %v545
    %v2043 = vunpack.c.l.b16 %v546
    %v2044 = vunpack.c.h.b16 %v546
    %v2045 = vunpack.c.l.b16 %v547
    %v2046 = vunpack.c.h.b16 %v547
    %v2047 = vunpack.c.l.b16 %v548
    %v2048 = vunpack.c.h.b16 %v548
    %v2049 = vunpack.c.l.b16 %v549
    %v2050 = vunpack.c.h.b16 %v549
    %v2051 = vunpack.c.l.b16 %v550
    %v2052 = vunpack.c.h.b16 %v550
    %v2053 = vunpack.c.l.b16 %v551
    %v2054 = vunpack.c.h.b16 %v551
    %v2055 = vunpack.c.l.b16 %v552
    %v2056 = vunpack.c.h.b16 %v552
    %v2057 = vunpack.c.l.b16 %v553
    %v2058 = vunpack.c.h.b16 %v553
    %v2059 = vunpack.c.l.b16 %v554
    %v2060 = vunpack.c.h.b16 %v554
    %v2061 = vunpack.c.l.b16 %v555
    %v2062 = vunpack.c.h.b16 %v555
    %v2063 = vunpack.c.l.b16 %v556
    %v2064 = vunpack.c.h.b16 %v556
    %v2065 = vunpack.c.l.b16 %v557
    %v2066 = vunpack.c.h.b16 %v557
    %v2067 = vunpack.c.l.b16 %v558
    %v2068 = vunpack.c.h.b16 %v558
    %v2069 = vunpack.c.l.b16 %v559
    %v2070 = vunpack.c.h.b16 %v559
    %v2071 = vunpack.c.l.b16 %v560
    %v2072 = vunpack.c.h.b16 %v560
    %v2073 = vunpack.c.l.b16 %v561
    %v2074 = vunpack.c.h.b16 %v561
    %v2075 = vunpack.c.l.b16 %v562
    %v2076 = vunpack.c.h.b16 %v562
    %v2077 = vunpack.c.l.b16 %v563
    %v2078 = vunpack.c.h.b16 %v563
    %v2079 = vunpack.c.l.b16 %v564
    %v2080 = vunpack.c.h.b16 %v564
    %v2081 = vunpack.c.l.b16 %v565
    %v2082 = vunpack.c.h.b16 %v565
    %v2083 = vunpack.c.l.b16 %v566
    %v2084 = vunpack.c.h.b16 %v566
    %v2085 = vunpack.c.l.b16 %v567
    %v2086 = vunpack.c.h.b16 %v567
    %v2087 = vunpack.c.l.b16 %v568
    %v2088 = vunpack.c.h.b16 %v568
    %v2089 = vunpack.c.l.b16 %v569
    %v2090 = vunpack.c.h.b16 %v569
    %v2091 = vunpack.c.l.b16 %v570
    %v2092 = vunpack.c.h.b16 %v570
    %v2093 = vunpack.c.l.b16 %v571
    %v2094 = vunpack.c.h.b16 %v571
    %v2095 = vunpack.c.l.b16 %v572
    %v2096 = vunpack.c.h.b16 %v572
    %v2097 = vunpack.c.l.b16 %v573
    %v2098 = vunpack.c.h.b16 %v573
    %v2099 = vunpack.c.l.b16 %v574
    %v2100 = vunpack.c.h.b16 %v574
    %v2101 = vunpack.c.l.b16 %v575
    %v2102 = vunpack.c.h.b16 %v575
    %v2103 = vunpack.c.l.b16 %v576
    %v2104 = vunpack.c.h.b16 %v576
    %v2105 = vunpack.c.l.b16 %v577
    %v2106 = vunpack.c.h.b16 %v577
    %v2107 = vunpack.c.l.b16 %v578
    %v2108 = vunpack.c.h.b16 %v578
    %v2109 = vunpack.c.l.b16 %v579
    %v2110 = vunpack.c.h.b16 %v579
    %v2111 = vunpack.c.l.b16 %v580
    %v2112 = vunpack.c.h.b16 %v580
    %v2113 = vunpack.c.l.b16 %v581
    %v2114 = vunpack.c.h.b16 %v581
    %v2115 = vunpack.c.l.b16 %v582
    %v2116 = vunpack.c.h.b16 %v582
    %v2117 = vunpack.c.l.b16 %v583
    %v2118 = vunpack.c.h.b16 %v583
    %v2119 = vunpack.c.l.b16 %v584
    %v2120 = vunpack.c.h.b16 %v584
    %v2121 = vpack.c.b16 %v1359, %v1353
    %v2122 = vpack.c.b16 %v1360, %v1354
    %v2123 = vpack.c.b16 %v1361, %v1355
    %v2124 = vpack.c.b16 %v1362, %v1356
    %v2125 = vpack.c.b16 %v1363, %v1357
    %v2126 = vpack.c.b16 %v1364, %v1358
    %v2127 = vpack.c.b16 %v1371, %v1365
    %v2128 = vpack.c.b16 %v1372, %v1366
    %v2129 = vpack.c.b16 %v1373, %v1367
    %v2130 = vpack.c.b16 %v1374, %v1368
    %v2131 = vpack.c.b16 %v1375, %v1369
    %v2132 = vpack.c.b16 %v1376, %v1370
    %v2133 = vpack.c.b16 %v1383, %v1377
    %v2134 = vpack.c.b16 %v1384, %v1378
    %v2135 = vpack.c.b16 %v1385, %v1379
    %v2136 = vpack.c.b16 %v1386, %v1380
    %v2137 = vpack.c.b16 %v1387, %v1381
    %v2138 = vpack.c.b16 %v1388, %v1382
    %v2139 = vpack.c.b16 %v1395, %v1389
    %v2140 = vpack.c.b16 %v1396, %v1390
    %v2141 = vpack.c.b16 %v1397, %v1391
    %v2142 = vpack.c.b16 %v1398, %v1392
    %v2143 = vpack.c.b16 %v1399, %v1393
    %v2144 = vpack.c.b16 %v1400, %v1394
    %v2145 = vpack.c.b16 %v1407, %v1401
    %v2146 = vpack.c.b16 %v1408, %v1402
    %v2147 = vpack.c.b16 %v1409, %v1403
    %v2148 = vpack.c.b16 %v1410, %v1404
    %v2149 = vpack.c.b16 %v1411, %v1405
    %v2150 = vpack.c.b16 %v1412, %v1406
    %v2151 = vpack.c.b16 %v1419, %v1413
    %v2152 = vpack.c.b16 %v1420, %v1414
    %v2153 = vpack.c.b16 %v1421, %v1415
    %v2154 = vpack.c.b16 %v1422, %v1416
    %v2155 = vpack.c.b16 %v1423, %v1417
    %v2156 = vpack.c.b16 %v1424, %v1418
    %v2157 = vpack.c.b16 %v1431, %v1425
    %v2158 = vpack.c.b16 %v1432, %v1426
    %v2159 = vpack.c.b16 %v1433, %v1427
    %v2160 = vpack.c.b16 %v1434, %v1428
    %v2161 = vpack.c.b16 %v1435, %v1429
    %v2162 = vpack.c.b16 %v1436, %v1430
    %v2163 = vpack.c.b16 %v1443, %v1437
    %v2164 = vpack.c.b16 %v1444, %v1438
    %v2165 = vpack.c.b16 %v1445, %v1439
    %v2166 = vpack.c.b16 %v1446, %v1440
    %v2167 = vpack.c.b16 %v1447, %v1441
    %v2168 = vpack.c.b16 %v1448, %v1442
    %v2169 = vpack.c.b16 %v1455, %v1449
    %v2170 = vpack.c.b16 %v1456, %v1450
    %v2171 = vpack.c.b16 %v1457, %v1451
    %v2172 = vpack.c.b16 %v1458, %v1452
    %v2173 = vpack.c.b16 %v1459, %v1453
    %v2174 = vpack.c.b16 %v1460, %v1454
    %v2175 = vpack.c.b16 %v1467, %v1461
    %v2176 = vpack.c.b16 %v1468, %v1462
    %v2177 = vpack.c.b16 %v1469, %v1463
    %v2178 = vpack.c.b16 %v1470, %v1464
    %v2179 = vpack.c.b16 %v1471, %v1465
    %v2180 = vpack.c.b16 %v1472, %v1466
    %v2181 = vpack.c.b16 %v1479, %v1473
    %v2182 = vpack.c.b16 %v1480, %v1474
    %v2183 = vpack.c.b16 %v1481, %v1475
    %v2184 = vpack.c.b16 %v1482, %v1476
    %v2185 = vpack.c.b16 %v1483, %v1477
    %v2186 = vpack.c.b16 %v1484, %v1478
    %v2187 = vpack.c.b16 %v1491, %v1485
    %v2188 = vpack.c.b16 %v1492, %v1486
    %v2189 = vpack.c.b16 %v1493, %v1487
    %v2190 = vpack.c.b16 %v1494, %v1488
    %v2191 = vpack.c.b16 %v1495, %v1489
    %v2192 = vpack.c.b16 %v1496, %v1490
    %v2193 = vpack.c.b16 %v1503, %v1497
    %v2194 = vpack.c.b16 %v1504, %v1498
    %v2195 = vpack.c.b16 %v1505, %v1499
    %v2196 = vpack.c.b16 %v1506, %v1500
    %v2197 = vpack.c.b16 %v1507, %v1501
    %v2198 = vpack.c.b16 %v1508, %v1502
    %v2199 = vpack.c.b16 %v1515, %v1509
    %v2200 = vpack.c.b16 %v1516, %v1510
    %v2201 = vpack.c.b16 %v1517, %v1511
    %v2202 = vpack.c.b16 %v1518, %v1512
    %v2203 = vpack.c.b16 %v1519, %v1513
    %v2204 = vpack.c.b16 %v1520, %v1514
    %v2205 = vpack.c.b16 %v1527, %v1521
    %v2206 = vpack.c.b16 %v1528, %v1522
    %v2207 = vpack.c.b16 %v1529, %v1523
    %v2208 = vpack.c.b16 %v1530, %v1524
    %v2209 = vpack.c.b16 %v1531, %v1525
    %v2210 = vpack.c.b16 %v1532, %v1526
    %v2211 = vpack.c.b16 %v1539, %v1533
    %v2212 = vpack.c.b16 %v1540, %v1534
    %v2213 = vpack.c.b16 %v1541, %v1535
    %v2214 = vpack.c.b16 %v1542, %v1536
    %v2215 = vpack.c.b16 %v1543, %v1537
    %v2216 = vpack.c.b16 %v1544, %v1538
    %v2217 = vpack.c.b16 %v1551, %v1545
    %v2218 = vpack.c.b16 %v1552, %v1546
    %v2219 = vpack.c.b16 %v1553, %v1547
    %v2220 = vpack.c.b16 %v1554, %v1548
    %v2221 = vpack.c.b16 %v1555, %v1549
    %v2222 = vpack.c.b16 %v1556, %v1550
    %v2223 = vpack.c.b16 %v1563, %v1557
    %v2224 = vpack.c.b16 %v1564, %v1558
    %v2225 = vpack.c.b16 %v1565, %v1559
    %v2226 = vpack.c.b16 %v1566, %v1560
    %v2227 = vpack.c.b16 %v1567, %v1561
    %v2228 = vpack.c.b16 %v1568, %v1562
    %v2229 = vpack.c.b16 %v1575, %v1569
    %v2230 = vpack.c.b16 %v1576, %v1570
    %v2231 = vpack.c.b16 %v1577, %v1571
    %v2232 = vpack.c.b16 %v1578, %v1572
    %v2233 = vpack.c.b16 %v1579, %v1573
    %v2234 = vpack.c.b16 %v1580, %v1574
    %v2235 = vpack.c.b16 %v1587, %v1581
    %v2236 = vpack.c.b16 %v1588, %v1582
    %v2237 = vpack.c.b16 %v1589, %v1583
    %v2238 = vpack.c.b16 %v1590, %v1584
    %v2239 = vpack.c.b16 %v1591, %v1585
    %v2240 = vpack.c.b16 %v1592, %v1586
    %v2241 = vpack.c.b16 %v1599, %v1593
    %v2242 = vpack.c.b16 %v1600, %v1594
    %v2243 = vpack.c.b16 %v1601, %v1595
    %v2244 = vpack.c.b16 %v1602, %v1596
    %v2245 = vpack.c.b16 %v1603, %v1597
    %v2246 = vpack.c.b16 %v1604, %v1598
    %v2247 = vpack.c.b16 %v1611, %v1605
    %v2248 = vpack.c.b16 %v1612, %v1606
    %v2249 = vpack.c.b16 %v1613, %v1607
    %v2250 = vpack.c.b16 %v1614, %v1608
    %v2251 = vpack.c.b16 %v1615, %v1609
    %v2252 = vpack.c.b16 %v1616, %v1610
    %v2253 = vpack.c.b16 %v1623, %v1617
    %v2254 = vpack.c.b16 %v1624, %v1618
    %v2255 = vpack.c.b16 %v1625, %v1619
    %v2256 = vpack.c.b16 %v1626, %v1620
    %v2257 = vpack.c.b16 %v1627, %v1621
    %v2258 = vpack.c.b16 %v1628, %v1622
    %v2259 = vpack.c.b16 %v1635, %v1629
    %v2260 = vpack.c.b16 %v1636, %v1630
    %v2261 = vpack.c.b16 %v1637, %v1631
    %v2262 = vpack.c.b16 %v1638, %v1632
    %v2263 = vpack.c.b16 %v1639, %v1633
    %v2264 = vpack.c.b16 %v1640, %v1634
    %v2265 = vpack.c.b16 %v1647, %v1641
    %v2266 = vpack.c.b16 %v1648, %v1642
    %v2267 = vpack.c.b16 %v1649, %v1643
    %v2268 = vpack.c.b16 %v1650, %v1644
    %v2269 = vpack.c.b16 %v1651, %v1645
    %v2270 = vpack.c.b16 %v1652, %v1646
    %v2271 = vpack.c.b16 %v1659, %v1653
    %v2272 = vpack.c.b16 %v1660, %v1654
    %v2273 = vpack.c.b16 %v1661, %v1655
    %v2274 = vpack.c.b16 %v1662, %v1656
    %v2275 = vpack.c.b16 %v1663, %v1657
    %v2276 = vpack.c.b16 %v1664, %v1658
    %v2277 = vpack.c.b16 %v1671, %v1665
    %v2278 = vpack.c.b16 %v1672, %v1666
    %v2279 = vpack.c.b16 %v1673, %v1667
    %v2280 = vpack.c.b16 %v1674, %v1668
    %v2281 = vpack.c.b16 %v1675, %v1669
    %v2282 = vpack.c.b16 %v1676, %v1670
    %v2283 = vpack.c.b16 %v1683, %v1677
    %v2284 = vpack.c.b16 %v1684, %v1678
    %v2285 = vpack.c.b16 %v1685, %v1679
    %v2286 = vpack.c.b16 %v1686, %v1680
    %v2287 = vpack.c.b16 %v1687, %v1681
    %v2288 = vpack.c.b16 %v1688, %v1682
    %v2289 = vpack.c.b16 %v1695, %v1689
    %v2290 = vpack.c.b16 %v1696, %v1690
    %v2291 = vpack.c.b16 %v1697, %v1691
    %v2292 = vpack.c.b16 %v1698, %v1692
    %v2293 = vpack.c.b16 %v1699, %v1693
    %v2294 = vpack.c.b16 %v1700, %v1694
    %v2295 = vpack.c.b16 %v1707, %v1701
    %v2296 = vpack.c.b16 %v1708, %v1702
    %v2297 = vpack.c.b16 %v1709, %v1703
    %v2298 = vpack.c.b16 %v1710, %v1704
    %v2299 = vpack.c.b16 %v1711, %v1705
    %v2300 = vpack.c.b16 %v1712, %v1706
    %v2301 = vpack.c.b16 %v1719, %v1713
    %v2302 = vpack.c.b16 %v1720, %v1714
    %v2303 = vpack.c.b16 %v1721, %v1715
    %v2304 = vpack.c.b16 %v1722, %v1716
    %v2305 = vpack.c.b16 %v1723, %v1717
    %v2306 = vpack.c.b16 %v1724, %v1718
    %v2307 = vpack.c.b16 %v1731, %v1725
    %v2308 = vpack.c.b16 %v1732, %v1726
    %v2309 = vpack.c.b16 %v1733, %v1727
    %v2310 = vpack.c.b16 %v1734, %v1728
    %v2311 = vpack.c.b16 %v1735, %v1729
    %v2312 = vpack.c.b16 %v1736, %v1730
    %v2313 = vpack.c.b16 %v1743, %v1737
    %v2314 = vpack.c.b16 %v1744, %v1738
    %v2315 = vpack.c.b16 %v1745, %v1739
    %v2316 = vpack.c.b16 %v1746, %v1740
    %v2317 = vpack.c.b16 %v1747, %v1741
    %v2318 = vpack.c.b16 %v1748, %v1742
    %v2319 = vpack.c.b16 %v1755, %v1749
    %v2320 = vpack.c.b16 %v1756, %v1750
    %v2321 = vpack.c.b16 %v1757, %v1751
    %v2322 = vpack.c.b16 %v1758, %v1752
    %v2323 = vpack.c.b16 %v1759, %v1753
    %v2324 = vpack.c.b16 %v1760, %v1754
    %v2325 = vpack.c.b16 %v1767, %v1761
    %v2326 = vpack.c.b16 %v1768, %v1762
    %v2327 = vpack.c.b16 %v1769, %v1763
    %v2328 = vpack.c.b16 %v1770, %v1764
    %v2329 = vpack.c.b16 %v1771, %v1765
    %v2330 = vpack.c.b16 %v1772, %v1766
    %v2331 = vpack.c.b16 %v1779, %v1773
    %v2332 = vpack.c.b16 %v1780, %v1774
    %v2333 = vpack.c.b16 %v1781, %v1775
    %v2334 = vpack.c.b16 %v1782, %v1776
    %v2335 = vpack.c.b16 %v1783, %v1777
    %v2336 = vpack.c.b16 %v1784, %v1778
    %v2337 = vpack.c.b16 %v1791, %v1785
    %v2338 = vpack.c.b16 %v1792, %v1786
    %v2339 = vpack.c.b16 %v1793, %v1787
    %v2340 = vpack.c.b16 %v1794, %v1788
    %v2341 = vpack.c.b16 %v1795, %v1789
    %v2342 = vpack.c.b16 %v1796, %v1790
    %v2343 = vpack.c.b16 %v1803, %v1797
    %v2344 = vpack.c.b16 %v1804, %v1798
    %v2345 = vpack.c.b16 %v1805, %v1799
    %v2346 = vpack.c.b16 %v1806, %v1800
    %v2347 = vpack.c.b16 %v1807, %v1801
    %v2348 = vpack.c.b16 %v1808, %v1802
    %v2349 = vpack.c.b16 %v1815, %v1809
    %v2350 = vpack.c.b16 %v1816, %v1810
    %v2351 = vpack.c.b16 %v1817, %v1811
    %v2352 = vpack.c.b16 %v1818, %v1812
    %v2353 = vpack.c.b16 %v1819, %v1813
    %v2354 = vpack.c.b16 %v1820, %v1814
    %v2355 = vpack.c.b16 %v1827, %v1821
    %v2356 = vpack.c.b16 %v1828, %v1822
    %v2357 = vpack.c.b16 %v1829, %v1823
    %v2358 = vpack.c.b16 %v1830, %v1824
    %v2359 = vpack.c.b16 %v1831, %v1825
    %v2360 = vpack.c.b16 %v1832, %v1826
    %v2361 = vpack.c.b16 %v1839, %v1833
    %v2362 = vpack.c.b16 %v1840, %v1834
    %v2363 = vpack.c.b16 %v1841, %v1835
    %v2364 = vpack.c.b16 %v1842, %v1836
    %v2365 = vpack.c.b16 %v1843, %v1837
    %v2366 = vpack.c.b16 %v1844, %v1838
    %v2367 = vpack.c.b16 %v1851, %v1845
    %v2368 = vpack.c.b16 %v1852, %v1846
    %v2369 = vpack.c.b16 %v1853, %v1847
    %v2370 = vpack.c.b16 %v1854, %v1848
    %v2371 = vpack.c.b16 %v1855, %v1849
    %v2372 = vpack.c.b16 %v1856, %v1850
    %v2373 = vpack.c.b16 %v1863, %v1857
    %v2374 = vpack.c.b16 %v1864, %v1858
    %v2375 = vpack.c.b16 %v1865, %v1859
    %v2376 = vpack.c.b16 %v1866, %v1860
    %v2377 = vpack.c.b16 %v1867, %v1861
    %v2378 = vpack.c.b16 %v1868, %v1862
    %v2379 = vpack.c.b16 %v1875, %v1869
    %v2380 = vpack.c.b16 %v1876, %v1870
    %v2381 = vpack.c.b16 %v1877, %v1871
    %v2382 = vpack.c.b16 %v1878, %v1872
    %v2383 = vpack.c.b16 %v1879, %v1873
    %v2384 = vpack.c.b16 %v1880, %v1874
    %v2385 = vpack.c.b16 %v1887, %v1881
    %v2386 = vpack.c.b16 %v1888, %v1882
    %v2387 = vpack.c.b16 %v1889, %v1883
    %v2388 = vpack.c.b16 %v1890, %v1884
    %v2389 = vpack.c.b16 %v1891, %v1885
    %v2390 = vpack.c.b16 %v1892, %v1886
    %v2391 = vpack.c.b16 %v1899, %v1893
    %v2392 = vpack.c.b16 %v1900, %v1894
    %v2393 = vpack.c.b16 %v1901, %v1895
    %v2394 = vpack.c.b16 %v1902, %v1896
    %v2395 = vpack.c.b16 %v1903, %v1897
    %v2396 = vpack.c.b16 %v1904, %v1898
    %v2397 = vpack.c.b16 %v1911, %v1905
    %v2398 = vpack.c.b16 %v1912, %v1906
    %v2399 = vpack.c.b16 %v1913, %v1907
    %v2400 = vpack.c.b16 %v1914, %v1908
    %v2401 = vpack.c.b16 %v1915, %v1909
    %v2402 = vpack.c.b16 %v1916, %v1910
    %v2403 = vpack.c.b16 %v1923, %v1917
    %v2404 = vpack.c.b16 %v1924, %v1918
    %v2405 = vpack.c.b16 %v1925, %v1919
    %v2406 = vpack.c.b16 %v1926, %v1920
    %v2407 = vpack.c.b16 %v1927, %v1921
    %v2408 = vpack.c.b16 %v1928, %v1922
    %v2409 = vpack.c.b16 %v1935, %v1929
    %v2410 = vpack.c.b16 %v1936, %v1930
    %v2411 = vpack.c.b16 %v1937, %v1931
    %v2412 = vpack.c.b16 %v1938, %v1932
    %v2413 = vpack.c.b16 %v1939, %v1933
    %v2414 = vpack.c.b16 %v1940, %v1934
    %v2415 = vpack.c.b16 %v1947, %v1941
    %v2416 = vpack.c.b16 %v1948, %v1942
    %v2417 = vpack.c.b16 %v1949, %v1943
    %v2418 = vpack.c.b16 %v1950, %v1944
    %v2419 = vpack.c.b16 %v1951, %v1945
    %v2420 = vpack.c.b16 %v1952, %v1946
    %v2421 = vpack.c.b16 %v1959, %v1953
    %v2422 = vpack.c.b16 %v1960, %v1954
    %v2423 = vpack.c.b16 %v1961, %v1955
    %v2424 = vpack.c.b16 %v1962, %v1956
    %v2425 = vpack.c.b16 %v1963, %v1957
    %v2426 = vpack.c.b16 %v1964, %v1958
    %v2427 = vpack.c.b16 %v1971, %v1965
    %v2428 = vpack.c.b16 %v1972, %v1966
    %v2429 = vpack.c.b16 %v1973, %v1967
    %v2430 = vpack.c.b16 %v1974, %v1968
    %v2431 = vpack.c.b16 %v1975, %v1969
    %v2432 = vpack.c.b16 %v1976, %v1970
    %v2433 = vpack.c.b16 %v1983, %v1977
    %v2434 = vpack.c.b16 %v1984, %v1978
    %v2435 = vpack.c.b16 %v1985, %v1979
    %v2436 = vpack.c.b16 %v1986, %v1980
    %v2437 = vpack.c.b16 %v1987, %v1981
    %v2438 = vpack.c.b16 %v1988, %v1982
    %v2439 = vpack.c.b16 %v1995, %v1989
    %v2440 = vpack.c.b16 %v1996, %v1990
    %v2441 = vpack.c.b16 %v1997, %v1991
    %v2442 = vpack.c.b16 %v1998, %v1992
    %v2443 = vpack.c.b16 %v1999, %v1993
    %v2444 = vpack.c.b16 %v2000, %v1994
    %v2445 = vpack.c.b16 %v2007, %v2001
    %v2446 = vpack.c.b16 %v2008, %v2002
    %v2447 = vpack.c.b16 %v2009, %v2003
    %v2448 = vpack.c.b16 %v2010, %v2004
    %v2449 = vpack.c.b16 %v2011, %v2005
    %v2450 = vpack.c.b16 %v2012, %v2006
    %v2451 = vpack.c.b16 %v2019, %v2013
    %v2452 = vpack.c.b16 %v2020, %v2014
    %v2453 = vpack.c.b16 %v2021, %v2015
    %v2454 = vpack.c.b16 %v2022, %v2016
    %v2455 = vpack.c.b16 %v2023, %v2017
    %v2456 = vpack.c.b16 %v2024, %v2018
    %v2457 = vpack.c.b16 %v2031, %v2025
    %v2458 = vpack.c.b16 %v2032, %v2026
    %v2459 = vpack.c.b16 %v2033, %v2027
    %v2460 = vpack.c.b16 %v2034, %v2028
    %v2461 = vpack.c.b16 %v2035, %v2029
    %v2462 = vpack.c.b16 %v2036, %v2030
    %v2463 = vpack.c.b16 %v2043, %v2037
    %v2464 = vpack.c.b16 %v2044, %v2038
    %v2465 = vpack.c.b16 %v2045, %v2039
    %v2466 = vpack.c.b16 %v2046, %v2040
    %v2467 = vpack.c.b16 %v2047, %v2041
    %v2468 = vpack.c.b16 %v2048, %v2042
    %v2469 = vpack.c.b16 %v2055, %v2049
    %v2470 = vpack.c.b16 %v2056, %v2050
    %v2471 = vpack.c.b16 %v2057, %v2051
    %v2472 = vpack.c.b16 %v2058, %v2052
    %v2473 = vpack.c.b16 %v2059, %v2053
    %v2474 = vpack.c.b16 %v2060, %v2054
    %v2475 = vpack.c.b16 %v2067, %v2061
    %v2476 = vpack.c.b16 %v2068, %v2062
    %v2477 = vpack.c.b16 %v2069, %v2063
    %v2478 = vpack.c.b16 %v2070, %v2064
    %v2479 = vpack.c.b16 %v2071, %v2065
    %v2480 = vpack.c.b16 %v2072, %v2066
    %v2481 = vpack.c.b16 %v2079, %v2073
    %v2482 = vpack.c.b16 %v2080, %v2074
    %v2483 = vpack.c.b16 %v2081, %v2075
    %v2484 = vpack.c.b16 %v2082, %v2076
    %v2485 = vpack.c.b16 %v2083, %v2077
    %v2486 = vpack.c.b16 %v2084, %v2078
    %v2487 = vpack.c.b16 %v2091, %v2085
    %v2488 = vpack.c.b16 %v2092, %v2086
    %v2489 = vpack.c.b16 %v2093, %v2087
    %v2490 = vpack.c.b16 %v2094, %v2088
    %v2491 = vpack.c.b16 %v2095, %v2089
    %v2492 = vpack.c.b16 %v2096, %v2090
    %v2493 = vpack.c.b16 %v2103, %v2097
    %v2494 = vpack.c.b16 %v2104, %v2098
    %v2495 = vpack.c.b16 %v2105, %v2099
    %v2496 = vpack.c.b16 %v2106, %v2100
    %v2497 = vpack.c.b16 %v2107, %v2101
    %v2498 = vpack.c.b16 %v2108, %v2102
    %v2499 = vpack.c.b16 %v2115, %v2109
    %v2500 = vpack.c.b16 %v2116, %v2110
    %v2501 = vpack.c.b16 %v2117, %v2111
    %v2502 = vpack.c.b16 %v2118, %v2112
    %v2503 = vpack.c.b16 %v2119, %v2113
    %v2504 = vpack.c.b16 %v2120, %v2114
    %2889 = vmatprep.subr.bf16.mxu0 %v2122
    %2890 = vmatpush1.bf16.msra.mxu0 %v2121
    %2891 = vmatprep.subr.bf16.mxu0 %v2128
    %2892 = vmatpush1.bf16.msra.mxu0 %v2127
    %2893 = vmatprep.subr.bf16.mxu0 %v2134
    %2894 = vmatpush1.bf16.msra.mxu0 %v2133
    %2895 = vmatprep.subr.bf16.mxu0 %v2140
    %2896 = vmatpush1.bf16.msra.mxu0 %v2139
    %2897 = vmatprep.subr.bf16.mxu0 %v2146
    %2898 = vmatpush1.bf16.msra.mxu0 %v2145
    %2899 = vmatprep.subr.bf16.mxu0 %v2152
    %2900 = vmatpush1.bf16.msra.mxu0 %v2151
    %2901 = vmatprep.subr.bf16.mxu0 %v2158
    %2902 = vmatpush1.bf16.msra.mxu0 %v2157
    %2903 = vmatprep.subr.bf16.mxu0 %v2164
    %2904 = vmatpush1.bf16.msra.mxu0 %v2163
    %2905 = vmatprep.subr.bf16.mxu0 %v2170
    %2906 = vmatpush1.bf16.msra.mxu0 %v2169
    %2907 = vmatprep.subr.bf16.mxu0 %v2176
    %2908 = vmatpush1.bf16.msra.mxu0 %v2175
    %2909 = vmatprep.subr.bf16.mxu0 %v2182
    %2910 = vmatpush1.bf16.msra.mxu0 %v2181
    %2911 = vmatprep.subr.bf16.mxu0 %v2188
    %2912 = vmatpush1.bf16.msra.mxu0 %v2187
    %2913 = vmatprep.subr.bf16.mxu0 %v2194
    %2914 = vmatpush1.bf16.msra.mxu0 %v2193
    %2915 = vmatprep.subr.bf16.mxu0 %v2200
    %2916 = vmatpush1.bf16.msra.mxu0 %v2199
    %2917 = vmatprep.subr.bf16.mxu0 %v2206
    %2918 = vmatpush1.bf16.msra.mxu0 %v2205
    %2919 = vmatprep.subr.bf16.mxu0 %v2212
    %2920 = vmatpush1.bf16.msra.mxu0 %v2211
    %2921 = vmatprep.mubr.bf16.mxu0 %v186
    %2922 = vmatmul.mubr.bf16.gmra.mrb[0].mxu0 %v185
    %v2923 = vpop.f32.mrb[0].mxu0
    %v2924 = vadd.f32 0.0, %v2923
    %v2925 = vpop.f32.mrb[0].mxu0
    %v2926 = vadd.f32 0.0, %v2925
    %v2927 = vpop.f32.mrb[0].mxu0
    %v2928 = vadd.f32 0.0, %v2927
    %v2929 = vpop.f32.mrb[0].mxu0
    %v2930 = vadd.f32 0.0, %v2929
    %2931 = vmatprep.mubr.bf16.mxu0 %v194
    %2932 = vmatmul.mubr.bf16.gmra.mrb[0].mxu0 %v193
    %v2933 = vpop.f32.mrb[0].mxu0
    %v2934 = vadd.f32 0.0, %v2933
    %v2935 = vpop.f32.mrb[0].mxu0
    %v2936 = vadd.f32 0.0, %v2935
    %v2937 = vpop.f32.mrb[0].mxu0
    %v2938 = vadd.f32 0.0, %v2937
    %v2939 = vpop.f32.mrb[0].mxu0
    %v2940 = vadd.f32 0.0, %v2939
    %2941 = vdwg.mxu0
    %2942 = vmatprep.subr.bf16.mxu0 %v2218
    %2943 = vmatpush1.bf16.msra.mxu0 %v2217
    %2944 = vmatprep.subr.bf16.mxu0 %v2224
    %2945 = vmatpush1.bf16.msra.mxu0 %v2223
    %2946 = vmatprep.subr.bf16.mxu0 %v2230
    %2947 = vmatpush1.bf16.msra.mxu0 %v2229
    %2948 = vmatprep.subr.bf16.mxu0 %v2236
    %2949 = vmatpush1.bf16.msra.mxu0 %v2235
    %2950 = vmatprep.subr.bf16.mxu0 %v2242
    %2951 = vmatpush1.bf16.msra.mxu0 %v2241
    %2952 = vmatprep.subr.bf16.mxu0 %v2248
    %2953 = vmatpush1.bf16.msra.mxu0 %v2247
    %2954 = vmatprep.subr.bf16.mxu0 %v2254
    %2955 = vmatpush1.bf16.msra.mxu0 %v2253
    %2956 = vmatprep.subr.bf16.mxu0 %v2260
    %2957 = vmatpush1.bf16.msra.mxu0 %v2259
    %2958 = vmatprep.subr.bf16.mxu0 %v2266
    %2959 = vmatpush1.bf16.msra.mxu0 %v2265
    %2960 = vmatprep.subr.bf16.mxu0 %v2272
    %2961 = vmatpush1.bf16.msra.mxu0 %v2271
    %2962 = vmatprep.subr.bf16.mxu0 %v2278
    %2963 = vmatpush1.bf16.msra.mxu0 %v2277
    %2964 = vmatprep.subr.bf16.mxu0 %v2284
    %2965 = vmatpush1.bf16.msra.mxu0 %v2283
    %2966 = vmatprep.subr.bf16.mxu0 %v2290
    %2967 = vmatpush1.bf16.msra.mxu0 %v2289
    %2968 = vmatprep.subr.bf16.mxu0 %v2296
    %2969 = vmatpush1.bf16.msra.mxu0 %v2295
    %2970 = vmatprep.subr.bf16.mxu0 %v2302
    %2971 = vmatpush1.bf16.msra.mxu0 %v2301
    %2972 = vmatprep.subr.bf16.mxu0 %v2308
    %2973 = vmatpush1.bf16.msra.mxu0 %v2307
    %2974 = vmatprep.mubr.bf16.mxu0 %v188
    %2975 = vmatmul.mubr.bf16.gmra.mrb[0].mxu0 %v187
    %v2976 = vpop.f32.mrb[0].mxu0
    %v2977 = vadd.f32 %v2924, %v2976
    %v2978 = vpop.f32.mrb[0].mxu0
    %v2979 = vadd.f32 %v2926, %v2978
    %v2980 = vpop.f32.mrb[0].mxu0
    %v2981 = vadd.f32 %v2928, %v2980
    %v2982 = vpop.f32.mrb[0].mxu0
    %v2983 = vadd.f32 %v2930, %v2982
    %2984 = vmatprep.mubr.bf16.mxu0 %v196
    %2985 = vmatmul.mubr.bf16.gmra.mrb[0].mxu0 %v195
    %v2986 = vpop.f32.mrb[0].mxu0
    %v2987 = vadd.f32 %v2934, %v2986
    %v2988 = vpop.f32.mrb[0].mxu0
    %v2989 = vadd.f32 %v2936, %v2988
    %v2990 = vpop.f32.mrb[0].mxu0
    %v2991 = vadd.f32 %v2938, %v2990
    %v2992 = vpop.f32.mrb[0].mxu0
    %v2993 = vadd.f32 %v2940, %v2992
    %2994 = vdwg.mxu0
    %2995 = vmatprep.subr.bf16.mxu0 %v2314
    %2996 = vmatpush1.bf16.msra.mxu0 %v2313
    %2997 = vmatprep.subr.bf16.mxu0 %v2320
    %2998 = vmatpush1.bf16.msra.mxu0 %v2319
    %2999 = vmatprep.subr.bf16.mxu0 %v2326
    %3000 = vmatpush1.bf16.msra.mxu0 %v2325
    %3001 = vmatprep.subr.bf16.mxu0 %v2332
    %3002 = vmatpush1.bf16.msra.mxu0 %v2331
    %3003 = vmatprep.subr.bf16.mxu0 %v2338
    %3004 = vmatpush1.bf16.msra.mxu0 %v2337
    %3005 = vmatprep.subr.bf16.mxu0 %v2344
    %3006 = vmatpush1.bf16.msra.mxu0 %v2343
    %3007 = vmatprep.subr.bf16.mxu0 %v2350
    %3008 = vmatpush1.bf16.msra.mxu0 %v2349
    %3009 = vmatprep.subr.bf16.mxu0 %v2356
    %3010 = vmatpush1.bf16.msra.mxu0 %v2355
    %3011 = vmatprep.subr.bf16.mxu0 %v2362
    %3012 = vmatpush1.bf16.msra.mxu0 %v2361
    %3013 = vmatprep.subr.bf16.mxu0 %v2368
    %3014 = vmatpush1.bf16.msra.mxu0 %v2367
    %3015 = vmatprep.subr.bf16.mxu0 %v2374
    %3016 = vmatpush1.bf16.msra.mxu0 %v2373
    %3017 = vmatprep.subr.bf16.mxu0 %v2380
    %3018 = vmatpush1.bf16.msra.mxu0 %v2379
    %3019 = vmatprep.subr.bf16.mxu0 %v2386
    %3020 = vmatpush1.bf16.msra.mxu0 %v2385
    %3021 = vmatprep.subr.bf16.mxu0 %v2392
    %3022 = vmatpush1.bf16.msra.mxu0 %v2391
    %3023 = vmatprep.subr.bf16.mxu0 %v2398
    %3024 = vmatpush1.bf16.msra.mxu0 %v2397
    %3025 = vmatprep.subr.bf16.mxu0 %v2404
    %3026 = vmatpush1.bf16.msra.mxu0 %v2403
    %3027 = vmatprep.mubr.bf16.mxu0 %v190
    %3028 = vmatmul.mubr.bf16.gmra.mrb[0].mxu0 %v189
    %v3029 = vpop.f32.mrb[0].mxu0
    %v3030 = vadd.f32 %v2977, %v3029
    %v3031 = vpop.f32.mrb[0].mxu0
    %v3032 = vadd.f32 %v2979, %v3031
    %v3033 = vpop.f32.mrb[0].mxu0
    %v3034 = vadd.f32 %v2981, %v3033
    %v3035 = vpop.f32.mrb[0].mxu0
    %v3036 = vadd.f32 %v2983, %v3035
    %3037 = vmatprep.mubr.bf16.mxu0 %v198
    %3038 = vmatmul.mubr.bf16.gmra.mrb[0].mxu0 %v197
    %v3039 = vpop.f32.mrb[0].mxu0
    %v3040 = vadd.f32 %v2987, %v3039
    %v3041 = vpop.f32.mrb[0].mxu0
    %v3042 = vadd.f32 %v2989, %v3041
    %v3043 = vpop.f32.mrb[0].mxu0
    %v3044 = vadd.f32 %v2991, %v3043
    %v3045 = vpop.f32.mrb[0].mxu0
    %v3046 = vadd.f32 %v2993, %v3045
    %3047 = vdwg.mxu0
    %3048 = vmatprep.subr.bf16.mxu0 %v2410
    %3049 = vmatpush1.bf16.msra.mxu0 %v2409
    %3050 = vmatprep.subr.bf16.mxu0 %v2416
    %3051 = vmatpush1.bf16.msra.mxu0 %v2415
    %3052 = vmatprep.subr.bf16.mxu0 %v2422
    %3053 = vmatpush1.bf16.msra.mxu0 %v2421
    %3054 = vmatprep.subr.bf16.mxu0 %v2428
    %3055 = vmatpush1.bf16.msra.mxu0 %v2427
    %3056 = vmatprep.subr.bf16.mxu0 %v2434
    %3057 = vmatpush1.bf16.msra.mxu0 %v2433
    %3058 = vmatprep.subr.bf16.mxu0 %v2440
    %3059 = vmatpush1.bf16.msra.mxu0 %v2439
    %3060 = vmatprep.subr.bf16.mxu0 %v2446
    %3061 = vmatpush1.bf16.msra.mxu0 %v2445
    %3062 = vmatprep.subr.bf16.mxu0 %v2452
    %3063 = vmatpush1.bf16.msra.mxu0 %v2451
    %3064 = vmatprep.subr.bf16.mxu0 %v2458
    %3065 = vmatpush1.bf16.msra.mxu0 %v2457
    %3066 = vmatprep.subr.bf16.mxu0 %v2464
    %3067 = vmatpush1.bf16.msra.mxu0 %v2463
    %3068 = vmatprep.subr.bf16.mxu0 %v2470
    %3069 = vmatpush1.bf16.msra.mxu0 %v2469
    %3070 = vmatprep.subr.bf16.mxu0 %v2476
    %3071 = vmatpush1.bf16.msra.mxu0 %v2475
    %3072 = vmatprep.subr.bf16.mxu0 %v2482
    %3073 = vmatpush1.bf16.msra.mxu0 %v2481
    %3074 = vmatprep.subr.bf16.mxu0 %v2488
    %3075 = vmatpush1.bf16.msra.mxu0 %v2487
    %3076 = vmatprep.subr.bf16.mxu0 %v2494
    %3077 = vmatpush1.bf16.msra.mxu0 %v2493
    %3078 = vmatprep.subr.bf16.mxu0 %v2500
    %3079 = vmatpush1.bf16.msra.mxu0 %v2499
    %3080 = vmatprep.mubr.bf16.mxu0 %v192
    %3081 = vmatmul.mubr.bf16.gmra.mrb[0].mxu0 %v191
    %v3082 = vpop.f32.mrb[0].mxu0
    %v3083 = vadd.f32 %v3030, %v3082
    %v3084 = vpop.f32.mrb[0].mxu0
    %v3085 = vadd.f32 %v3032, %v3084
    %v3086 = vpop.f32.mrb[0].mxu0
    %v3087 = vadd.f32 %v3034, %v3086
    %v3088 = vpop.f32.mrb[0].mxu0
    %v3089 = vadd.f32 %v3036, %v3088
    %3090 = vmatprep.mubr.bf16.mxu0 %v200
    %3091 = vmatmul.mubr.bf16.gmra.mrb[0].mxu0 %v199
    %v3092 = vpop.f32.mrb[0].mxu0
    %v3093 = vadd.f32 %v3040, %v3092
    %v3094 = vpop.f32.mrb[0].mxu0
    %v3095 = vadd.f32 %v3042, %v3094
    %v3096 = vpop.f32.mrb[0].mxu0
    %v3097 = vadd.f32 %v3044, %v3096
    %v3098 = vpop.f32.mrb[0].mxu0
    %v3099 = vadd.f32 %v3046, %v3098
    %3100 = vdwg.mxu0
    %3101 = vmatprep.subr.bf16.mxu0 %v2124
    %3102 = vmatpush1.bf16.msra.mxu0 %v2123
    %3103 = vmatprep.subr.bf16.mxu0 %v2130
    %3104 = vmatpush1.bf16.msra.mxu0 %v2129
    %3105 = vmatprep.subr.bf16.mxu0 %v2136
    %3106 = vmatpush1.bf16.msra.mxu0 %v2135
    %3107 = vmatprep.subr.bf16.mxu0 %v2142
    %3108 = vmatpush1.bf16.msra.mxu0 %v2141
    %3109 = vmatprep.subr.bf16.mxu0 %v2148
    %3110 = vmatpush1.bf16.msra.mxu0 %v2147
    %3111 = vmatprep.subr.bf16.mxu0 %v2154
    %3112 = vmatpush1.bf16.msra.mxu0 %v2153
    %3113 = vmatprep.subr.bf16.mxu0 %v2160
    %3114 = vmatpush1.bf16.msra.mxu0 %v2159
    %3115 = vmatprep.subr.bf16.mxu0 %v2166
    %3116 = vmatpush1.bf16.msra.mxu0 %v2165
    %3117 = vmatprep.subr.bf16.mxu0 %v2172
    %3118 = vmatpush1.bf16.msra.mxu0 %v2171
    %3119 = vmatprep.subr.bf16.mxu0 %v2178
    %3120 = vmatpush1.bf16.msra.mxu0 %v2177
    %3121 = vmatprep.subr.bf16.mxu0 %v2184
    %3122 = vmatpush1.bf16.msra.mxu0 %v2183
    %3123 = vmatprep.subr.bf16.mxu0 %v2190
    %3124 = vmatpush1.bf16.msra.mxu0 %v2189
    %3125 = vmatprep.subr.bf16.mxu0 %v2196
    %3126 = vmatpush1.bf16.msra.mxu0 %v2195
    %3127 = vmatprep.subr.bf16.mxu0 %v2202
    %3128 = vmatpush1.bf16.msra.mxu0 %v2201
    %3129 = vmatprep.subr.bf16.mxu0 %v2208
    %3130 = vmatpush1.bf16.msra.mxu0 %v2207
    %3131 = vmatprep.subr.bf16.mxu0 %v2214
    %3132 = vmatpush1.bf16.msra.mxu0 %v2213
    %3133 = vmatprep.mubr.bf16.mxu0 %v186
    %3134 = vmatmul.mubr.bf16.gmra.mrb[0].mxu0 %v185
    %v3135 = vpop.f32.mrb[0].mxu0
    %v3136 = vadd.f32 0.0, %v3135
    %v3137 = vpop.f32.mrb[0].mxu0
    %v3138 = vadd.f32 0.0, %v3137
    %v3139 = vpop.f32.mrb[0].mxu0
    %v3140 = vadd.f32 0.0, %v3139
    %v3141 = vpop.f32.mrb[0].mxu0
    %v3142 = vadd.f32 0.0, %v3141
    %3143 = vmatprep.mubr.bf16.mxu0 %v194
    %3144 = vmatmul.mubr.bf16.gmra.mrb[0].mxu0 %v193
    %v3145 = vpop.f32.mrb[0].mxu0
    %v3146 = vadd.f32 0.0, %v3145
    %v3147 = vpop.f32.mrb[0].mxu0
    %v3148 = vadd.f32 0.0, %v3147
    %v3149 = vpop.f32.mrb[0].mxu0
    %v3150 = vadd.f32 0.0, %v3149
    %v3151 = vpop.f32.mrb[0].mxu0
    %v3152 = vadd.f32 0.0, %v3151
    %3153 = vdwg.mxu0
    %3154 = vmatprep.subr.bf16.mxu0 %v2220
    %3155 = vmatpush1.bf16.msra.mxu0 %v2219
    %3156 = vmatprep.subr.bf16.mxu0 %v2226
    %3157 = vmatpush1.bf16.msra.mxu0 %v2225
    %3158 = vmatprep.subr.bf16.mxu0 %v2232
    %3159 = vmatpush1.bf16.msra.mxu0 %v2231
    %3160 = vmatprep.subr.bf16.mxu0 %v2238
    %3161 = vmatpush1.bf16.msra.mxu0 %v2237
    %3162 = vmatprep.subr.bf16.mxu0 %v2244
    %3163 = vmatpush1.bf16.msra.mxu0 %v2243
    %3164 = vmatprep.subr.bf16.mxu0 %v2250
    %3165 = vmatpush1.bf16.msra.mxu0 %v2249
    %3166 = vmatprep.subr.bf16.mxu0 %v2256
    %3167 = vmatpush1.bf16.msra.mxu0 %v2255
    %3168 = vmatprep.subr.bf16.mxu0 %v2262
    %3169 = vmatpush1.bf16.msra.mxu0 %v2261
    %3170 = vmatprep.subr.bf16.mxu0 %v2268
    %3171 = vmatpush1.bf16.msra.mxu0 %v2267
    %3172 = vmatprep.subr.bf16.mxu0 %v2274
    %3173 = vmatpush1.bf16.msra.mxu0 %v2273
    %3174 = vmatprep.subr.bf16.mxu0 %v2280
    %3175 = vmatpush1.bf16.msra.mxu0 %v2279
    %3176 = vmatprep.subr.bf16.mxu0 %v2286
    %3177 = vmatpush1.bf16.msra.mxu0 %v2285
    %3178 = vmatprep.subr.bf16.mxu0 %v2292
    %3179 = vmatpush1.bf16.msra.mxu0 %v2291
    %3180 = vmatprep.subr.bf16.mxu0 %v2298
    %3181 = vmatpush1.bf16.msra.mxu0 %v2297
    %3182 = vmatprep.subr.bf16.mxu0 %v2304
    %3183 = vmatpush1.bf16.msra.mxu0 %v2303
    %3184 = vmatprep.subr.bf16.mxu0 %v2310
    %3185 = vmatpush1.bf16.msra.mxu0 %v2309
    %3186 = vmatprep.mubr.bf16.mxu0 %v188
    %3187 = vmatmul.mubr.bf16.gmra.mrb[0].mxu0 %v187
    %v3188 = vpop.f32.mrb[0].mxu0
    %v3189 = vadd.f32 %v3136, %v3188
    %v3190 = vpop.f32.mrb[0].mxu0
    %v3191 = vadd.f32 %v3138, %v3190
    %v3192 = vpop.f32.mrb[0].mxu0
    %v3193 = vadd.f32 %v3140, %v3192
    %v3194 = vpop.f32.mrb[0].mxu0
    %v3195 = vadd.f32 %v3142, %v3194
    %3196 = vmatprep.mubr.bf16.mxu0 %v196
    %3197 = vmatmul.mubr.bf16.gmra.mrb[0].mxu0 %v195
    %v3198 = vpop.f32.mrb[0].mxu0
    %v3199 = vadd.f32 %v3146, %v3198
    %v3200 = vpop.f32.mrb[0].mxu0
    %v3201 = vadd.f32 %v3148, %v3200
    %v3202 = vpop.f32.mrb[0].mxu0
    %v3203 = vadd.f32 %v3150, %v3202
    %v3204 = vpop.f32.mrb[0].mxu0
    %v3205 = vadd.f32 %v3152, %v3204
    %3206 = vdwg.mxu0
    %3207 = vmatprep.subr.bf16.mxu0 %v2316
    %3208 = vmatpush1.bf16.msra.mxu0 %v2315
    %3209 = vmatprep.subr.bf16.mxu0 %v2322
    %3210 = vmatpush1.bf16.msra.mxu0 %v2321
    %3211 = vmatprep.subr.bf16.mxu0 %v2328
    %3212 = vmatpush1.bf16.msra.mxu0 %v2327
    %3213 = vmatprep.subr.bf16.mxu0 %v2334
    %3214 = vmatpush1.bf16.msra.mxu0 %v2333
    %3215 = vmatprep.subr.bf16.mxu0 %v2340
    %3216 = vmatpush1.bf16.msra.mxu0 %v2339
    %3217 = vmatprep.subr.bf16.mxu0 %v2346
    %3218 = vmatpush1.bf16.msra.mxu0 %v2345
    %3219 = vmatprep.subr.bf16.mxu0 %v2352
    %3220 = vmatpush1.bf16.msra.mxu0 %v2351
    %3221 = vmatprep.subr.bf16.mxu0 %v2358
    %3222 = vmatpush1.bf16.msra.mxu0 %v2357
    %3223 = vmatprep.subr.bf16.mxu0 %v2364
    %3224 = vmatpush1.bf16.msra.mxu0 %v2363
    %3225 = vmatprep.subr.bf16.mxu0 %v2370
    %3226 = vmatpush1.bf16.msra.mxu0 %v2369
    %3227 = vmatprep.subr.bf16.mxu0 %v2376
    %3228 = vmatpush1.bf16.msra.mxu0 %v2375
    %3229 = vmatprep.subr.bf16.mxu0 %v2382
    %3230 = vmatpush1.bf16.msra.mxu0 %v2381
    %3231 = vmatprep.subr.bf16.mxu0 %v2388
    %3232 = vmatpush1.bf16.msra.mxu0 %v2387
    %3233 = vmatprep.subr.bf16.mxu0 %v2394
    %3234 = vmatpush1.bf16.msra.mxu0 %v2393
    %3235 = vmatprep.subr.bf16.mxu0 %v2400
    %3236 = vmatpush1.bf16.msra.mxu0 %v2399
    %3237 = vmatprep.subr.bf16.mxu0 %v2406
    %3238 = vmatpush1.bf16.msra.mxu0 %v2405
    %3239 = vmatprep.mubr.bf16.mxu0 %v190
    %3240 = vmatmul.mubr.bf16.gmra.mrb[0].mxu0 %v189
    %v3241 = vpop.f32.mrb[0].mxu0
    %v3242 = vadd.f32 %v3189, %v3241
    %v3243 = vpop.f32.mrb[0].mxu0
    %v3244 = vadd.f32 %v3191, %v3243
    %v3245 = vpop.f32.mrb[0].mxu0
    %v3246 = vadd.f32 %v3193, %v3245
    %v3247 = vpop.f32.mrb[0].mxu0
    %v3248 = vadd.f32 %v3195, %v3247
    %3249 = vmatprep.mubr.bf16.mxu0 %v198
    %3250 = vmatmul.mubr.bf16.gmra.mrb[0].mxu0 %v197
    %v3251 = vpop.f32.mrb[0].mxu0
    %v3252 = vadd.f32 %v3199, %v3251
    %v3253 = vpop.f32.mrb[0].mxu0
    %v3254 = vadd.f32 %v3201, %v3253
    %v3255 = vpop.f32.mrb[0].mxu0
    %v3256 = vadd.f32 %v3203, %v3255
    %v3257 = vpop.f32.mrb[0].mxu0
    %v3258 = vadd.f32 %v3205, %v3257
    %3259 = vdwg.mxu0
    %3260 = vmatprep.subr.bf16.mxu0 %v2412
    %3261 = vmatpush1.bf16.msra.mxu0 %v2411
    %3262 = vmatprep.subr.bf16.mxu0 %v2418
    %3263 = vmatpush1.bf16.msra.mxu0 %v2417
    %3264 = vmatprep.subr.bf16.mxu0 %v2424
    %3265 = vmatpush1.bf16.msra.mxu0 %v2423
    %3266 = vmatprep.subr.bf16.mxu0 %v2430
    %3267 = vmatpush1.bf16.msra.mxu0 %v2429
    %3268 = vmatprep.subr.bf16.mxu0 %v2436
    %3269 = vmatpush1.bf16.msra.mxu0 %v2435
    %3270 = vmatprep.subr.bf16.mxu0 %v2442
    %3271 = vmatpush1.bf16.msra.mxu0 %v2441
    %3272 = vmatprep.subr.bf16.mxu0 %v2448
    %3273 = vmatpush1.bf16.msra.mxu0 %v2447
    %3274 = vmatprep.subr.bf16.mxu0 %v2454
    %3275 = vmatpush1.bf16.msra.mxu0 %v2453
    %3276 = vmatprep.subr.bf16.mxu0 %v2460
    %3277 = vmatpush1.bf16.msra.mxu0 %v2459
    %3278 = vmatprep.subr.bf16.mxu0 %v2466
    %3279 = vmatpush1.bf16.msra.mxu0 %v2465
    %3280 = vmatprep.subr.bf16.mxu0 %v2472
    %3281 = vmatpush1.bf16.msra.mxu0 %v2471
    %3282 = vmatprep.subr.bf16.mxu0 %v2478
    %3283 = vmatpush1.bf16.msra.mxu0 %v2477
    %3284 = vmatprep.subr.bf16.mxu0 %v2484
    %3285 = vmatpush1.bf16.msra.mxu0 %v2483
    %3286 = vmatprep.subr.bf16.mxu0 %v2490
    %3287 = vmatpush1.bf16.msra.mxu0 %v2489
    %3288 = vmatprep.subr.bf16.mxu0 %v2496
    %3289 = vmatpush1.bf16.msra.mxu0 %v2495
    %3290 = vmatprep.subr.bf16.mxu0 %v2502
    %3291 = vmatpush1.bf16.msra.mxu0 %v2501
    %3292 = vmatprep.mubr.bf16.mxu0 %v192
    %3293 = vmatmul.mubr.bf16.gmra.mrb[0].mxu0 %v191
    %v3294 = vpop.f32.mrb[0].mxu0
    %v3295 = vadd.f32 %v3242, %v3294
    %v3296 = vpop.f32.mrb[0].mxu0
    %v3297 = vadd.f32 %v3244, %v3296
    %v3298 = vpop.f32.mrb[0].mxu0
    %v3299 = vadd.f32 %v3246, %v3298
    %v3300 = vpop.f32.mrb[0].mxu0
    %v3301 = vadd.f32 %v3248, %v3300
    %3302 = vmatprep.mubr.bf16.mxu0 %v200
    %3303 = vmatmul.mubr.bf16.gmra.mrb[0].mxu0 %v199
    %v3304 = vpop.f32.mrb[0].mxu0
    %v3305 = vadd.f32 %v3252, %v3304
    %v3306 = vpop.f32.mrb[0].mxu0
    %v3307 = vadd.f32 %v3254, %v3306
    %v3308 = vpop.f32.mrb[0].mxu0
    %v3309 = vadd.f32 %v3256, %v3308
    %v3310 = vpop.f32.mrb[0].mxu0
    %v3311 = vadd.f32 %v3258, %v3310
    %3312 = vdwg.mxu0
    %3313 = vmatprep.subr.bf16.mxu0 %v2126
    %3314 = vmatpush1.bf16.msra.mxu0 %v2125
    %3315 = vmatprep.subr.bf16.mxu0 %v2132
    %3316 = vmatpush1.bf16.msra.mxu0 %v2131
    %3317 = vmatprep.subr.bf16.mxu0 %v2138
    %3318 = vmatpush1.bf16.msra.mxu0 %v2137
    %3319 = vmatprep.subr.bf16.mxu0 %v2144
    %3320 = vmatpush1.bf16.msra.mxu0 %v2143
    %3321 = vmatprep.subr.bf16.mxu0 %v2150
    %3322 = vmatpush1.bf16.msra.mxu0 %v2149
    %3323 = vmatprep.subr.bf16.mxu0 %v2156
    %3324 = vmatpush1.bf16.msra.mxu0 %v2155
    %3325 = vmatprep.subr.bf16.mxu0 %v2162
    %3326 = vmatpush1.bf16.msra.mxu0 %v2161
    %3327 = vmatprep.subr.bf16.mxu0 %v2168
    %3328 = vmatpush1.bf16.msra.mxu0 %v2167
    %3329 = vmatprep.subr.bf16.mxu0 %v2174
    %3330 = vmatpush1.bf16.msra.mxu0 %v2173
    %3331 = vmatprep.subr.bf16.mxu0 %v2180
    %3332 = vmatpush1.bf16.msra.mxu0 %v2179
    %3333 = vmatprep.subr.bf16.mxu0 %v2186
    %3334 = vmatpush1.bf16.msra.mxu0 %v2185
    %3335 = vmatprep.subr.bf16.mxu0 %v2192
    %3336 = vmatpush1.bf16.msra.mxu0 %v2191
    %3337 = vmatprep.subr.bf16.mxu0 %v2198
    %3338 = vmatpush1.bf16.msra.mxu0 %v2197
    %3339 = vmatprep.subr.bf16.mxu0 %v2204
    %3340 = vmatpush1.bf16.msra.mxu0 %v2203
    %3341 = vmatprep.subr.bf16.mxu0 %v2210
    %3342 = vmatpush1.bf16.msra.mxu0 %v2209
    %3343 = vmatprep.subr.bf16.mxu0 %v2216
    %3344 = vmatpush1.bf16.msra.mxu0 %v2215
    %3345 = vmatprep.mubr.bf16.mxu0 %v186
    %3346 = vmatmul.mubr.bf16.gmra.mrb[0].mxu0 %v185
    %v3347 = vpop.f32.mrb[0].mxu0
    %v3348 = vadd.f32 0.0, %v3347
    %v3349 = vpop.f32.mrb[0].mxu0
    %v3350 = vadd.f32 0.0, %v3349
    %v3351 = vpop.f32.mrb[0].mxu0
    %v3352 = vadd.f32 0.0, %v3351
    %v3353 = vpop.f32.mrb[0].mxu0
    %v3354 = vadd.f32 0.0, %v3353
    %3355 = vmatprep.mubr.bf16.mxu0 %v194
    %3356 = vmatmul.mubr.bf16.gmra.mrb[0].mxu0 %v193
    %v3357 = vpop.f32.mrb[0].mxu0
    %v3358 = vadd.f32 0.0, %v3357
    %v3359 = vpop.f32.mrb[0].mxu0
    %v3360 = vadd.f32 0.0, %v3359
    %v3361 = vpop.f32.mrb[0].mxu0
    %v3362 = vadd.f32 0.0, %v3361
    %v3363 = vpop.f32.mrb[0].mxu0
    %v3364 = vadd.f32 0.0, %v3363
    %3365 = vdwg.mxu0
    %3366 = vmatprep.subr.bf16.mxu0 %v2222
    %3367 = vmatpush1.bf16.msra.mxu0 %v2221
    %3368 = vmatprep.subr.bf16.mxu0 %v2228
    %3369 = vmatpush1.bf16.msra.mxu0 %v2227
    %3370 = vmatprep.subr.bf16.mxu0 %v2234
    %3371 = vmatpush1.bf16.msra.mxu0 %v2233
    %3372 = vmatprep.subr.bf16.mxu0 %v2240
    %3373 = vmatpush1.bf16.msra.mxu0 %v2239
    %3374 = vmatprep.subr.bf16.mxu0 %v2246
    %3375 = vmatpush1.bf16.msra.mxu0 %v2245
    %3376 = vmatprep.subr.bf16.mxu0 %v2252
    %3377 = vmatpush1.bf16.msra.mxu0 %v2251
    %3378 = vmatprep.subr.bf16.mxu0 %v2258
    %3379 = vmatpush1.bf16.msra.mxu0 %v2257
    %3380 = vmatprep.subr.bf16.mxu0 %v2264
    %3381 = vmatpush1.bf16.msra.mxu0 %v2263
    %3382 = vmatprep.subr.bf16.mxu0 %v2270
    %3383 = vmatpush1.bf16.msra.mxu0 %v2269
    %3384 = vmatprep.subr.bf16.mxu0 %v2276
    %3385 = vmatpush1.bf16.msra.mxu0 %v2275
    %3386 = vmatprep.subr.bf16.mxu0 %v2282
    %3387 = vmatpush1.bf16.msra.mxu0 %v2281
    %3388 = vmatprep.subr.bf16.mxu0 %v2288
    %3389 = vmatpush1.bf16.msra.mxu0 %v2287
    %3390 = vmatprep.subr.bf16.mxu0 %v2294
    %3391 = vmatpush1.bf16.msra.mxu0 %v2293
    %3392 = vmatprep.subr.bf16.mxu0 %v2300
    %3393 = vmatpush1.bf16.msra.mxu0 %v2299
    %3394 = vmatprep.subr.bf16.mxu0 %v2306
    %3395 = vmatpush1.bf16.msra.mxu0 %v2305
    %3396 = vmatprep.subr.bf16.mxu0 %v2312
    %3397 = vmatpush1.bf16.msra.mxu0 %v2311
    %3398 = vmatprep.mubr.bf16.mxu0 %v188
    %3399 = vmatmul.mubr.bf16.gmra.mrb[0].mxu0 %v187
    %v3400 = vpop.f32.mrb[0].mxu0
    %v3401 = vadd.f32 %v3348, %v3400
    %v3402 = vpop.f32.mrb[0].mxu0
    %v3403 = vadd.f32 %v3350, %v3402
    %v3404 = vpop.f32.mrb[0].mxu0
    %v3405 = vadd.f32 %v3352, %v3404
    %v3406 = vpop.f32.mrb[0].mxu0
    %v3407 = vadd.f32 %v3354, %v3406
    %3408 = vmatprep.mubr.bf16.mxu0 %v196
    %3409 = vmatmul.mubr.bf16.gmra.mrb[0].mxu0 %v195
    %v3410 = vpop.f32.mrb[0].mxu0
    %v3411 = vadd.f32 %v3358, %v3410
    %v3412 = vpop.f32.mrb[0].mxu0
    %v3413 = vadd.f32 %v3360, %v3412
    %v3414 = vpop.f32.mrb[0].mxu0
    %v3415 = vadd.f32 %v3362, %v3414
    %v3416 = vpop.f32.mrb[0].mxu0
    %v3417 = vadd.f32 %v3364, %v3416
    %3418 = vdwg.mxu0
    %3419 = vmatprep.subr.bf16.mxu0 %v2318
    %3420 = vmatpush1.bf16.msra.mxu0 %v2317
    %3421 = vmatprep.subr.bf16.mxu0 %v2324
    %3422 = vmatpush1.bf16.msra.mxu0 %v2323
    %3423 = vmatprep.subr.bf16.mxu0 %v2330
    %3424 = vmatpush1.bf16.msra.mxu0 %v2329
    %3425 = vmatprep.subr.bf16.mxu0 %v2336
    %3426 = vmatpush1.bf16.msra.mxu0 %v2335
    %3427 = vmatprep.subr.bf16.mxu0 %v2342
    %3428 = vmatpush1.bf16.msra.mxu0 %v2341
    %3429 = vmatprep.subr.bf16.mxu0 %v2348
    %3430 = vmatpush1.bf16.msra.mxu0 %v2347
    %3431 = vmatprep.subr.bf16.mxu0 %v2354
    %3432 = vmatpush1.bf16.msra.mxu0 %v2353
    %3433 = vmatprep.subr.bf16.mxu0 %v2360
    %3434 = vmatpush1.bf16.msra.mxu0 %v2359
    %3435 = vmatprep.subr.bf16.mxu0 %v2366
    %3436 = vmatpush1.bf16.msra.mxu0 %v2365
    %3437 = vmatprep.subr.bf16.mxu0 %v2372
    %3438 = vmatpush1.bf16.msra.mxu0 %v2371
    %3439 = vmatprep.subr.bf16.mxu0 %v2378
    %3440 = vmatpush1.bf16.msra.mxu0 %v2377
    %3441 = vmatprep.subr.bf16.mxu0 %v2384
    %3442 = vmatpush1.bf16.msra.mxu0 %v2383
    %3443 = vmatprep.subr.bf16.mxu0 %v2390
    %3444 = vmatpush1.bf16.msra.mxu0 %v2389
    %3445 = vmatprep.subr.bf16.mxu0 %v2396
    %3446 = vmatpush1.bf16.msra.mxu0 %v2395
    %3447 = vmatprep.subr.bf16.mxu0 %v2402
    %3448 = vmatpush1.bf16.msra.mxu0 %v2401
    %3449 = vmatprep.subr.bf16.mxu0 %v2408
    %3450 = vmatpush1.bf16.msra.mxu0 %v2407
    %3451 = vmatprep.mubr.bf16.mxu0 %v190
    %3452 = vmatmul.mubr.bf16.gmra.mrb[0].mxu0 %v189
    %v3453 = vpop.f32.mrb[0].mxu0
    %v3454 = vadd.f32 %v3401, %v3453
    %v3455 = vpop.f32.mrb[0].mxu0
    %v3456 = vadd.f32 %v3403, %v3455
    %v3457 = vpop.f32.mrb[0].mxu0
    %v3458 = vadd.f32 %v3405, %v3457
    %v3459 = vpop.f32.mrb[0].mxu0
    %v3460 = vadd.f32 %v3407, %v3459
    %3461 = vmatprep.mubr.bf16.mxu0 %v198
    %3462 = vmatmul.mubr.bf16.gmra.mrb[0].mxu0 %v197
    %v3463 = vpop.f32.mrb[0].mxu0
    %v3464 = vadd.f32 %v3411, %v3463
    %v3465 = vpop.f32.mrb[0].mxu0
    %v3466 = vadd.f32 %v3413, %v3465
    %v3467 = vpop.f32.mrb[0].mxu0
    %v3468 = vadd.f32 %v3415, %v3467
    %v3469 = vpop.f32.mrb[0].mxu0
    %v3470 = vadd.f32 %v3417, %v3469
    %3471 = vdwg.mxu0
    %3472 = vmatprep.subr.bf16.mxu0 %v2414
    %3473 = vmatpush1.bf16.msra.mxu0 %v2413
    %3474 = vmatprep.subr.bf16.mxu0 %v2420
    %3475 = vmatpush1.bf16.msra.mxu0 %v2419
    %3476 = vmatprep.subr.bf16.mxu0 %v2426
    %3477 = vmatpush1.bf16.msra.mxu0 %v2425
    %3478 = vmatprep.subr.bf16.mxu0 %v2432
    %3479 = vmatpush1.bf16.msra.mxu0 %v2431
    %3480 = vmatprep.subr.bf16.mxu0 %v2438
    %3481 = vmatpush1.bf16.msra.mxu0 %v2437
    %3482 = vmatprep.subr.bf16.mxu0 %v2444
    %3483 = vmatpush1.bf16.msra.mxu0 %v2443
    %3484 = vmatprep.subr.bf16.mxu0 %v2450
    %3485 = vmatpush1.bf16.msra.mxu0 %v2449
    %3486 = vmatprep.subr.bf16.mxu0 %v2456
    %3487 = vmatpush1.bf16.msra.mxu0 %v2455
    %3488 = vmatprep.subr.bf16.mxu0 %v2462
    %3489 = vmatpush1.bf16.msra.mxu0 %v2461
    %3490 = vmatprep.subr.bf16.mxu0 %v2468
    %3491 = vmatpush1.bf16.msra.mxu0 %v2467
    %3492 = vmatprep.subr.bf16.mxu0 %v2474
    %3493 = vmatpush1.bf16.msra.mxu0 %v2473
    %3494 = vmatprep.subr.bf16.mxu0 %v2480
    %3495 = vmatpush1.bf16.msra.mxu0 %v2479
    %3496 = vmatprep.subr.bf16.mxu0 %v2486
    %3497 = vmatpush1.bf16.msra.mxu0 %v2485
    %3498 = vmatprep.subr.bf16.mxu0 %v2492
    %3499 = vmatpush1.bf16.msra.mxu0 %v2491
    %3500 = vmatprep.subr.bf16.mxu0 %v2498
    %3501 = vmatpush1.bf16.msra.mxu0 %v2497
    %3502 = vmatprep.subr.bf16.mxu0 %v2504
    %3503 = vmatpush1.bf16.msra.mxu0 %v2503
    %3504 = vmatprep.mubr.bf16.mxu0 %v192
    %3505 = vmatmul.mubr.bf16.gmra.mrb[0].mxu0 %v191
    %v3506 = vpop.f32.mrb[0].mxu0
    %v3507 = vadd.f32 %v3454, %v3506
    %v3508 = vpop.f32.mrb[0].mxu0
    %v3509 = vadd.f32 %v3456, %v3508
    %v3510 = vpop.f32.mrb[0].mxu0
    %v3511 = vadd.f32 %v3458, %v3510
    %v3512 = vpop.f32.mrb[0].mxu0
    %v3513 = vadd.f32 %v3460, %v3512
    %3514 = vmatprep.mubr.bf16.mxu0 %v200
    %3515 = vmatmul.mubr.bf16.gmra.mrb[0].mxu0 %v199
    %v3516 = vpop.f32.mrb[0].mxu0
    %v3517 = vadd.f32 %v3464, %v3516
    %v3518 = vpop.f32.mrb[0].mxu0
    %v3519 = vadd.f32 %v3466, %v3518
    %v3520 = vpop.f32.mrb[0].mxu0
    %v3521 = vadd.f32 %v3468, %v3520
    %v3522 = vpop.f32.mrb[0].mxu0
    %v3523 = vadd.f32 %v3470, %v3522
    %3524 = vdwg.mxu0
    %3525 = vmatprep.subr.bf16.mxu0 %v2122
    %3526 = vmatpush1.bf16.msra.mxu0 %v2121
    %3527 = vmatprep.subr.bf16.mxu0 %v2128
    %3528 = vmatpush1.bf16.msra.mxu0 %v2127
    %3529 = vmatprep.subr.bf16.mxu0 %v2134
    %3530 = vmatpush1.bf16.msra.mxu0 %v2133
    %3531 = vmatprep.subr.bf16.mxu0 %v2140
    %3532 = vmatpush1.bf16.msra.mxu0 %v2139
    %3533 = vmatprep.subr.bf16.mxu0 %v2146
    %3534 = vmatpush1.bf16.msra.mxu0 %v2145
    %3535 = vmatprep.subr.bf16.mxu0 %v2152
    %3536 = vmatpush1.bf16.msra.mxu0 %v2151
    %3537 = vmatprep.subr.bf16.mxu0 %v2158
    %3538 = vmatpush1.bf16.msra.mxu0 %v2157
    %3539 = vmatprep.subr.bf16.mxu0 %v2164
    %3540 = vmatpush1.bf16.msra.mxu0 %v2163
    %3541 = vmatprep.subr.bf16.mxu0 %v2170
    %3542 = vmatpush1.bf16.msra.mxu0 %v2169
    %3543 = vmatprep.subr.bf16.mxu0 %v2176
    %3544 = vmatpush1.bf16.msra.mxu0 %v2175
    %3545 = vmatprep.subr.bf16.mxu0 %v2182
    %3546 = vmatpush1.bf16.msra.mxu0 %v2181
    %3547 = vmatprep.subr.bf16.mxu0 %v2188
    %3548 = vmatpush1.bf16.msra.mxu0 %v2187
    %3549 = vmatprep.subr.bf16.mxu0 %v2194
    %3550 = vmatpush1.bf16.msra.mxu0 %v2193
    %3551 = vmatprep.subr.bf16.mxu0 %v2200
    %3552 = vmatpush1.bf16.msra.mxu0 %v2199
    %3553 = vmatprep.subr.bf16.mxu0 %v2206
    %3554 = vmatpush1.bf16.msra.mxu0 %v2205
    %3555 = vmatprep.subr.bf16.mxu0 %v2212
    %3556 = vmatpush1.bf16.msra.mxu0 %v2211
    %3557 = vmatprep.mubr.bf16.mxu0 %v106
    %3558 = vmatmul.mubr.bf16.gmra.mrb[0].mxu0 %v105
    %v3559 = vpop.f32.mrb[0].mxu0
    %v3560 = vadd.f32 %v3083, %v3559
    %v3561 = vpop.f32.mrb[0].mxu0
    %v3562 = vadd.f32 %v3085, %v3561
    %v3563 = vpop.f32.mrb[0].mxu0
    %v3564 = vadd.f32 %v3087, %v3563
    %v3565 = vpop.f32.mrb[0].mxu0
    %v3566 = vadd.f32 %v3089, %v3565
    %3567 = vmatprep.mubr.bf16.mxu0 %v114
    %3568 = vmatmul.mubr.bf16.gmra.mrb[0].mxu0 %v113
    %v3569 = vpop.f32.mrb[0].mxu0
    %v3570 = vadd.f32 %v3093, %v3569
    %v3571 = vpop.f32.mrb[0].mxu0
    %v3572 = vadd.f32 %v3095, %v3571
    %v3573 = vpop.f32.mrb[0].mxu0
    %v3574 = vadd.f32 %v3097, %v3573
    %v3575 = vpop.f32.mrb[0].mxu0
    %v3576 = vadd.f32 %v3099, %v3575
    %3577 = vdwg.mxu0
    %3578 = vmatprep.subr.bf16.mxu0 %v2218
    %3579 = vmatpush1.bf16.msra.mxu0 %v2217
    %3580 = vmatprep.subr.bf16.mxu0 %v2224
    %3581 = vmatpush1.bf16.msra.mxu0 %v2223
    %3582 = vmatprep.subr.bf16.mxu0 %v2230
    %3583 = vmatpush1.bf16.msra.mxu0 %v2229
    %3584 = vmatprep.subr.bf16.mxu0 %v2236
    %3585 = vmatpush1.bf16.msra.mxu0 %v2235
    %3586 = vmatprep.subr.bf16.mxu0 %v2242
    %3587 = vmatpush1.bf16.msra.mxu0 %v2241
    %3588 = vmatprep.subr.bf16.mxu0 %v2248
    %3589 = vmatpush1.bf16.msra.mxu0 %v2247
    %3590 = vmatprep.subr.bf16.mxu0 %v2254
    %3591 = vmatpush1.bf16.msra.mxu0 %v2253
    %3592 = vmatprep.subr.bf16.mxu0 %v2260
    %3593 = vmatpush1.bf16.msra.mxu0 %v2259
    %3594 = vmatprep.subr.bf16.mxu0 %v2266
    %3595 = vmatpush1.bf16.msra.mxu0 %v2265
    %3596 = vmatprep.subr.bf16.mxu0 %v2272
    %3597 = vmatpush1.bf16.msra.mxu0 %v2271
    %3598 = vmatprep.subr.bf16.mxu0 %v2278
    %3599 = vmatpush1.bf16.msra.mxu0 %v2277
    %3600 = vmatprep.subr.bf16.mxu0 %v2284
    %3601 = vmatpush1.bf16.msra.mxu0 %v2283
    %3602 = vmatprep.subr.bf16.mxu0 %v2290
    %3603 = vmatpush1.bf16.msra.mxu0 %v2289
    %3604 = vmatprep.subr.bf16.mxu0 %v2296
    %3605 = vmatpush1.bf16.msra.mxu0 %v2295
    %3606 = vmatprep.subr.bf16.mxu0 %v2302
    %3607 = vmatpush1.bf16.msra.mxu0 %v2301
    %3608 = vmatprep.subr.bf16.mxu0 %v2308
    %3609 = vmatpush1.bf16.msra.mxu0 %v2307
    %3610 = vmatprep.mubr.bf16.mxu0 %v108
    %3611 = vmatmul.mubr.bf16.gmra.mrb[0].mxu0 %v107
    %v3612 = vpop.f32.mrb[0].mxu0
    %v3613 = vadd.f32 %v3560, %v3612
    %v3614 = vpop.f32.mrb[0].mxu0
    %v3615 = vadd.f32 %v3562, %v3614
    %v3616 = vpop.f32.mrb[0].mxu0
    %v3617 = vadd.f32 %v3564, %v3616
    %v3618 = vpop.f32.mrb[0].mxu0
    %v3619 = vadd.f32 %v3566, %v3618
    %3620 = vmatprep.mubr.bf16.mxu0 %v116
    %3621 = vmatmul.mubr.bf16.gmra.mrb[0].mxu0 %v115
    %v3622 = vpop.f32.mrb[0].mxu0
    %v3623 = vadd.f32 %v3570, %v3622
    %v3624 = vpop.f32.mrb[0].mxu0
    %v3625 = vadd.f32 %v3572, %v3624
    %v3626 = vpop.f32.mrb[0].mxu0
    %v3627 = vadd.f32 %v3574, %v3626
    %v3628 = vpop.f32.mrb[0].mxu0
    %v3629 = vadd.f32 %v3576, %v3628
    %3630 = vdwg.mxu0
    %3631 = vmatprep.subr.bf16.mxu0 %v2314
    %3632 = vmatpush1.bf16.msra.mxu0 %v2313
    %3633 = vmatprep.subr.bf16.mxu0 %v2320
    %3634 = vmatpush1.bf16.msra.mxu0 %v2319
    %3635 = vmatprep.subr.bf16.mxu0 %v2326
    %3636 = vmatpush1.bf16.msra.mxu0 %v2325
    %3637 = vmatprep.subr.bf16.mxu0 %v2332
    %3638 = vmatpush1.bf16.msra.mxu0 %v2331
    %3639 = vmatprep.subr.bf16.mxu0 %v2338
    %3640 = vmatpush1.bf16.msra.mxu0 %v2337
    %3641 = vmatprep.subr.bf16.mxu0 %v2344
    %3642 = vmatpush1.bf16.msra.mxu0 %v2343
    %3643 = vmatprep.subr.bf16.mxu0 %v2350
    %3644 = vmatpush1.bf16.msra.mxu0 %v2349
    %3645 = vmatprep.subr.bf16.mxu0 %v2356
    %3646 = vmatpush1.bf16.msra.mxu0 %v2355
    %3647 = vmatprep.subr.bf16.mxu0 %v2362
    %3648 = vmatpush1.bf16.msra.mxu0 %v2361
    %3649 = vmatprep.subr.bf16.mxu0 %v2368
    %3650 = vmatpush1.bf16.msra.mxu0 %v2367
    %3651 = vmatprep.subr.bf16.mxu0 %v2374
    %3652 = vmatpush1.bf16.msra.mxu0 %v2373
    %3653 = vmatprep.subr.bf16.mxu0 %v2380
    %3654 = vmatpush1.bf16.msra.mxu0 %v2379
    %3655 = vmatprep.subr.bf16.mxu0 %v2386
    %3656 = vmatpush1.bf16.msra.mxu0 %v2385
    %3657 = vmatprep.subr.bf16.mxu0 %v2392
    %3658 = vmatpush1.bf16.msra.mxu0 %v2391
    %3659 = vmatprep.subr.bf16.mxu0 %v2398
    %3660 = vmatpush1.bf16.msra.mxu0 %v2397
    %3661 = vmatprep.subr.bf16.mxu0 %v2404
    %3662 = vmatpush1.bf16.msra.mxu0 %v2403
    %3663 = vmatprep.mubr.bf16.mxu0 %v110
    %3664 = vmatmul.mubr.bf16.gmra.mrb[0].mxu0 %v109
    %v3665 = vpop.f32.mrb[0].mxu0
    %v3666 = vadd.f32 %v3613, %v3665
    %v3667 = vpop.f32.mrb[0].mxu0
    %v3668 = vadd.f32 %v3615, %v3667
    %v3669 = vpop.f32.mrb[0].mxu0
    %v3670 = vadd.f32 %v3617, %v3669
    %v3671 = vpop.f32.mrb[0].mxu0
    %v3672 = vadd.f32 %v3619, %v3671
    %3673 = vmatprep.mubr.bf16.mxu0 %v118
    %3674 = vmatmul.mubr.bf16.gmra.mrb[0].mxu0 %v117
    %v3675 = vpop.f32.mrb[0].mxu0
    %v3676 = vadd.f32 %v3623, %v3675
    %v3677 = vpop.f32.mrb[0].mxu0
    %v3678 = vadd.f32 %v3625, %v3677
    %v3679 = vpop.f32.mrb[0].mxu0
    %v3680 = vadd.f32 %v3627, %v3679
    %v3681 = vpop.f32.mrb[0].mxu0
    %v3682 = vadd.f32 %v3629, %v3681
    %3683 = vdwg.mxu0
    %3684 = vmatprep.subr.bf16.mxu0 %v2410
    %3685 = vmatpush1.bf16.msra.mxu0 %v2409
    %3686 = vmatprep.subr.bf16.mxu0 %v2416
    %3687 = vmatpush1.bf16.msra.mxu0 %v2415
    %3688 = vmatprep.subr.bf16.mxu0 %v2422
    %3689 = vmatpush1.bf16.msra.mxu0 %v2421
    %3690 = vmatprep.subr.bf16.mxu0 %v2428
    %3691 = vmatpush1.bf16.msra.mxu0 %v2427
    %3692 = vmatprep.subr.bf16.mxu0 %v2434
    %3693 = vmatpush1.bf16.msra.mxu0 %v2433
    %3694 = vmatprep.subr.bf16.mxu0 %v2440
    %3695 = vmatpush1.bf16.msra.mxu0 %v2439
    %3696 = vmatprep.subr.bf16.mxu0 %v2446
    %3697 = vmatpush1.bf16.msra.mxu0 %v2445
    %3698 = vmatprep.subr.bf16.mxu0 %v2452
    %3699 = vmatpush1.bf16.msra.mxu0 %v2451
    %3700 = vmatprep.subr.bf16.mxu0 %v2458
    %3701 = vmatpush1.bf16.msra.mxu0 %v2457
    %3702 = vmatprep.subr.bf16.mxu0 %v2464
    %3703 = vmatpush1.bf16.msra.mxu0 %v2463
    %3704 = vmatprep.subr.bf16.mxu0 %v2470
    %3705 = vmatpush1.bf16.msra.mxu0 %v2469
    %3706 = vmatprep.subr.bf16.mxu0 %v2476
    %3707 = vmatpush1.bf16.msra.mxu0 %v2475
    %3708 = vmatprep.subr.bf16.mxu0 %v2482
    %3709 = vmatpush1.bf16.msra.mxu0 %v2481
    %3710 = vmatprep.subr.bf16.mxu0 %v2488
    %3711 = vmatpush1.bf16.msra.mxu0 %v2487
    %3712 = vmatprep.subr.bf16.mxu0 %v2494
    %3713 = vmatpush1.bf16.msra.mxu0 %v2493
    %3714 = vmatprep.subr.bf16.mxu0 %v2500
    %3715 = vmatpush1.bf16.msra.mxu0 %v2499
    %3716 = vmatprep.mubr.bf16.mxu0 %v112
    %3717 = vmatmul.mubr.bf16.gmra.mrb[0].mxu0 %v111
    %v3718 = vpop.f32.mrb[0].mxu0
    %v3719 = vadd.f32 %v3666, %v3718
    %v3720 = vpop.f32.mrb[0].mxu0
    %v3721 = vadd.f32 %v3668, %v3720
    %v3722 = vpop.f32.mrb[0].mxu0
    %v3723 = vadd.f32 %v3670, %v3722
    %v3724 = vpop.f32.mrb[0].mxu0
    %v3725 = vadd.f32 %v3672, %v3724
    %3726 = vmatprep.mubr.bf16.mxu0 %v120
    %3727 = vmatmul.mubr.bf16.gmra.mrb[0].mxu0 %v119
    %v3728 = vpop.f32.mrb[0].mxu0
    %v3729 = vadd.f32 %v3676, %v3728
    %v3730 = vpop.f32.mrb[0].mxu0
    %v3731 = vadd.f32 %v3678, %v3730
    %v3732 = vpop.f32.mrb[0].mxu0
    %v3733 = vadd.f32 %v3680, %v3732
    %v3734 = vpop.f32.mrb[0].mxu0
    %v3735 = vadd.f32 %v3682, %v3734
    %3736 = vdwg.mxu0
    %3737 = vmatprep.subr.bf16.mxu0 %v2124
    %3738 = vmatpush1.bf16.msra.mxu0 %v2123
    %3739 = vmatprep.subr.bf16.mxu0 %v2130
    %3740 = vmatpush1.bf16.msra.mxu0 %v2129
    %3741 = vmatprep.subr.bf16.mxu0 %v2136
    %3742 = vmatpush1.bf16.msra.mxu0 %v2135
    %3743 = vmatprep.subr.bf16.mxu0 %v2142
    %3744 = vmatpush1.bf16.msra.mxu0 %v2141
    %3745 = vmatprep.subr.bf16.mxu0 %v2148
    %3746 = vmatpush1.bf16.msra.mxu0 %v2147
    %3747 = vmatprep.subr.bf16.mxu0 %v2154
    %3748 = vmatpush1.bf16.msra.mxu0 %v2153
    %3749 = vmatprep.subr.bf16.mxu0 %v2160
    %3750 = vmatpush1.bf16.msra.mxu0 %v2159
    %3751 = vmatprep.subr.bf16.mxu0 %v2166
    %3752 = vmatpush1.bf16.msra.mxu0 %v2165
    %3753 = vmatprep.subr.bf16.mxu0 %v2172
    %3754 = vmatpush1.bf16.msra.mxu0 %v2171
    %3755 = vmatprep.subr.bf16.mxu0 %v2178
    %3756 = vmatpush1.bf16.msra.mxu0 %v2177
    %3757 = vmatprep.subr.bf16.mxu0 %v2184
    %3758 = vmatpush1.bf16.msra.mxu0 %v2183
    %3759 = vmatprep.subr.bf16.mxu0 %v2190
    %3760 = vmatpush1.bf16.msra.mxu0 %v2189
    %3761 = vmatprep.subr.bf16.mxu0 %v2196
    %3762 = vmatpush1.bf16.msra.mxu0 %v2195
    %3763 = vmatprep.subr.bf16.mxu0 %v2202
    %3764 = vmatpush1.bf16.msra.mxu0 %v2201
    %3765 = vmatprep.subr.bf16.mxu0 %v2208
    %3766 = vmatpush1.bf16.msra.mxu0 %v2207
    %3767 = vmatprep.subr.bf16.mxu0 %v2214
    %3768 = vmatpush1.bf16.msra.mxu0 %v2213
    %3769 = vmatprep.mubr.bf16.mxu0 %v106
    %3770 = vmatmul.mubr.bf16.gmra.mrb[0].mxu0 %v105
    %v3771 = vpop.f32.mrb[0].mxu0
    %v3772 = vadd.f32 %v3295, %v3771
    %v3773 = vpop.f32.mrb[0].mxu0
    %v3774 = vadd.f32 %v3297, %v3773
    %v3775 = vpop.f32.mrb[0].mxu0
    %v3776 = vadd.f32 %v3299, %v3775
    %v3777 = vpop.f32.mrb[0].mxu0
    %v3778 = vadd.f32 %v3301, %v3777
    %3779 = vmatprep.mubr.bf16.mxu0 %v114
    %3780 = vmatmul.mubr.bf16.gmra.mrb[0].mxu0 %v113
    %v3781 = vpop.f32.mrb[0].mxu0
    %v3782 = vadd.f32 %v3305, %v3781
    %v3783 = vpop.f32.mrb[0].mxu0
    %v3784 = vadd.f32 %v3307, %v3783
    %v3785 = vpop.f32.mrb[0].mxu0
    %v3786 = vadd.f32 %v3309, %v3785
    %v3787 = vpop.f32.mrb[0].mxu0
    %v3788 = vadd.f32 %v3311, %v3787
    %3789 = vdwg.mxu0
    %3790 = vmatprep.subr.bf16.mxu0 %v2220
    %3791 = vmatpush1.bf16.msra.mxu0 %v2219
    %3792 = vmatprep.subr.bf16.mxu0 %v2226
    %3793 = vmatpush1.bf16.msra.mxu0 %v2225
    %3794 = vmatprep.subr.bf16.mxu0 %v2232
    %3795 = vmatpush1.bf16.msra.mxu0 %v2231
    %3796 = vmatprep.subr.bf16.mxu0 %v2238
    %3797 = vmatpush1.bf16.msra.mxu0 %v2237
    %3798 = vmatprep.subr.bf16.mxu0 %v2244
    %3799 = vmatpush1.bf16.msra.mxu0 %v2243
    %3800 = vmatprep.subr.bf16.mxu0 %v2250
    %3801 = vmatpush1.bf16.msra.mxu0 %v2249
    %3802 = vmatprep.subr.bf16.mxu0 %v2256
    %3803 = vmatpush1.bf16.msra.mxu0 %v2255
    %3804 = vmatprep.subr.bf16.mxu0 %v2262
    %3805 = vmatpush1.bf16.msra.mxu0 %v2261
    %3806 = vmatprep.subr.bf16.mxu0 %v2268
    %3807 = vmatpush1.bf16.msra.mxu0 %v2267
    %3808 = vmatprep.subr.bf16.mxu0 %v2274
    %3809 = vmatpush1.bf16.msra.mxu0 %v2273
    %3810 = vmatprep.subr.bf16.mxu0 %v2280
    %3811 = vmatpush1.bf16.msra.mxu0 %v2279
    %3812 = vmatprep.subr.bf16.mxu0 %v2286
    %3813 = vmatpush1.bf16.msra.mxu0 %v2285
    %3814 = vmatprep.subr.bf16.mxu0 %v2292
    %3815 = vmatpush1.bf16.msra.mxu0 %v2291
    %3816 = vmatprep.subr.bf16.mxu0 %v2298
    %3817 = vmatpush1.bf16.msra.mxu0 %v2297
    %3818 = vmatprep.subr.bf16.mxu0 %v2304
    %3819 = vmatpush1.bf16.msra.mxu0 %v2303
    %3820 = vmatprep.subr.bf16.mxu0 %v2310
    %3821 = vmatpush1.bf16.msra.mxu0 %v2309
    %3822 = vmatprep.mubr.bf16.mxu0 %v108
    %3823 = vmatmul.mubr.bf16.gmra.mrb[0].mxu0 %v107
    %v3824 = vpop.f32.mrb[0].mxu0
    %v3825 = vadd.f32 %v3772, %v3824
    %v3826 = vpop.f32.mrb[0].mxu0
    %v3827 = vadd.f32 %v3774, %v3826
    %v3828 = vpop.f32.mrb[0].mxu0
    %v3829 = vadd.f32 %v3776, %v3828
    %v3830 = vpop.f32.mrb[0].mxu0
    %v3831 = vadd.f32 %v3778, %v3830
    %3832 = vmatprep.mubr.bf16.mxu0 %v116
    %3833 = vmatmul.mubr.bf16.gmra.mrb[0].mxu0 %v115
    %v3834 = vpop.f32.mrb[0].mxu0
    %v3835 = vadd.f32 %v3782, %v3834
    %v3836 = vpop.f32.mrb[0].mxu0
    %v3837 = vadd.f32 %v3784, %v3836
    %v3838 = vpop.f32.mrb[0].mxu0
    %v3839 = vadd.f32 %v3786, %v3838
    %v3840 = vpop.f32.mrb[0].mxu0
    %v3841 = vadd.f32 %v3788, %v3840
    %3842 = vdwg.mxu0
    %3843 = vmatprep.subr.bf16.mxu0 %v2316
    %3844 = vmatpush1.bf16.msra.mxu0 %v2315
    %3845 = vmatprep.subr.bf16.mxu0 %v2322
    %3846 = vmatpush1.bf16.msra.mxu0 %v2321
    %3847 = vmatprep.subr.bf16.mxu0 %v2328
    %3848 = vmatpush1.bf16.msra.mxu0 %v2327
    %3849 = vmatprep.subr.bf16.mxu0 %v2334
    %3850 = vmatpush1.bf16.msra.mxu0 %v2333
    %3851 = vmatprep.subr.bf16.mxu0 %v2340
    %3852 = vmatpush1.bf16.msra.mxu0 %v2339
    %3853 = vmatprep.subr.bf16.mxu0 %v2346
    %3854 = vmatpush1.bf16.msra.mxu0 %v2345
    %3855 = vmatprep.subr.bf16.mxu0 %v2352
    %3856 = vmatpush1.bf16.msra.mxu0 %v2351
    %3857 = vmatprep.subr.bf16.mxu0 %v2358
    %3858 = vmatpush1.bf16.msra.mxu0 %v2357
    %3859 = vmatprep.subr.bf16.mxu0 %v2364
    %3860 = vmatpush1.bf16.msra.mxu0 %v2363
    %3861 = vmatprep.subr.bf16.mxu0 %v2370
    %3862 = vmatpush1.bf16.msra.mxu0 %v2369
    %3863 = vmatprep.subr.bf16.mxu0 %v2376
    %3864 = vmatpush1.bf16.msra.mxu0 %v2375
    %3865 = vmatprep.subr.bf16.mxu0 %v2382
    %3866 = vmatpush1.bf16.msra.mxu0 %v2381
    %3867 = vmatprep.subr.bf16.mxu0 %v2388
    %3868 = vmatpush1.bf16.msra.mxu0 %v2387
    %3869 = vmatprep.subr.bf16.mxu0 %v2394
    %3870 = vmatpush1.bf16.msra.mxu0 %v2393
    %3871 = vmatprep.subr.bf16.mxu0 %v2400
    %3872 = vmatpush1.bf16.msra.mxu0 %v2399
    %3873 = vmatprep.subr.bf16.mxu0 %v2406
    %3874 = vmatpush1.bf16.msra.mxu0 %v2405
    %3875 = vmatprep.mubr.bf16.mxu0 %v110
    %3876 = vmatmul.mubr.bf16.gmra.mrb[0].mxu0 %v109
    %v3877 = vpop.f32.mrb[0].mxu0
    %v3878 = vadd.f32 %v3825, %v3877
    %v3879 = vpop.f32.mrb[0].mxu0
    %v3880 = vadd.f32 %v3827, %v3879
    %v3881 = vpop.f32.mrb[0].mxu0
    %v3882 = vadd.f32 %v3829, %v3881
    %v3883 = vpop.f32.mrb[0].mxu0
    %v3884 = vadd.f32 %v3831, %v3883
    %3885 = vmatprep.mubr.bf16.mxu0 %v118
    %3886 = vmatmul.mubr.bf16.gmra.mrb[0].mxu0 %v117
    %v3887 = vpop.f32.mrb[0].mxu0
    %v3888 = vadd.f32 %v3835, %v3887
    %v3889 = vpop.f32.mrb[0].mxu0
    %v3890 = vadd.f32 %v3837, %v3889
    %v3891 = vpop.f32.mrb[0].mxu0
    %v3892 = vadd.f32 %v3839, %v3891
    %v3893 = vpop.f32.mrb[0].mxu0
    %v3894 = vadd.f32 %v3841, %v3893
    %3895 = vdwg.mxu0
    %3896 = vmatprep.subr.bf16.mxu0 %v2412
    %3897 = vmatpush1.bf16.msra.mxu0 %v2411
    %3898 = vmatprep.subr.bf16.mxu0 %v2418
    %3899 = vmatpush1.bf16.msra.mxu0 %v2417
    %3900 = vmatprep.subr.bf16.mxu0 %v2424
    %3901 = vmatpush1.bf16.msra.mxu0 %v2423
    %3902 = vmatprep.subr.bf16.mxu0 %v2430
    %3903 = vmatpush1.bf16.msra.mxu0 %v2429
    %3904 = vmatprep.subr.bf16.mxu0 %v2436
    %3905 = vmatpush1.bf16.msra.mxu0 %v2435
    %3906 = vmatprep.subr.bf16.mxu0 %v2442
    %3907 = vmatpush1.bf16.msra.mxu0 %v2441
    %3908 = vmatprep.subr.bf16.mxu0 %v2448
    %3909 = vmatpush1.bf16.msra.mxu0 %v2447
    %3910 = vmatprep.subr.bf16.mxu0 %v2454
    %3911 = vmatpush1.bf16.msra.mxu0 %v2453
    %3912 = vmatprep.subr.bf16.mxu0 %v2460
    %3913 = vmatpush1.bf16.msra.mxu0 %v2459
    %3914 = vmatprep.subr.bf16.mxu0 %v2466
    %3915 = vmatpush1.bf16.msra.mxu0 %v2465
    %3916 = vmatprep.subr.bf16.mxu0 %v2472
    %3917 = vmatpush1.bf16.msra.mxu0 %v2471
    %3918 = vmatprep.subr.bf16.mxu0 %v2478
    %3919 = vmatpush1.bf16.msra.mxu0 %v2477
    %3920 = vmatprep.subr.bf16.mxu0 %v2484
    %3921 = vmatpush1.bf16.msra.mxu0 %v2483
    %3922 = vmatprep.subr.bf16.mxu0 %v2490
    %3923 = vmatpush1.bf16.msra.mxu0 %v2489
    %3924 = vmatprep.subr.bf16.mxu0 %v2496
    %3925 = vmatpush1.bf16.msra.mxu0 %v2495
    %3926 = vmatprep.subr.bf16.mxu0 %v2502
    %3927 = vmatpush1.bf16.msra.mxu0 %v2501
    %3928 = vmatprep.mubr.bf16.mxu0 %v112
    %3929 = vmatmul.mubr.bf16.gmra.mrb[0].mxu0 %v111
    %v3930 = vpop.f32.mrb[0].mxu0
    %v3931 = vadd.f32 %v3878, %v3930
    %v3932 = vpop.f32.mrb[0].mxu0
    %v3933 = vadd.f32 %v3880, %v3932
    %v3934 = vpop.f32.mrb[0].mxu0
    %v3935 = vadd.f32 %v3882, %v3934
    %v3936 = vpop.f32.mrb[0].mxu0
    %v3937 = vadd.f32 %v3884, %v3936
    %3938 = vmatprep.mubr.bf16.mxu0 %v120
    %3939 = vmatmul.mubr.bf16.gmra.mrb[0].mxu0 %v119
    %v3940 = vpop.f32.mrb[0].mxu0
    %v3941 = vadd.f32 %v3888, %v3940
    %v3942 = vpop.f32.mrb[0].mxu0
    %v3943 = vadd.f32 %v3890, %v3942
    %v3944 = vpop.f32.mrb[0].mxu0
    %v3945 = vadd.f32 %v3892, %v3944
    %v3946 = vpop.f32.mrb[0].mxu0
    %v3947 = vadd.f32 %v3894, %v3946
    %3948 = vdwg.mxu0
    %3949 = vmatprep.subr.bf16.mxu0 %v2126
    %3950 = vmatpush1.bf16.msra.mxu0 %v2125
    %3951 = vmatprep.subr.bf16.mxu0 %v2132
    %3952 = vmatpush1.bf16.msra.mxu0 %v2131
    %3953 = vmatprep.subr.bf16.mxu0 %v2138
    %3954 = vmatpush1.bf16.msra.mxu0 %v2137
    %3955 = vmatprep.subr.bf16.mxu0 %v2144
    %3956 = vmatpush1.bf16.msra.mxu0 %v2143
    %3957 = vmatprep.subr.bf16.mxu0 %v2150
    %3958 = vmatpush1.bf16.msra.mxu0 %v2149
    %3959 = vmatprep.subr.bf16.mxu0 %v2156
    %3960 = vmatpush1.bf16.msra.mxu0 %v2155
    %3961 = vmatprep.subr.bf16.mxu0 %v2162
    %3962 = vmatpush1.bf16.msra.mxu0 %v2161
    %3963 = vmatprep.subr.bf16.mxu0 %v2168
    %3964 = vmatpush1.bf16.msra.mxu0 %v2167
    %3965 = vmatprep.subr.bf16.mxu0 %v2174
    %3966 = vmatpush1.bf16.msra.mxu0 %v2173
    %3967 = vmatprep.subr.bf16.mxu0 %v2180
    %3968 = vmatpush1.bf16.msra.mxu0 %v2179
    %3969 = vmatprep.subr.bf16.mxu0 %v2186
    %3970 = vmatpush1.bf16.msra.mxu0 %v2185
    %3971 = vmatprep.subr.bf16.mxu0 %v2192
    %3972 = vmatpush1.bf16.msra.mxu0 %v2191
    %3973 = vmatprep.subr.bf16.mxu0 %v2198
    %3974 = vmatpush1.bf16.msra.mxu0 %v2197
    %3975 = vmatprep.subr.bf16.mxu0 %v2204
    %3976 = vmatpush1.bf16.msra.mxu0 %v2203
    %3977 = vmatprep.subr.bf16.mxu0 %v2210
    %3978 = vmatpush1.bf16.msra.mxu0 %v2209
    %3979 = vmatprep.subr.bf16.mxu0 %v2216
    %3980 = vmatpush1.bf16.msra.mxu0 %v2215
    %3981 = vmatprep.mubr.bf16.mxu0 %v106
    %3982 = vmatmul.mubr.bf16.gmra.mrb[0].mxu0 %v105
    %v3983 = vpop.f32.mrb[0].mxu0
    %v3984 = vadd.f32 %v3507, %v3983
    %v3985 = vpop.f32.mrb[0].mxu0
    %v3986 = vadd.f32 %v3509, %v3985
    %v3987 = vpop.f32.mrb[0].mxu0
    %v3988 = vadd.f32 %v3511, %v3987
    %v3989 = vpop.f32.mrb[0].mxu0
    %v3990 = vadd.f32 %v3513, %v3989
    %3991 = vmatprep.mubr.bf16.mxu0 %v114
    %3992 = vmatmul.mubr.bf16.gmra.mrb[0].mxu0 %v113
    %v3993 = vpop.f32.mrb[0].mxu0
    %v3994 = vadd.f32 %v3517, %v3993
    %v3995 = vpop.f32.mrb[0].mxu0
    %v3996 = vadd.f32 %v3519, %v3995
    %v3997 = vpop.f32.mrb[0].mxu0
    %v3998 = vadd.f32 %v3521, %v3997
    %v3999 = vpop.f32.mrb[0].mxu0
    %v4000 = vadd.f32 %v3523, %v3999
    %4001 = vdwg.mxu0
    %4002 = vmatprep.subr.bf16.mxu0 %v2222
    %4003 = vmatpush1.bf16.msra.mxu0 %v2221
    %4004 = vmatprep.subr.bf16.mxu0 %v2228
    %4005 = vmatpush1.bf16.msra.mxu0 %v2227
    %4006 = vmatprep.subr.bf16.mxu0 %v2234
    %4007 = vmatpush1.bf16.msra.mxu0 %v2233
    %4008 = vmatprep.subr.bf16.mxu0 %v2240
    %4009 = vmatpush1.bf16.msra.mxu0 %v2239
    %4010 = vmatprep.subr.bf16.mxu0 %v2246
    %4011 = vmatpush1.bf16.msra.mxu0 %v2245
    %4012 = vmatprep.subr.bf16.mxu0 %v2252
    %4013 = vmatpush1.bf16.msra.mxu0 %v2251
    %4014 = vmatprep.subr.bf16.mxu0 %v2258
    %4015 = vmatpush1.bf16.msra.mxu0 %v2257
    %4016 = vmatprep.subr.bf16.mxu0 %v2264
    %4017 = vmatpush1.bf16.msra.mxu0 %v2263
    %4018 = vmatprep.subr.bf16.mxu0 %v2270
    %4019 = vmatpush1.bf16.msra.mxu0 %v2269
    %4020 = vmatprep.subr.bf16.mxu0 %v2276
    %4021 = vmatpush1.bf16.msra.mxu0 %v2275
    %4022 = vmatprep.subr.bf16.mxu0 %v2282
    %4023 = vmatpush1.bf16.msra.mxu0 %v2281
    %4024 = vmatprep.subr.bf16.mxu0 %v2288
    %4025 = vmatpush1.bf16.msra.mxu0 %v2287
    %4026 = vmatprep.subr.bf16.mxu0 %v2294
    %4027 = vmatpush1.bf16.msra.mxu0 %v2293
    %4028 = vmatprep.subr.bf16.mxu0 %v2300
    %4029 = vmatpush1.bf16.msra.mxu0 %v2299
    %4030 = vmatprep.subr.bf16.mxu0 %v2306
    %4031 = vmatpush1.bf16.msra.mxu0 %v2305
    %4032 = vmatprep.subr.bf16.mxu0 %v2312
    %4033 = vmatpush1.bf16.msra.mxu0 %v2311
    %4034 = vmatprep.mubr.bf16.mxu0 %v108
    %4035 = vmatmul.mubr.bf16.gmra.mrb[0].mxu0 %v107
    %v4036 = vpop.f32.mrb[0].mxu0
    %v4037 = vadd.f32 %v3984, %v4036
    %v4038 = vpop.f32.mrb[0].mxu0
    %v4039 = vadd.f32 %v3986, %v4038
    %v4040 = vpop.f32.mrb[0].mxu0
    %v4041 = vadd.f32 %v3988, %v4040
    %v4042 = vpop.f32.mrb[0].mxu0
    %v4043 = vadd.f32 %v3990, %v4042
    %4044 = vmatprep.mubr.bf16.mxu0 %v116
    %4045 = vmatmul.mubr.bf16.gmra.mrb[0].mxu0 %v115
    %v4046 = vpop.f32.mrb[0].mxu0
    %v4047 = vadd.f32 %v3994, %v4046
    %v4048 = vpop.f32.mrb[0].mxu0
    %v4049 = vadd.f32 %v3996, %v4048
    %v4050 = vpop.f32.mrb[0].mxu0
    %v4051 = vadd.f32 %v3998, %v4050
    %v4052 = vpop.f32.mrb[0].mxu0
    %v4053 = vadd.f32 %v4000, %v4052
    %4054 = vdwg.mxu0
    %4055 = vmatprep.subr.bf16.mxu0 %v2318
    %4056 = vmatpush1.bf16.msra.mxu0 %v2317
    %4057 = vmatprep.subr.bf16.mxu0 %v2324
    %4058 = vmatpush1.bf16.msra.mxu0 %v2323
    %4059 = vmatprep.subr.bf16.mxu0 %v2330
    %4060 = vmatpush1.bf16.msra.mxu0 %v2329
    %4061 = vmatprep.subr.bf16.mxu0 %v2336
    %4062 = vmatpush1.bf16.msra.mxu0 %v2335
    %4063 = vmatprep.subr.bf16.mxu0 %v2342
    %4064 = vmatpush1.bf16.msra.mxu0 %v2341
    %4065 = vmatprep.subr.bf16.mxu0 %v2348
    %4066 = vmatpush1.bf16.msra.mxu0 %v2347
    %4067 = vmatprep.subr.bf16.mxu0 %v2354
    %4068 = vmatpush1.bf16.msra.mxu0 %v2353
    %4069 = vmatprep.subr.bf16.mxu0 %v2360
    %4070 = vmatpush1.bf16.msra.mxu0 %v2359
    %4071 = vmatprep.subr.bf16.mxu0 %v2366
    %4072 = vmatpush1.bf16.msra.mxu0 %v2365
    %4073 = vmatprep.subr.bf16.mxu0 %v2372
    %4074 = vmatpush1.bf16.msra.mxu0 %v2371
    %4075 = vmatprep.subr.bf16.mxu0 %v2378
    %4076 = vmatpush1.bf16.msra.mxu0 %v2377
    %4077 = vmatprep.subr.bf16.mxu0 %v2384
    %4078 = vmatpush1.bf16.msra.mxu0 %v2383
    %4079 = vmatprep.subr.bf16.mxu0 %v2390
    %4080 = vmatpush1.bf16.msra.mxu0 %v2389
    %4081 = vmatprep.subr.bf16.mxu0 %v2396
    %4082 = vmatpush1.bf16.msra.mxu0 %v2395
    %4083 = vmatprep.subr.bf16.mxu0 %v2402
    %4084 = vmatpush1.bf16.msra.mxu0 %v2401
    %4085 = vmatprep.subr.bf16.mxu0 %v2408
    %4086 = vmatpush1.bf16.msra.mxu0 %v2407
    %4087 = vmatprep.mubr.bf16.mxu0 %v110
    %4088 = vmatmul.mubr.bf16.gmra.mrb[0].mxu0 %v109
    %v4089 = vpop.f32.mrb[0].mxu0
    %v4090 = vadd.f32 %v4037, %v4089
    %v4091 = vpop.f32.mrb[0].mxu0
    %v4092 = vadd.f32 %v4039, %v4091
    %v4093 = vpop.f32.mrb[0].mxu0
    %v4094 = vadd.f32 %v4041, %v4093
    %v4095 = vpop.f32.mrb[0].mxu0
    %v4096 = vadd.f32 %v4043, %v4095
    %4097 = vmatprep.mubr.bf16.mxu0 %v118
    %4098 = vmatmul.mubr.bf16.gmra.mrb[0].mxu0 %v117
    %v4099 = vpop.f32.mrb[0].mxu0
    %v4100 = vadd.f32 %v4047, %v4099
    %v4101 = vpop.f32.mrb[0].mxu0
    %v4102 = vadd.f32 %v4049, %v4101
    %v4103 = vpop.f32.mrb[0].mxu0
    %v4104 = vadd.f32 %v4051, %v4103
    %v4105 = vpop.f32.mrb[0].mxu0
    %v4106 = vadd.f32 %v4053, %v4105
    %4107 = vdwg.mxu0
    %4108 = vmatprep.subr.bf16.mxu0 %v2414
    %4109 = vmatpush1.bf16.msra.mxu0 %v2413
    %4110 = vmatprep.subr.bf16.mxu0 %v2420
    %4111 = vmatpush1.bf16.msra.mxu0 %v2419
    %4112 = vmatprep.subr.bf16.mxu0 %v2426
    %4113 = vmatpush1.bf16.msra.mxu0 %v2425
    %4114 = vmatprep.subr.bf16.mxu0 %v2432
    %4115 = vmatpush1.bf16.msra.mxu0 %v2431
    %4116 = vmatprep.subr.bf16.mxu0 %v2438
    %4117 = vmatpush1.bf16.msra.mxu0 %v2437
    %4118 = vmatprep.subr.bf16.mxu0 %v2444
    %4119 = vmatpush1.bf16.msra.mxu0 %v2443
    %4120 = vmatprep.subr.bf16.mxu0 %v2450
    %4121 = vmatpush1.bf16.msra.mxu0 %v2449
    %4122 = vmatprep.subr.bf16.mxu0 %v2456
    %4123 = vmatpush1.bf16.msra.mxu0 %v2455
    %4124 = vmatprep.subr.bf16.mxu0 %v2462
    %4125 = vmatpush1.bf16.msra.mxu0 %v2461
    %4126 = vmatprep.subr.bf16.mxu0 %v2468
    %4127 = vmatpush1.bf16.msra.mxu0 %v2467
    %4128 = vmatprep.subr.bf16.mxu0 %v2474
    %4129 = vmatpush1.bf16.msra.mxu0 %v2473
    %4130 = vmatprep.subr.bf16.mxu0 %v2480
    %4131 = vmatpush1.bf16.msra.mxu0 %v2479
    %4132 = vmatprep.subr.bf16.mxu0 %v2486
    %4133 = vmatpush1.bf16.msra.mxu0 %v2485
    %4134 = vmatprep.subr.bf16.mxu0 %v2492
    %4135 = vmatpush1.bf16.msra.mxu0 %v2491
    %4136 = vmatprep.subr.bf16.mxu0 %v2498
    %4137 = vmatpush1.bf16.msra.mxu0 %v2497
    %4138 = vmatprep.subr.bf16.mxu0 %v2504
    %4139 = vmatpush1.bf16.msra.mxu0 %v2503
    %4140 = vmatprep.mubr.bf16.mxu0 %v112
    %4141 = vmatmul.mubr.bf16.gmra.mrb[0].mxu0 %v111
    %v4142 = vpop.f32.mrb[0].mxu0
    %v4143 = vadd.f32 %v4090, %v4142
    %v4144 = vpop.f32.mrb[0].mxu0
    %v4145 = vadd.f32 %v4092, %v4144
    %v4146 = vpop.f32.mrb[0].mxu0
    %v4147 = vadd.f32 %v4094, %v4146
    %v4148 = vpop.f32.mrb[0].mxu0
    %v4149 = vadd.f32 %v4096, %v4148
    %4150 = vmatprep.mubr.bf16.mxu0 %v120
    %4151 = vmatmul.mubr.bf16.gmra.mrb[0].mxu0 %v119
    %v4152 = vpop.f32.mrb[0].mxu0
    %v4153 = vadd.f32 %v4100, %v4152
    %v4154 = vpop.f32.mrb[0].mxu0
    %v4155 = vadd.f32 %v4102, %v4154
    %v4156 = vpop.f32.mrb[0].mxu0
    %v4157 = vadd.f32 %v4104, %v4156
    %v4158 = vpop.f32.mrb[0].mxu0
    %v4159 = vadd.f32 %v4106, %v4158
    %4160 = vdwg.mxu0
    %v4545 = vunpack.c.l.b16 %v585
    %v4546 = vunpack.c.h.b16 %v585
    %v4547 = vunpack.c.l.b16 %v586
    %v4548 = vunpack.c.h.b16 %v586
    %v4549 = vunpack.c.l.b16 %v587
    %v4550 = vunpack.c.h.b16 %v587
    %v4551 = vunpack.c.l.b16 %v588
    %v4552 = vunpack.c.h.b16 %v588
    %v4553 = vunpack.c.l.b16 %v589
    %v4554 = vunpack.c.h.b16 %v589
    %v4555 = vunpack.c.l.b16 %v590
    %v4556 = vunpack.c.h.b16 %v590
    %v4557 = vunpack.c.l.b16 %v591
    %v4558 = vunpack.c.h.b16 %v591
    %v4559 = vunpack.c.l.b16 %v592
    %v4560 = vunpack.c.h.b16 %v592
    %v4561 = vunpack.c.l.b16 %v593
    %v4562 = vunpack.c.h.b16 %v593
    %v4563 = vunpack.c.l.b16 %v594
    %v4564 = vunpack.c.h.b16 %v594
    %v4565 = vunpack.c.l.b16 %v595
    %v4566 = vunpack.c.h.b16 %v595
    %v4567 = vunpack.c.l.b16 %v596
    %v4568 = vunpack.c.h.b16 %v596
    %v4569 = vunpack.c.l.b16 %v597
    %v4570 = vunpack.c.h.b16 %v597
    %v4571 = vunpack.c.l.b16 %v598
    %v4572 = vunpack.c.h.b16 %v598
    %v4573 = vunpack.c.l.b16 %v599
    %v4574 = vunpack.c.h.b16 %v599
    %v4575 = vunpack.c.l.b16 %v600
    %v4576 = vunpack.c.h.b16 %v600
    %v4577 = vunpack.c.l.b16 %v601
    %v4578 = vunpack.c.h.b16 %v601
    %v4579 = vunpack.c.l.b16 %v602
    %v4580 = vunpack.c.h.b16 %v602
    %v4581 = vunpack.c.l.b16 %v603
    %v4582 = vunpack.c.h.b16 %v603
    %v4583 = vunpack.c.l.b16 %v604
    %v4584 = vunpack.c.h.b16 %v604
    %v4585 = vunpack.c.l.b16 %v605
    %v4586 = vunpack.c.h.b16 %v605
    %v4587 = vunpack.c.l.b16 %v606
    %v4588 = vunpack.c.h.b16 %v606
    %v4589 = vunpack.c.l.b16 %v607
    %v4590 = vunpack.c.h.b16 %v607
    %v4591 = vunpack.c.l.b16 %v608
    %v4592 = vunpack.c.h.b16 %v608
    %v4593 = vunpack.c.l.b16 %v609
    %v4594 = vunpack.c.h.b16 %v609
    %v4595 = vunpack.c.l.b16 %v610
    %v4596 = vunpack.c.h.b16 %v610
    %v4597 = vunpack.c.l.b16 %v611
    %v4598 = vunpack.c.h.b16 %v611
    %v4599 = vunpack.c.l.b16 %v612
    %v4600 = vunpack.c.h.b16 %v612
    %v4601 = vunpack.c.l.b16 %v613
    %v4602 = vunpack.c.h.b16 %v613
    %v4603 = vunpack.c.l.b16 %v614
    %v4604 = vunpack.c.h.b16 %v614
    %v4605 = vunpack.c.l.b16 %v615
    %v4606 = vunpack.c.h.b16 %v615
    %v4607 = vunpack.c.l.b16 %v616
    %v4608 = vunpack.c.h.b16 %v616
    %v4609 = vunpack.c.l.b16 %v617
    %v4610 = vunpack.c.h.b16 %v617
    %v4611 = vunpack.c.l.b16 %v618
    %v4612 = vunpack.c.h.b16 %v618
    %v4613 = vunpack.c.l.b16 %v619
    %v4614 = vunpack.c.h.b16 %v619
    %v4615 = vunpack.c.l.b16 %v620
    %v4616 = vunpack.c.h.b16 %v620
    %v4617 = vunpack.c.l.b16 %v621
    %v4618 = vunpack.c.h.b16 %v621
    %v4619 = vunpack.c.l.b16 %v622
    %v4620 = vunpack.c.h.b16 %v622
    %v4621 = vunpack.c.l.b16 %v623
    %v4622 = vunpack.c.h.b16 %v623
    %v4623 = vunpack.c.l.b16 %v624
    %v4624 = vunpack.c.h.b16 %v624
    %v4625 = vunpack.c.l.b16 %v625
    %v4626 = vunpack.c.h.b16 %v625
    %v4627 = vunpack.c.l.b16 %v626
    %v4628 = vunpack.c.h.b16 %v626
    %v4629 = vunpack.c.l.b16 %v627
    %v4630 = vunpack.c.h.b16 %v627
    %v4631 = vunpack.c.l.b16 %v628
    %v4632 = vunpack.c.h.b16 %v628
    %v4633 = vunpack.c.l.b16 %v629
    %v4634 = vunpack.c.h.b16 %v629
    %v4635 = vunpack.c.l.b16 %v630
    %v4636 = vunpack.c.h.b16 %v630
    %v4637 = vunpack.c.l.b16 %v631
    %v4638 = vunpack.c.h.b16 %v631
    %v4639 = vunpack.c.l.b16 %v632
    %v4640 = vunpack.c.h.b16 %v632
    %v4641 = vunpack.c.l.b16 %v633
    %v4642 = vunpack.c.h.b16 %v633
    %v4643 = vunpack.c.l.b16 %v634
    %v4644 = vunpack.c.h.b16 %v634
    %v4645 = vunpack.c.l.b16 %v635
    %v4646 = vunpack.c.h.b16 %v635
    %v4647 = vunpack.c.l.b16 %v636
    %v4648 = vunpack.c.h.b16 %v636
    %v4649 = vunpack.c.l.b16 %v637
    %v4650 = vunpack.c.h.b16 %v637
    %v4651 = vunpack.c.l.b16 %v638
    %v4652 = vunpack.c.h.b16 %v638
    %v4653 = vunpack.c.l.b16 %v639
    %v4654 = vunpack.c.h.b16 %v639
    %v4655 = vunpack.c.l.b16 %v640
    %v4656 = vunpack.c.h.b16 %v640
    %v4657 = vunpack.c.l.b16 %v641
    %v4658 = vunpack.c.h.b16 %v641
    %v4659 = vunpack.c.l.b16 %v642
    %v4660 = vunpack.c.h.b16 %v642
    %v4661 = vunpack.c.l.b16 %v643
    %v4662 = vunpack.c.h.b16 %v643
    %v4663 = vunpack.c.l.b16 %v644
    %v4664 = vunpack.c.h.b16 %v644
    %v4665 = vunpack.c.l.b16 %v645
    %v4666 = vunpack.c.h.b16 %v645
    %v4667 = vunpack.c.l.b16 %v646
    %v4668 = vunpack.c.h.b16 %v646
    %v4669 = vunpack.c.l.b16 %v647
    %v4670 = vunpack.c.h.b16 %v647
    %v4671 = vunpack.c.l.b16 %v648
    %v4672 = vunpack.c.h.b16 %v648
    %v4673 = vunpack.c.l.b16 %v649
    %v4674 = vunpack.c.h.b16 %v649
    %v4675 = vunpack.c.l.b16 %v650
    %v4676 = vunpack.c.h.b16 %v650
    %v4677 = vunpack.c.l.b16 %v651
    %v4678 = vunpack.c.h.b16 %v651
    %v4679 = vunpack.c.l.b16 %v652
    %v4680 = vunpack.c.h.b16 %v652
    %v4681 = vunpack.c.l.b16 %v653
    %v4682 = vunpack.c.h.b16 %v653
    %v4683 = vunpack.c.l.b16 %v654
    %v4684 = vunpack.c.h.b16 %v654
    %v4685 = vunpack.c.l.b16 %v655
    %v4686 = vunpack.c.h.b16 %v655
    %v4687 = vunpack.c.l.b16 %v656
    %v4688 = vunpack.c.h.b16 %v656
    %v4689 = vunpack.c.l.b16 %v657
    %v4690 = vunpack.c.h.b16 %v657
    %v4691 = vunpack.c.l.b16 %v658
    %v4692 = vunpack.c.h.b16 %v658
    %v4693 = vunpack.c.l.b16 %v659
    %v4694 = vunpack.c.h.b16 %v659
    %v4695 = vunpack.c.l.b16 %v660
    %v4696 = vunpack.c.h.b16 %v660
    %v4697 = vunpack.c.l.b16 %v661
    %v4698 = vunpack.c.h.b16 %v661
    %v4699 = vunpack.c.l.b16 %v662
    %v4700 = vunpack.c.h.b16 %v662
    %v4701 = vunpack.c.l.b16 %v663
    %v4702 = vunpack.c.h.b16 %v663
    %v4703 = vunpack.c.l.b16 %v664
    %v4704 = vunpack.c.h.b16 %v664
    %v4705 = vunpack.c.l.b16 %v665
    %v4706 = vunpack.c.h.b16 %v665
    %v4707 = vunpack.c.l.b16 %v666
    %v4708 = vunpack.c.h.b16 %v666
    %v4709 = vunpack.c.l.b16 %v667
    %v4710 = vunpack.c.h.b16 %v667
    %v4711 = vunpack.c.l.b16 %v668
    %v4712 = vunpack.c.h.b16 %v668
    %v4713 = vunpack.c.l.b16 %v669
    %v4714 = vunpack.c.h.b16 %v669
    %v4715 = vunpack.c.l.b16 %v670
    %v4716 = vunpack.c.h.b16 %v670
    %v4717 = vunpack.c.l.b16 %v671
    %v4718 = vunpack.c.h.b16 %v671
    %v4719 = vunpack.c.l.b16 %v672
    %v4720 = vunpack.c.h.b16 %v672
    %v4721 = vunpack.c.l.b16 %v673
    %v4722 = vunpack.c.h.b16 %v673
    %v4723 = vunpack.c.l.b16 %v674
    %v4724 = vunpack.c.h.b16 %v674
    %v4725 = vunpack.c.l.b16 %v675
    %v4726 = vunpack.c.h.b16 %v675
    %v4727 = vunpack.c.l.b16 %v676
    %v4728 = vunpack.c.h.b16 %v676
    %v4729 = vunpack.c.l.b16 %v677
    %v4730 = vunpack.c.h.b16 %v677
    %v4731 = vunpack.c.l.b16 %v678
    %v4732 = vunpack.c.h.b16 %v678
    %v4733 = vunpack.c.l.b16 %v679
    %v4734 = vunpack.c.h.b16 %v679
    %v4735 = vunpack.c.l.b16 %v680
    %v4736 = vunpack.c.h.b16 %v680
    %v4737 = vunpack.c.l.b16 %v681
    %v4738 = vunpack.c.h.b16 %v681
    %v4739 = vunpack.c.l.b16 %v682
    %v4740 = vunpack.c.h.b16 %v682
    %v4741 = vunpack.c.l.b16 %v683
    %v4742 = vunpack.c.h.b16 %v683
    %v4743 = vunpack.c.l.b16 %v684
    %v4744 = vunpack.c.h.b16 %v684
    %v4745 = vunpack.c.l.b16 %v685
    %v4746 = vunpack.c.h.b16 %v685
    %v4747 = vunpack.c.l.b16 %v686
    %v4748 = vunpack.c.h.b16 %v686
    %v4749 = vunpack.c.l.b16 %v687
    %v4750 = vunpack.c.h.b16 %v687
    %v4751 = vunpack.c.l.b16 %v688
    %v4752 = vunpack.c.h.b16 %v688
    %v4753 = vunpack.c.l.b16 %v689
    %v4754 = vunpack.c.h.b16 %v689
    %v4755 = vunpack.c.l.b16 %v690
    %v4756 = vunpack.c.h.b16 %v690
    %v4757 = vunpack.c.l.b16 %v691
    %v4758 = vunpack.c.h.b16 %v691
    %v4759 = vunpack.c.l.b16 %v692
    %v4760 = vunpack.c.h.b16 %v692
    %v4761 = vunpack.c.l.b16 %v693
    %v4762 = vunpack.c.h.b16 %v693
    %v4763 = vunpack.c.l.b16 %v694
    %v4764 = vunpack.c.h.b16 %v694
    %v4765 = vunpack.c.l.b16 %v695
    %v4766 = vunpack.c.h.b16 %v695
    %v4767 = vunpack.c.l.b16 %v696
    %v4768 = vunpack.c.h.b16 %v696
    %v4769 = vunpack.c.l.b16 %v697
    %v4770 = vunpack.c.h.b16 %v697
    %v4771 = vunpack.c.l.b16 %v698
    %v4772 = vunpack.c.h.b16 %v698
    %v4773 = vunpack.c.l.b16 %v699
    %v4774 = vunpack.c.h.b16 %v699
    %v4775 = vunpack.c.l.b16 %v700
    %v4776 = vunpack.c.h.b16 %v700
    %v4777 = vunpack.c.l.b16 %v701
    %v4778 = vunpack.c.h.b16 %v701
    %v4779 = vunpack.c.l.b16 %v702
    %v4780 = vunpack.c.h.b16 %v702
    %v4781 = vunpack.c.l.b16 %v703
    %v4782 = vunpack.c.h.b16 %v703
    %v4783 = vunpack.c.l.b16 %v704
    %v4784 = vunpack.c.h.b16 %v704
    %v4785 = vunpack.c.l.b16 %v705
    %v4786 = vunpack.c.h.b16 %v705
    %v4787 = vunpack.c.l.b16 %v706
    %v4788 = vunpack.c.h.b16 %v706
    %v4789 = vunpack.c.l.b16 %v707
    %v4790 = vunpack.c.h.b16 %v707
    %v4791 = vunpack.c.l.b16 %v708
    %v4792 = vunpack.c.h.b16 %v708
    %v4793 = vunpack.c.l.b16 %v709
    %v4794 = vunpack.c.h.b16 %v709
    %v4795 = vunpack.c.l.b16 %v710
    %v4796 = vunpack.c.h.b16 %v710
    %v4797 = vunpack.c.l.b16 %v711
    %v4798 = vunpack.c.h.b16 %v711
    %v4799 = vunpack.c.l.b16 %v712
    %v4800 = vunpack.c.h.b16 %v712
    %v4801 = vunpack.c.l.b16 %v713
    %v4802 = vunpack.c.h.b16 %v713
    %v4803 = vunpack.c.l.b16 %v714
    %v4804 = vunpack.c.h.b16 %v714
    %v4805 = vunpack.c.l.b16 %v715
    %v4806 = vunpack.c.h.b16 %v715
    %v4807 = vunpack.c.l.b16 %v716
    %v4808 = vunpack.c.h.b16 %v716
    %v4809 = vunpack.c.l.b16 %v717
    %v4810 = vunpack.c.h.b16 %v717
    %v4811 = vunpack.c.l.b16 %v718
    %v4812 = vunpack.c.h.b16 %v718
    %v4813 = vunpack.c.l.b16 %v719
    %v4814 = vunpack.c.h.b16 %v719
    %v4815 = vunpack.c.l.b16 %v720
    %v4816 = vunpack.c.h.b16 %v720
    %v4817 = vunpack.c.l.b16 %v721
    %v4818 = vunpack.c.h.b16 %v721
    %v4819 = vunpack.c.l.b16 %v722
    %v4820 = vunpack.c.h.b16 %v722
    %v4821 = vunpack.c.l.b16 %v723
    %v4822 = vunpack.c.h.b16 %v723
    %v4823 = vunpack.c.l.b16 %v724
    %v4824 = vunpack.c.h.b16 %v724
    %v4825 = vunpack.c.l.b16 %v725
    %v4826 = vunpack.c.h.b16 %v725
    %v4827 = vunpack.c.l.b16 %v726
    %v4828 = vunpack.c.h.b16 %v726
    %v4829 = vunpack.c.l.b16 %v727
    %v4830 = vunpack.c.h.b16 %v727
    %v4831 = vunpack.c.l.b16 %v728
    %v4832 = vunpack.c.h.b16 %v728
    %v4833 = vunpack.c.l.b16 %v729
    %v4834 = vunpack.c.h.b16 %v729
    %v4835 = vunpack.c.l.b16 %v730
    %v4836 = vunpack.c.h.b16 %v730
    %v4837 = vunpack.c.l.b16 %v731
    %v4838 = vunpack.c.h.b16 %v731
    %v4839 = vunpack.c.l.b16 %v732
    %v4840 = vunpack.c.h.b16 %v732
    %v4841 = vunpack.c.l.b16 %v733
    %v4842 = vunpack.c.h.b16 %v733
    %v4843 = vunpack.c.l.b16 %v734
    %v4844 = vunpack.c.h.b16 %v734
    %v4845 = vunpack.c.l.b16 %v735
    %v4846 = vunpack.c.h.b16 %v735
    %v4847 = vunpack.c.l.b16 %v736
    %v4848 = vunpack.c.h.b16 %v736
    %v4849 = vunpack.c.l.b16 %v737
    %v4850 = vunpack.c.h.b16 %v737
    %v4851 = vunpack.c.l.b16 %v738
    %v4852 = vunpack.c.h.b16 %v738
    %v4853 = vunpack.c.l.b16 %v739
    %v4854 = vunpack.c.h.b16 %v739
    %v4855 = vunpack.c.l.b16 %v740
    %v4856 = vunpack.c.h.b16 %v740
    %v4857 = vunpack.c.l.b16 %v741
    %v4858 = vunpack.c.h.b16 %v741
    %v4859 = vunpack.c.l.b16 %v742
    %v4860 = vunpack.c.h.b16 %v742
    %v4861 = vunpack.c.l.b16 %v743
    %v4862 = vunpack.c.h.b16 %v743
    %v4863 = vunpack.c.l.b16 %v744
    %v4864 = vunpack.c.h.b16 %v744
    %v4865 = vunpack.c.l.b16 %v745
    %v4866 = vunpack.c.h.b16 %v745
    %v4867 = vunpack.c.l.b16 %v746
    %v4868 = vunpack.c.h.b16 %v746
    %v4869 = vunpack.c.l.b16 %v747
    %v4870 = vunpack.c.h.b16 %v747
    %v4871 = vunpack.c.l.b16 %v748
    %v4872 = vunpack.c.h.b16 %v748
    %v4873 = vunpack.c.l.b16 %v749
    %v4874 = vunpack.c.h.b16 %v749
    %v4875 = vunpack.c.l.b16 %v750
    %v4876 = vunpack.c.h.b16 %v750
    %v4877 = vunpack.c.l.b16 %v751
    %v4878 = vunpack.c.h.b16 %v751
    %v4879 = vunpack.c.l.b16 %v752
    %v4880 = vunpack.c.h.b16 %v752
    %v4881 = vunpack.c.l.b16 %v753
    %v4882 = vunpack.c.h.b16 %v753
    %v4883 = vunpack.c.l.b16 %v754
    %v4884 = vunpack.c.h.b16 %v754
    %v4885 = vunpack.c.l.b16 %v755
    %v4886 = vunpack.c.h.b16 %v755
    %v4887 = vunpack.c.l.b16 %v756
    %v4888 = vunpack.c.h.b16 %v756
    %v4889 = vunpack.c.l.b16 %v757
    %v4890 = vunpack.c.h.b16 %v757
    %v4891 = vunpack.c.l.b16 %v758
    %v4892 = vunpack.c.h.b16 %v758
    %v4893 = vunpack.c.l.b16 %v759
    %v4894 = vunpack.c.h.b16 %v759
    %v4895 = vunpack.c.l.b16 %v760
    %v4896 = vunpack.c.h.b16 %v760
    %v4897 = vunpack.c.l.b16 %v761
    %v4898 = vunpack.c.h.b16 %v761
    %v4899 = vunpack.c.l.b16 %v762
    %v4900 = vunpack.c.h.b16 %v762
    %v4901 = vunpack.c.l.b16 %v763
    %v4902 = vunpack.c.h.b16 %v763
    %v4903 = vunpack.c.l.b16 %v764
    %v4904 = vunpack.c.h.b16 %v764
    %v4905 = vunpack.c.l.b16 %v765
    %v4906 = vunpack.c.h.b16 %v765
    %v4907 = vunpack.c.l.b16 %v766
    %v4908 = vunpack.c.h.b16 %v766
    %v4909 = vunpack.c.l.b16 %v767
    %v4910 = vunpack.c.h.b16 %v767
    %v4911 = vunpack.c.l.b16 %v768
    %v4912 = vunpack.c.h.b16 %v768
    %v4913 = vunpack.c.l.b16 %v769
    %v4914 = vunpack.c.h.b16 %v769
    %v4915 = vunpack.c.l.b16 %v770
    %v4916 = vunpack.c.h.b16 %v770
    %v4917 = vunpack.c.l.b16 %v771
    %v4918 = vunpack.c.h.b16 %v771
    %v4919 = vunpack.c.l.b16 %v772
    %v4920 = vunpack.c.h.b16 %v772
    %v4921 = vunpack.c.l.b16 %v773
    %v4922 = vunpack.c.h.b16 %v773
    %v4923 = vunpack.c.l.b16 %v774
    %v4924 = vunpack.c.h.b16 %v774
    %v4925 = vunpack.c.l.b16 %v775
    %v4926 = vunpack.c.h.b16 %v775
    %v4927 = vunpack.c.l.b16 %v776
    %v4928 = vunpack.c.h.b16 %v776
    %v4929 = vunpack.c.l.b16 %v777
    %v4930 = vunpack.c.h.b16 %v777
    %v4931 = vunpack.c.l.b16 %v778
    %v4932 = vunpack.c.h.b16 %v778
    %v4933 = vunpack.c.l.b16 %v779
    %v4934 = vunpack.c.h.b16 %v779
    %v4935 = vunpack.c.l.b16 %v780
    %v4936 = vunpack.c.h.b16 %v780
    %v4937 = vunpack.c.l.b16 %v781
    %v4938 = vunpack.c.h.b16 %v781
    %v4939 = vunpack.c.l.b16 %v782
    %v4940 = vunpack.c.h.b16 %v782
    %v4941 = vunpack.c.l.b16 %v783
    %v4942 = vunpack.c.h.b16 %v783
    %v4943 = vunpack.c.l.b16 %v784
    %v4944 = vunpack.c.h.b16 %v784
    %v4945 = vunpack.c.l.b16 %v785
    %v4946 = vunpack.c.h.b16 %v785
    %v4947 = vunpack.c.l.b16 %v786
    %v4948 = vunpack.c.h.b16 %v786
    %v4949 = vunpack.c.l.b16 %v787
    %v4950 = vunpack.c.h.b16 %v787
    %v4951 = vunpack.c.l.b16 %v788
    %v4952 = vunpack.c.h.b16 %v788
    %v4953 = vunpack.c.l.b16 %v789
    %v4954 = vunpack.c.h.b16 %v789
    %v4955 = vunpack.c.l.b16 %v790
    %v4956 = vunpack.c.h.b16 %v790
    %v4957 = vunpack.c.l.b16 %v791
    %v4958 = vunpack.c.h.b16 %v791
    %v4959 = vunpack.c.l.b16 %v792
    %v4960 = vunpack.c.h.b16 %v792
    %v4961 = vunpack.c.l.b16 %v793
    %v4962 = vunpack.c.h.b16 %v793
    %v4963 = vunpack.c.l.b16 %v794
    %v4964 = vunpack.c.h.b16 %v794
    %v4965 = vunpack.c.l.b16 %v795
    %v4966 = vunpack.c.h.b16 %v795
    %v4967 = vunpack.c.l.b16 %v796
    %v4968 = vunpack.c.h.b16 %v796
    %v4969 = vunpack.c.l.b16 %v797
    %v4970 = vunpack.c.h.b16 %v797
    %v4971 = vunpack.c.l.b16 %v798
    %v4972 = vunpack.c.h.b16 %v798
    %v4973 = vunpack.c.l.b16 %v799
    %v4974 = vunpack.c.h.b16 %v799
    %v4975 = vunpack.c.l.b16 %v800
    %v4976 = vunpack.c.h.b16 %v800
    %v4977 = vunpack.c.l.b16 %v801
    %v4978 = vunpack.c.h.b16 %v801
    %v4979 = vunpack.c.l.b16 %v802
    %v4980 = vunpack.c.h.b16 %v802
    %v4981 = vunpack.c.l.b16 %v803
    %v4982 = vunpack.c.h.b16 %v803
    %v4983 = vunpack.c.l.b16 %v804
    %v4984 = vunpack.c.h.b16 %v804
    %v4985 = vunpack.c.l.b16 %v805
    %v4986 = vunpack.c.h.b16 %v805
    %v4987 = vunpack.c.l.b16 %v806
    %v4988 = vunpack.c.h.b16 %v806
    %v4989 = vunpack.c.l.b16 %v807
    %v4990 = vunpack.c.h.b16 %v807
    %v4991 = vunpack.c.l.b16 %v808
    %v4992 = vunpack.c.h.b16 %v808
    %v4993 = vunpack.c.l.b16 %v809
    %v4994 = vunpack.c.h.b16 %v809
    %v4995 = vunpack.c.l.b16 %v810
    %v4996 = vunpack.c.h.b16 %v810
    %v4997 = vunpack.c.l.b16 %v811
    %v4998 = vunpack.c.h.b16 %v811
    %v4999 = vunpack.c.l.b16 %v812
    %v5000 = vunpack.c.h.b16 %v812
    %v5001 = vunpack.c.l.b16 %v813
    %v5002 = vunpack.c.h.b16 %v813
    %v5003 = vunpack.c.l.b16 %v814
    %v5004 = vunpack.c.h.b16 %v814
    %v5005 = vunpack.c.l.b16 %v815
    %v5006 = vunpack.c.h.b16 %v815
    %v5007 = vunpack.c.l.b16 %v816
    %v5008 = vunpack.c.h.b16 %v816
    %v5009 = vunpack.c.l.b16 %v817
    %v5010 = vunpack.c.h.b16 %v817
    %v5011 = vunpack.c.l.b16 %v818
    %v5012 = vunpack.c.h.b16 %v818
    %v5013 = vunpack.c.l.b16 %v819
    %v5014 = vunpack.c.h.b16 %v819
    %v5015 = vunpack.c.l.b16 %v820
    %v5016 = vunpack.c.h.b16 %v820
    %v5017 = vunpack.c.l.b16 %v821
    %v5018 = vunpack.c.h.b16 %v821
    %v5019 = vunpack.c.l.b16 %v822
    %v5020 = vunpack.c.h.b16 %v822
    %v5021 = vunpack.c.l.b16 %v823
    %v5022 = vunpack.c.h.b16 %v823
    %v5023 = vunpack.c.l.b16 %v824
    %v5024 = vunpack.c.h.b16 %v824
    %v5025 = vunpack.c.l.b16 %v825
    %v5026 = vunpack.c.h.b16 %v825
    %v5027 = vunpack.c.l.b16 %v826
    %v5028 = vunpack.c.h.b16 %v826
    %v5029 = vunpack.c.l.b16 %v827
    %v5030 = vunpack.c.h.b16 %v827
    %v5031 = vunpack.c.l.b16 %v828
    %v5032 = vunpack.c.h.b16 %v828
    %v5033 = vunpack.c.l.b16 %v829
    %v5034 = vunpack.c.h.b16 %v829
    %v5035 = vunpack.c.l.b16 %v830
    %v5036 = vunpack.c.h.b16 %v830
    %v5037 = vunpack.c.l.b16 %v831
    %v5038 = vunpack.c.h.b16 %v831
    %v5039 = vunpack.c.l.b16 %v832
    %v5040 = vunpack.c.h.b16 %v832
    %v5041 = vunpack.c.l.b16 %v833
    %v5042 = vunpack.c.h.b16 %v833
    %v5043 = vunpack.c.l.b16 %v834
    %v5044 = vunpack.c.h.b16 %v834
    %v5045 = vunpack.c.l.b16 %v835
    %v5046 = vunpack.c.h.b16 %v835
    %v5047 = vunpack.c.l.b16 %v836
    %v5048 = vunpack.c.h.b16 %v836
    %v5049 = vunpack.c.l.b16 %v837
    %v5050 = vunpack.c.h.b16 %v837
    %v5051 = vunpack.c.l.b16 %v838
    %v5052 = vunpack.c.h.b16 %v838
    %v5053 = vunpack.c.l.b16 %v839
    %v5054 = vunpack.c.h.b16 %v839
    %v5055 = vunpack.c.l.b16 %v840
    %v5056 = vunpack.c.h.b16 %v840
    %v5057 = vunpack.c.l.b16 %v841
    %v5058 = vunpack.c.h.b16 %v841
    %v5059 = vunpack.c.l.b16 %v842
    %v5060 = vunpack.c.h.b16 %v842
    %v5061 = vunpack.c.l.b16 %v843
    %v5062 = vunpack.c.h.b16 %v843
    %v5063 = vunpack.c.l.b16 %v844
    %v5064 = vunpack.c.h.b16 %v844
    %v5065 = vunpack.c.l.b16 %v845
    %v5066 = vunpack.c.h.b16 %v845
    %v5067 = vunpack.c.l.b16 %v846
    %v5068 = vunpack.c.h.b16 %v846
    %v5069 = vunpack.c.l.b16 %v847
    %v5070 = vunpack.c.h.b16 %v847
    %v5071 = vunpack.c.l.b16 %v848
    %v5072 = vunpack.c.h.b16 %v848
    %v5073 = vunpack.c.l.b16 %v849
    %v5074 = vunpack.c.h.b16 %v849
    %v5075 = vunpack.c.l.b16 %v850
    %v5076 = vunpack.c.h.b16 %v850
    %v5077 = vunpack.c.l.b16 %v851
    %v5078 = vunpack.c.h.b16 %v851
    %v5079 = vunpack.c.l.b16 %v852
    %v5080 = vunpack.c.h.b16 %v852
    %v5081 = vunpack.c.l.b16 %v853
    %v5082 = vunpack.c.h.b16 %v853
    %v5083 = vunpack.c.l.b16 %v854
    %v5084 = vunpack.c.h.b16 %v854
    %v5085 = vunpack.c.l.b16 %v855
    %v5086 = vunpack.c.h.b16 %v855
    %v5087 = vunpack.c.l.b16 %v856
    %v5088 = vunpack.c.h.b16 %v856
    %v5089 = vunpack.c.l.b16 %v857
    %v5090 = vunpack.c.h.b16 %v857
    %v5091 = vunpack.c.l.b16 %v858
    %v5092 = vunpack.c.h.b16 %v858
    %v5093 = vunpack.c.l.b16 %v859
    %v5094 = vunpack.c.h.b16 %v859
    %v5095 = vunpack.c.l.b16 %v860
    %v5096 = vunpack.c.h.b16 %v860
    %v5097 = vunpack.c.l.b16 %v861
    %v5098 = vunpack.c.h.b16 %v861
    %v5099 = vunpack.c.l.b16 %v862
    %v5100 = vunpack.c.h.b16 %v862
    %v5101 = vunpack.c.l.b16 %v863
    %v5102 = vunpack.c.h.b16 %v863
    %v5103 = vunpack.c.l.b16 %v864
    %v5104 = vunpack.c.h.b16 %v864
    %v5105 = vunpack.c.l.b16 %v865
    %v5106 = vunpack.c.h.b16 %v865
    %v5107 = vunpack.c.l.b16 %v866
    %v5108 = vunpack.c.h.b16 %v866
    %v5109 = vunpack.c.l.b16 %v867
    %v5110 = vunpack.c.h.b16 %v867
    %v5111 = vunpack.c.l.b16 %v868
    %v5112 = vunpack.c.h.b16 %v868
    %v5113 = vunpack.c.l.b16 %v869
    %v5114 = vunpack.c.h.b16 %v869
    %v5115 = vunpack.c.l.b16 %v870
    %v5116 = vunpack.c.h.b16 %v870
    %v5117 = vunpack.c.l.b16 %v871
    %v5118 = vunpack.c.h.b16 %v871
    %v5119 = vunpack.c.l.b16 %v872
    %v5120 = vunpack.c.h.b16 %v872
    %v5121 = vunpack.c.l.b16 %v873
    %v5122 = vunpack.c.h.b16 %v873
    %v5123 = vunpack.c.l.b16 %v874
    %v5124 = vunpack.c.h.b16 %v874
    %v5125 = vunpack.c.l.b16 %v875
    %v5126 = vunpack.c.h.b16 %v875
    %v5127 = vunpack.c.l.b16 %v876
    %v5128 = vunpack.c.h.b16 %v876
    %v5129 = vunpack.c.l.b16 %v877
    %v5130 = vunpack.c.h.b16 %v877
    %v5131 = vunpack.c.l.b16 %v878
    %v5132 = vunpack.c.h.b16 %v878
    %v5133 = vunpack.c.l.b16 %v879
    %v5134 = vunpack.c.h.b16 %v879
    %v5135 = vunpack.c.l.b16 %v880
    %v5136 = vunpack.c.h.b16 %v880
    %v5137 = vunpack.c.l.b16 %v881
    %v5138 = vunpack.c.h.b16 %v881
    %v5139 = vunpack.c.l.b16 %v882
    %v5140 = vunpack.c.h.b16 %v882
    %v5141 = vunpack.c.l.b16 %v883
    %v5142 = vunpack.c.h.b16 %v883
    %v5143 = vunpack.c.l.b16 %v884
    %v5144 = vunpack.c.h.b16 %v884
    %v5145 = vunpack.c.l.b16 %v885
    %v5146 = vunpack.c.h.b16 %v885
    %v5147 = vunpack.c.l.b16 %v886
    %v5148 = vunpack.c.h.b16 %v886
    %v5149 = vunpack.c.l.b16 %v887
    %v5150 = vunpack.c.h.b16 %v887
    %v5151 = vunpack.c.l.b16 %v888
    %v5152 = vunpack.c.h.b16 %v888
    %v5153 = vunpack.c.l.b16 %v889
    %v5154 = vunpack.c.h.b16 %v889
    %v5155 = vunpack.c.l.b16 %v890
    %v5156 = vunpack.c.h.b16 %v890
    %v5157 = vunpack.c.l.b16 %v891
    %v5158 = vunpack.c.h.b16 %v891
    %v5159 = vunpack.c.l.b16 %v892
    %v5160 = vunpack.c.h.b16 %v892
    %v5161 = vunpack.c.l.b16 %v893
    %v5162 = vunpack.c.h.b16 %v893
    %v5163 = vunpack.c.l.b16 %v894
    %v5164 = vunpack.c.h.b16 %v894
    %v5165 = vunpack.c.l.b16 %v895
    %v5166 = vunpack.c.h.b16 %v895
    %v5167 = vunpack.c.l.b16 %v896
    %v5168 = vunpack.c.h.b16 %v896
    %v5169 = vunpack.c.l.b16 %v897
    %v5170 = vunpack.c.h.b16 %v897
    %v5171 = vunpack.c.l.b16 %v898
    %v5172 = vunpack.c.h.b16 %v898
    %v5173 = vunpack.c.l.b16 %v899
    %v5174 = vunpack.c.h.b16 %v899
    %v5175 = vunpack.c.l.b16 %v900
    %v5176 = vunpack.c.h.b16 %v900
    %v5177 = vunpack.c.l.b16 %v901
    %v5178 = vunpack.c.h.b16 %v901
    %v5179 = vunpack.c.l.b16 %v902
    %v5180 = vunpack.c.h.b16 %v902
    %v5181 = vunpack.c.l.b16 %v903
    %v5182 = vunpack.c.h.b16 %v903
    %v5183 = vunpack.c.l.b16 %v904
    %v5184 = vunpack.c.h.b16 %v904
    %v5185 = vunpack.c.l.b16 %v905
    %v5186 = vunpack.c.h.b16 %v905
    %v5187 = vunpack.c.l.b16 %v906
    %v5188 = vunpack.c.h.b16 %v906
    %v5189 = vunpack.c.l.b16 %v907
    %v5190 = vunpack.c.h.b16 %v907
    %v5191 = vunpack.c.l.b16 %v908
    %v5192 = vunpack.c.h.b16 %v908
    %v5193 = vunpack.c.l.b16 %v909
    %v5194 = vunpack.c.h.b16 %v909
    %v5195 = vunpack.c.l.b16 %v910
    %v5196 = vunpack.c.h.b16 %v910
    %v5197 = vunpack.c.l.b16 %v911
    %v5198 = vunpack.c.h.b16 %v911
    %v5199 = vunpack.c.l.b16 %v912
    %v5200 = vunpack.c.h.b16 %v912
    %v5201 = vunpack.c.l.b16 %v913
    %v5202 = vunpack.c.h.b16 %v913
    %v5203 = vunpack.c.l.b16 %v914
    %v5204 = vunpack.c.h.b16 %v914
    %v5205 = vunpack.c.l.b16 %v915
    %v5206 = vunpack.c.h.b16 %v915
    %v5207 = vunpack.c.l.b16 %v916
    %v5208 = vunpack.c.h.b16 %v916
    %v5209 = vunpack.c.l.b16 %v917
    %v5210 = vunpack.c.h.b16 %v917
    %v5211 = vunpack.c.l.b16 %v918
    %v5212 = vunpack.c.h.b16 %v918
    %v5213 = vunpack.c.l.b16 %v919
    %v5214 = vunpack.c.h.b16 %v919
    %v5215 = vunpack.c.l.b16 %v920
    %v5216 = vunpack.c.h.b16 %v920
    %v5217 = vunpack.c.l.b16 %v921
    %v5218 = vunpack.c.h.b16 %v921
    %v5219 = vunpack.c.l.b16 %v922
    %v5220 = vunpack.c.h.b16 %v922
    %v5221 = vunpack.c.l.b16 %v923
    %v5222 = vunpack.c.h.b16 %v923
    %v5223 = vunpack.c.l.b16 %v924
    %v5224 = vunpack.c.h.b16 %v924
    %v5225 = vunpack.c.l.b16 %v925
    %v5226 = vunpack.c.h.b16 %v925
    %v5227 = vunpack.c.l.b16 %v926
    %v5228 = vunpack.c.h.b16 %v926
    %v5229 = vunpack.c.l.b16 %v927
    %v5230 = vunpack.c.h.b16 %v927
    %v5231 = vunpack.c.l.b16 %v928
    %v5232 = vunpack.c.h.b16 %v928
    %v5233 = vunpack.c.l.b16 %v929
    %v5234 = vunpack.c.h.b16 %v929
    %v5235 = vunpack.c.l.b16 %v930
    %v5236 = vunpack.c.h.b16 %v930
    %v5237 = vunpack.c.l.b16 %v931
    %v5238 = vunpack.c.h.b16 %v931
    %v5239 = vunpack.c.l.b16 %v932
    %v5240 = vunpack.c.h.b16 %v932
    %v5241 = vunpack.c.l.b16 %v933
    %v5242 = vunpack.c.h.b16 %v933
    %v5243 = vunpack.c.l.b16 %v934
    %v5244 = vunpack.c.h.b16 %v934
    %v5245 = vunpack.c.l.b16 %v935
    %v5246 = vunpack.c.h.b16 %v935
    %v5247 = vunpack.c.l.b16 %v936
    %v5248 = vunpack.c.h.b16 %v936
    %v5249 = vunpack.c.l.b16 %v937
    %v5250 = vunpack.c.h.b16 %v937
    %v5251 = vunpack.c.l.b16 %v938
    %v5252 = vunpack.c.h.b16 %v938
    %v5253 = vunpack.c.l.b16 %v939
    %v5254 = vunpack.c.h.b16 %v939
    %v5255 = vunpack.c.l.b16 %v940
    %v5256 = vunpack.c.h.b16 %v940
    %v5257 = vunpack.c.l.b16 %v941
    %v5258 = vunpack.c.h.b16 %v941
    %v5259 = vunpack.c.l.b16 %v942
    %v5260 = vunpack.c.h.b16 %v942
    %v5261 = vunpack.c.l.b16 %v943
    %v5262 = vunpack.c.h.b16 %v943
    %v5263 = vunpack.c.l.b16 %v944
    %v5264 = vunpack.c.h.b16 %v944
    %v5265 = vunpack.c.l.b16 %v945
    %v5266 = vunpack.c.h.b16 %v945
    %v5267 = vunpack.c.l.b16 %v946
    %v5268 = vunpack.c.h.b16 %v946
    %v5269 = vunpack.c.l.b16 %v947
    %v5270 = vunpack.c.h.b16 %v947
    %v5271 = vunpack.c.l.b16 %v948
    %v5272 = vunpack.c.h.b16 %v948
    %v5273 = vunpack.c.l.b16 %v949
    %v5274 = vunpack.c.h.b16 %v949
    %v5275 = vunpack.c.l.b16 %v950
    %v5276 = vunpack.c.h.b16 %v950
    %v5277 = vunpack.c.l.b16 %v951
    %v5278 = vunpack.c.h.b16 %v951
    %v5279 = vunpack.c.l.b16 %v952
    %v5280 = vunpack.c.h.b16 %v952
    %v5281 = vunpack.c.l.b16 %v953
    %v5282 = vunpack.c.h.b16 %v953
    %v5283 = vunpack.c.l.b16 %v954
    %v5284 = vunpack.c.h.b16 %v954
    %v5285 = vunpack.c.l.b16 %v955
    %v5286 = vunpack.c.h.b16 %v955
    %v5287 = vunpack.c.l.b16 %v956
    %v5288 = vunpack.c.h.b16 %v956
    %v5289 = vunpack.c.l.b16 %v957
    %v5290 = vunpack.c.h.b16 %v957
    %v5291 = vunpack.c.l.b16 %v958
    %v5292 = vunpack.c.h.b16 %v958
    %v5293 = vunpack.c.l.b16 %v959
    %v5294 = vunpack.c.h.b16 %v959
    %v5295 = vunpack.c.l.b16 %v960
    %v5296 = vunpack.c.h.b16 %v960
    %v5297 = vunpack.c.l.b16 %v961
    %v5298 = vunpack.c.h.b16 %v961
    %v5299 = vunpack.c.l.b16 %v962
    %v5300 = vunpack.c.h.b16 %v962
    %v5301 = vunpack.c.l.b16 %v963
    %v5302 = vunpack.c.h.b16 %v963
    %v5303 = vunpack.c.l.b16 %v964
    %v5304 = vunpack.c.h.b16 %v964
    %v5305 = vunpack.c.l.b16 %v965
    %v5306 = vunpack.c.h.b16 %v965
    %v5307 = vunpack.c.l.b16 %v966
    %v5308 = vunpack.c.h.b16 %v966
    %v5309 = vunpack.c.l.b16 %v967
    %v5310 = vunpack.c.h.b16 %v967
    %v5311 = vunpack.c.l.b16 %v968
    %v5312 = vunpack.c.h.b16 %v968
    %v5313 = vpack.c.b16 %v4551, %v4545
    %v5314 = vpack.c.b16 %v4552, %v4546
    %v5315 = vpack.c.b16 %v4553, %v4547
    %v5316 = vpack.c.b16 %v4554, %v4548
    %v5317 = vpack.c.b16 %v4555, %v4549
    %v5318 = vpack.c.b16 %v4556, %v4550
    %v5319 = vpack.c.b16 %v4563, %v4557
    %v5320 = vpack.c.b16 %v4564, %v4558
    %v5321 = vpack.c.b16 %v4565, %v4559
    %v5322 = vpack.c.b16 %v4566, %v4560
    %v5323 = vpack.c.b16 %v4567, %v4561
    %v5324 = vpack.c.b16 %v4568, %v4562
    %v5325 = vpack.c.b16 %v4575, %v4569
    %v5326 = vpack.c.b16 %v4576, %v4570
    %v5327 = vpack.c.b16 %v4577, %v4571
    %v5328 = vpack.c.b16 %v4578, %v4572
    %v5329 = vpack.c.b16 %v4579, %v4573
    %v5330 = vpack.c.b16 %v4580, %v4574
    %v5331 = vpack.c.b16 %v4587, %v4581
    %v5332 = vpack.c.b16 %v4588, %v4582
    %v5333 = vpack.c.b16 %v4589, %v4583
    %v5334 = vpack.c.b16 %v4590, %v4584
    %v5335 = vpack.c.b16 %v4591, %v4585
    %v5336 = vpack.c.b16 %v4592, %v4586
    %v5337 = vpack.c.b16 %v4599, %v4593
    %v5338 = vpack.c.b16 %v4600, %v4594
    %v5339 = vpack.c.b16 %v4601, %v4595
    %v5340 = vpack.c.b16 %v4602, %v4596
    %v5341 = vpack.c.b16 %v4603, %v4597
    %v5342 = vpack.c.b16 %v4604, %v4598
    %v5343 = vpack.c.b16 %v4611, %v4605
    %v5344 = vpack.c.b16 %v4612, %v4606
    %v5345 = vpack.c.b16 %v4613, %v4607
    %v5346 = vpack.c.b16 %v4614, %v4608
    %v5347 = vpack.c.b16 %v4615, %v4609
    %v5348 = vpack.c.b16 %v4616, %v4610
    %v5349 = vpack.c.b16 %v4623, %v4617
    %v5350 = vpack.c.b16 %v4624, %v4618
    %v5351 = vpack.c.b16 %v4625, %v4619
    %v5352 = vpack.c.b16 %v4626, %v4620
    %v5353 = vpack.c.b16 %v4627, %v4621
    %v5354 = vpack.c.b16 %v4628, %v4622
    %v5355 = vpack.c.b16 %v4635, %v4629
    %v5356 = vpack.c.b16 %v4636, %v4630
    %v5357 = vpack.c.b16 %v4637, %v4631
    %v5358 = vpack.c.b16 %v4638, %v4632
    %v5359 = vpack.c.b16 %v4639, %v4633
    %v5360 = vpack.c.b16 %v4640, %v4634
    %v5361 = vpack.c.b16 %v4647, %v4641
    %v5362 = vpack.c.b16 %v4648, %v4642
    %v5363 = vpack.c.b16 %v4649, %v4643
    %v5364 = vpack.c.b16 %v4650, %v4644
    %v5365 = vpack.c.b16 %v4651, %v4645
    %v5366 = vpack.c.b16 %v4652, %v4646
    %v5367 = vpack.c.b16 %v4659, %v4653
    %v5368 = vpack.c.b16 %v4660, %v4654
    %v5369 = vpack.c.b16 %v4661, %v4655
    %v5370 = vpack.c.b16 %v4662, %v4656
    %v5371 = vpack.c.b16 %v4663, %v4657
    %v5372 = vpack.c.b16 %v4664, %v4658
    %v5373 = vpack.c.b16 %v4671, %v4665
    %v5374 = vpack.c.b16 %v4672, %v4666
    %v5375 = vpack.c.b16 %v4673, %v4667
    %v5376 = vpack.c.b16 %v4674, %v4668
    %v5377 = vpack.c.b16 %v4675, %v4669
    %v5378 = vpack.c.b16 %v4676, %v4670
    %v5379 = vpack.c.b16 %v4683, %v4677
    %v5380 = vpack.c.b16 %v4684, %v4678
    %v5381 = vpack.c.b16 %v4685, %v4679
    %v5382 = vpack.c.b16 %v4686, %v4680
    %v5383 = vpack.c.b16 %v4687, %v4681
    %v5384 = vpack.c.b16 %v4688, %v4682
    %v5385 = vpack.c.b16 %v4695, %v4689
    %v5386 = vpack.c.b16 %v4696, %v4690
    %v5387 = vpack.c.b16 %v4697, %v4691
    %v5388 = vpack.c.b16 %v4698, %v4692
    %v5389 = vpack.c.b16 %v4699, %v4693
    %v5390 = vpack.c.b16 %v4700, %v4694
    %v5391 = vpack.c.b16 %v4707, %v4701
    %v5392 = vpack.c.b16 %v4708, %v4702
    %v5393 = vpack.c.b16 %v4709, %v4703
    %v5394 = vpack.c.b16 %v4710, %v4704
    %v5395 = vpack.c.b16 %v4711, %v4705
    %v5396 = vpack.c.b16 %v4712, %v4706
    %v5397 = vpack.c.b16 %v4719, %v4713
    %v5398 = vpack.c.b16 %v4720, %v4714
    %v5399 = vpack.c.b16 %v4721, %v4715
    %v5400 = vpack.c.b16 %v4722, %v4716
    %v5401 = vpack.c.b16 %v4723, %v4717
    %v5402 = vpack.c.b16 %v4724, %v4718
    %v5403 = vpack.c.b16 %v4731, %v4725
    %v5404 = vpack.c.b16 %v4732, %v4726
    %v5405 = vpack.c.b16 %v4733, %v4727
    %v5406 = vpack.c.b16 %v4734, %v4728
    %v5407 = vpack.c.b16 %v4735, %v4729
    %v5408 = vpack.c.b16 %v4736, %v4730
    %v5409 = vpack.c.b16 %v4743, %v4737
    %v5410 = vpack.c.b16 %v4744, %v4738
    %v5411 = vpack.c.b16 %v4745, %v4739
    %v5412 = vpack.c.b16 %v4746, %v4740
    %v5413 = vpack.c.b16 %v4747, %v4741
    %v5414 = vpack.c.b16 %v4748, %v4742
    %v5415 = vpack.c.b16 %v4755, %v4749
    %v5416 = vpack.c.b16 %v4756, %v4750
    %v5417 = vpack.c.b16 %v4757, %v4751
    %v5418 = vpack.c.b16 %v4758, %v4752
    %v5419 = vpack.c.b16 %v4759, %v4753
    %v5420 = vpack.c.b16 %v4760, %v4754
    %v5421 = vpack.c.b16 %v4767, %v4761
    %v5422 = vpack.c.b16 %v4768, %v4762
    %v5423 = vpack.c.b16 %v4769, %v4763
    %v5424 = vpack.c.b16 %v4770, %v4764
    %v5425 = vpack.c.b16 %v4771, %v4765
    %v5426 = vpack.c.b16 %v4772, %v4766
    %v5427 = vpack.c.b16 %v4779, %v4773
    %v5428 = vpack.c.b16 %v4780, %v4774
    %v5429 = vpack.c.b16 %v4781, %v4775
    %v5430 = vpack.c.b16 %v4782, %v4776
    %v5431 = vpack.c.b16 %v4783, %v4777
    %v5432 = vpack.c.b16 %v4784, %v4778
    %v5433 = vpack.c.b16 %v4791, %v4785
    %v5434 = vpack.c.b16 %v4792, %v4786
    %v5435 = vpack.c.b16 %v4793, %v4787
    %v5436 = vpack.c.b16 %v4794, %v4788
    %v5437 = vpack.c.b16 %v4795, %v4789
    %v5438 = vpack.c.b16 %v4796, %v4790
    %v5439 = vpack.c.b16 %v4803, %v4797
    %v5440 = vpack.c.b16 %v4804, %v4798
    %v5441 = vpack.c.b16 %v4805, %v4799
    %v5442 = vpack.c.b16 %v4806, %v4800
    %v5443 = vpack.c.b16 %v4807, %v4801
    %v5444 = vpack.c.b16 %v4808, %v4802
    %v5445 = vpack.c.b16 %v4815, %v4809
    %v5446 = vpack.c.b16 %v4816, %v4810
    %v5447 = vpack.c.b16 %v4817, %v4811
    %v5448 = vpack.c.b16 %v4818, %v4812
    %v5449 = vpack.c.b16 %v4819, %v4813
    %v5450 = vpack.c.b16 %v4820, %v4814
    %v5451 = vpack.c.b16 %v4827, %v4821
    %v5452 = vpack.c.b16 %v4828, %v4822
    %v5453 = vpack.c.b16 %v4829, %v4823
    %v5454 = vpack.c.b16 %v4830, %v4824
    %v5455 = vpack.c.b16 %v4831, %v4825
    %v5456 = vpack.c.b16 %v4832, %v4826
    %v5457 = vpack.c.b16 %v4839, %v4833
    %v5458 = vpack.c.b16 %v4840, %v4834
    %v5459 = vpack.c.b16 %v4841, %v4835
    %v5460 = vpack.c.b16 %v4842, %v4836
    %v5461 = vpack.c.b16 %v4843, %v4837
    %v5462 = vpack.c.b16 %v4844, %v4838
    %v5463 = vpack.c.b16 %v4851, %v4845
    %v5464 = vpack.c.b16 %v4852, %v4846
    %v5465 = vpack.c.b16 %v4853, %v4847
    %v5466 = vpack.c.b16 %v4854, %v4848
    %v5467 = vpack.c.b16 %v4855, %v4849
    %v5468 = vpack.c.b16 %v4856, %v4850
    %v5469 = vpack.c.b16 %v4863, %v4857
    %v5470 = vpack.c.b16 %v4864, %v4858
    %v5471 = vpack.c.b16 %v4865, %v4859
    %v5472 = vpack.c.b16 %v4866, %v4860
    %v5473 = vpack.c.b16 %v4867, %v4861
    %v5474 = vpack.c.b16 %v4868, %v4862
    %v5475 = vpack.c.b16 %v4875, %v4869
    %v5476 = vpack.c.b16 %v4876, %v4870
    %v5477 = vpack.c.b16 %v4877, %v4871
    %v5478 = vpack.c.b16 %v4878, %v4872
    %v5479 = vpack.c.b16 %v4879, %v4873
    %v5480 = vpack.c.b16 %v4880, %v4874
    %v5481 = vpack.c.b16 %v4887, %v4881
    %v5482 = vpack.c.b16 %v4888, %v4882
    %v5483 = vpack.c.b16 %v4889, %v4883
    %v5484 = vpack.c.b16 %v4890, %v4884
    %v5485 = vpack.c.b16 %v4891, %v4885
    %v5486 = vpack.c.b16 %v4892, %v4886
    %v5487 = vpack.c.b16 %v4899, %v4893
    %v5488 = vpack.c.b16 %v4900, %v4894
    %v5489 = vpack.c.b16 %v4901, %v4895
    %v5490 = vpack.c.b16 %v4902, %v4896
    %v5491 = vpack.c.b16 %v4903, %v4897
    %v5492 = vpack.c.b16 %v4904, %v4898
    %v5493 = vpack.c.b16 %v4911, %v4905
    %v5494 = vpack.c.b16 %v4912, %v4906
    %v5495 = vpack.c.b16 %v4913, %v4907
    %v5496 = vpack.c.b16 %v4914, %v4908
    %v5497 = vpack.c.b16 %v4915, %v4909
    %v5498 = vpack.c.b16 %v4916, %v4910
    %v5499 = vpack.c.b16 %v4923, %v4917
    %v5500 = vpack.c.b16 %v4924, %v4918
    %v5501 = vpack.c.b16 %v4925, %v4919
    %v5502 = vpack.c.b16 %v4926, %v4920
    %v5503 = vpack.c.b16 %v4927, %v4921
    %v5504 = vpack.c.b16 %v4928, %v4922
    %v5505 = vpack.c.b16 %v4935, %v4929
    %v5506 = vpack.c.b16 %v4936, %v4930
    %v5507 = vpack.c.b16 %v4937, %v4931
    %v5508 = vpack.c.b16 %v4938, %v4932
    %v5509 = vpack.c.b16 %v4939, %v4933
    %v5510 = vpack.c.b16 %v4940, %v4934
    %v5511 = vpack.c.b16 %v4947, %v4941
    %v5512 = vpack.c.b16 %v4948, %v4942
    %v5513 = vpack.c.b16 %v4949, %v4943
    %v5514 = vpack.c.b16 %v4950, %v4944
    %v5515 = vpack.c.b16 %v4951, %v4945
    %v5516 = vpack.c.b16 %v4952, %v4946
    %v5517 = vpack.c.b16 %v4959, %v4953
    %v5518 = vpack.c.b16 %v4960, %v4954
    %v5519 = vpack.c.b16 %v4961, %v4955
    %v5520 = vpack.c.b16 %v4962, %v4956
    %v5521 = vpack.c.b16 %v4963, %v4957
    %v5522 = vpack.c.b16 %v4964, %v4958
    %v5523 = vpack.c.b16 %v4971, %v4965
    %v5524 = vpack.c.b16 %v4972, %v4966
    %v5525 = vpack.c.b16 %v4973, %v4967
    %v5526 = vpack.c.b16 %v4974, %v4968
    %v5527 = vpack.c.b16 %v4975, %v4969
    %v5528 = vpack.c.b16 %v4976, %v4970
    %v5529 = vpack.c.b16 %v4983, %v4977
    %v5530 = vpack.c.b16 %v4984, %v4978
    %v5531 = vpack.c.b16 %v4985, %v4979
    %v5532 = vpack.c.b16 %v4986, %v4980
    %v5533 = vpack.c.b16 %v4987, %v4981
    %v5534 = vpack.c.b16 %v4988, %v4982
    %v5535 = vpack.c.b16 %v4995, %v4989
    %v5536 = vpack.c.b16 %v4996, %v4990
    %v5537 = vpack.c.b16 %v4997, %v4991
    %v5538 = vpack.c.b16 %v4998, %v4992
    %v5539 = vpack.c.b16 %v4999, %v4993
    %v5540 = vpack.c.b16 %v5000, %v4994
    %v5541 = vpack.c.b16 %v5007, %v5001
    %v5542 = vpack.c.b16 %v5008, %v5002
    %v5543 = vpack.c.b16 %v5009, %v5003
    %v5544 = vpack.c.b16 %v5010, %v5004
    %v5545 = vpack.c.b16 %v5011, %v5005
    %v5546 = vpack.c.b16 %v5012, %v5006
    %v5547 = vpack.c.b16 %v5019, %v5013
    %v5548 = vpack.c.b16 %v5020, %v5014
    %v5549 = vpack.c.b16 %v5021, %v5015
    %v5550 = vpack.c.b16 %v5022, %v5016
    %v5551 = vpack.c.b16 %v5023, %v5017
    %v5552 = vpack.c.b16 %v5024, %v5018
    %v5553 = vpack.c.b16 %v5031, %v5025
    %v5554 = vpack.c.b16 %v5032, %v5026
    %v5555 = vpack.c.b16 %v5033, %v5027
    %v5556 = vpack.c.b16 %v5034, %v5028
    %v5557 = vpack.c.b16 %v5035, %v5029
    %v5558 = vpack.c.b16 %v5036, %v5030
    %v5559 = vpack.c.b16 %v5043, %v5037
    %v5560 = vpack.c.b16 %v5044, %v5038
    %v5561 = vpack.c.b16 %v5045, %v5039
    %v5562 = vpack.c.b16 %v5046, %v5040
    %v5563 = vpack.c.b16 %v5047, %v5041
    %v5564 = vpack.c.b16 %v5048, %v5042
    %v5565 = vpack.c.b16 %v5055, %v5049
    %v5566 = vpack.c.b16 %v5056, %v5050
    %v5567 = vpack.c.b16 %v5057, %v5051
    %v5568 = vpack.c.b16 %v5058, %v5052
    %v5569 = vpack.c.b16 %v5059, %v5053
    %v5570 = vpack.c.b16 %v5060, %v5054
    %v5571 = vpack.c.b16 %v5067, %v5061
    %v5572 = vpack.c.b16 %v5068, %v5062
    %v5573 = vpack.c.b16 %v5069, %v5063
    %v5574 = vpack.c.b16 %v5070, %v5064
    %v5575 = vpack.c.b16 %v5071, %v5065
    %v5576 = vpack.c.b16 %v5072, %v5066
    %v5577 = vpack.c.b16 %v5079, %v5073
    %v5578 = vpack.c.b16 %v5080, %v5074
    %v5579 = vpack.c.b16 %v5081, %v5075
    %v5580 = vpack.c.b16 %v5082, %v5076
    %v5581 = vpack.c.b16 %v5083, %v5077
    %v5582 = vpack.c.b16 %v5084, %v5078
    %v5583 = vpack.c.b16 %v5091, %v5085
    %v5584 = vpack.c.b16 %v5092, %v5086
    %v5585 = vpack.c.b16 %v5093, %v5087
    %v5586 = vpack.c.b16 %v5094, %v5088
    %v5587 = vpack.c.b16 %v5095, %v5089
    %v5588 = vpack.c.b16 %v5096, %v5090
    %v5589 = vpack.c.b16 %v5103, %v5097
    %v5590 = vpack.c.b16 %v5104, %v5098
    %v5591 = vpack.c.b16 %v5105, %v5099
    %v5592 = vpack.c.b16 %v5106, %v5100
    %v5593 = vpack.c.b16 %v5107, %v5101
    %v5594 = vpack.c.b16 %v5108, %v5102
    %v5595 = vpack.c.b16 %v5115, %v5109
    %v5596 = vpack.c.b16 %v5116, %v5110
    %v5597 = vpack.c.b16 %v5117, %v5111
    %v5598 = vpack.c.b16 %v5118, %v5112
    %v5599 = vpack.c.b16 %v5119, %v5113
    %v5600 = vpack.c.b16 %v5120, %v5114
    %v5601 = vpack.c.b16 %v5127, %v5121
    %v5602 = vpack.c.b16 %v5128, %v5122
    %v5603 = vpack.c.b16 %v5129, %v5123
    %v5604 = vpack.c.b16 %v5130, %v5124
    %v5605 = vpack.c.b16 %v5131, %v5125
    %v5606 = vpack.c.b16 %v5132, %v5126
    %v5607 = vpack.c.b16 %v5139, %v5133
    %v5608 = vpack.c.b16 %v5140, %v5134
    %v5609 = vpack.c.b16 %v5141, %v5135
    %v5610 = vpack.c.b16 %v5142, %v5136
    %v5611 = vpack.c.b16 %v5143, %v5137
    %v5612 = vpack.c.b16 %v5144, %v5138
    %v5613 = vpack.c.b16 %v5151, %v5145
    %v5614 = vpack.c.b16 %v5152, %v5146
    %v5615 = vpack.c.b16 %v5153, %v5147
    %v5616 = vpack.c.b16 %v5154, %v5148
    %v5617 = vpack.c.b16 %v5155, %v5149
    %v5618 = vpack.c.b16 %v5156, %v5150
    %v5619 = vpack.c.b16 %v5163, %v5157
    %v5620 = vpack.c.b16 %v5164, %v5158
    %v5621 = vpack.c.b16 %v5165, %v5159
    %v5622 = vpack.c.b16 %v5166, %v5160
    %v5623 = vpack.c.b16 %v5167, %v5161
    %v5624 = vpack.c.b16 %v5168, %v5162
    %v5625 = vpack.c.b16 %v5175, %v5169
    %v5626 = vpack.c.b16 %v5176, %v5170
    %v5627 = vpack.c.b16 %v5177, %v5171
    %v5628 = vpack.c.b16 %v5178, %v5172
    %v5629 = vpack.c.b16 %v5179, %v5173
    %v5630 = vpack.c.b16 %v5180, %v5174
    %v5631 = vpack.c.b16 %v5187, %v5181
    %v5632 = vpack.c.b16 %v5188, %v5182
    %v5633 = vpack.c.b16 %v5189, %v5183
    %v5634 = vpack.c.b16 %v5190, %v5184
    %v5635 = vpack.c.b16 %v5191, %v5185
    %v5636 = vpack.c.b16 %v5192, %v5186
    %v5637 = vpack.c.b16 %v5199, %v5193
    %v5638 = vpack.c.b16 %v5200, %v5194
    %v5639 = vpack.c.b16 %v5201, %v5195
    %v5640 = vpack.c.b16 %v5202, %v5196
    %v5641 = vpack.c.b16 %v5203, %v5197
    %v5642 = vpack.c.b16 %v5204, %v5198
    %v5643 = vpack.c.b16 %v5211, %v5205
    %v5644 = vpack.c.b16 %v5212, %v5206
    %v5645 = vpack.c.b16 %v5213, %v5207
    %v5646 = vpack.c.b16 %v5214, %v5208
    %v5647 = vpack.c.b16 %v5215, %v5209
    %v5648 = vpack.c.b16 %v5216, %v5210
    %v5649 = vpack.c.b16 %v5223, %v5217
    %v5650 = vpack.c.b16 %v5224, %v5218
    %v5651 = vpack.c.b16 %v5225, %v5219
    %v5652 = vpack.c.b16 %v5226, %v5220
    %v5653 = vpack.c.b16 %v5227, %v5221
    %v5654 = vpack.c.b16 %v5228, %v5222
    %v5655 = vpack.c.b16 %v5235, %v5229
    %v5656 = vpack.c.b16 %v5236, %v5230
    %v5657 = vpack.c.b16 %v5237, %v5231
    %v5658 = vpack.c.b16 %v5238, %v5232
    %v5659 = vpack.c.b16 %v5239, %v5233
    %v5660 = vpack.c.b16 %v5240, %v5234
    %v5661 = vpack.c.b16 %v5247, %v5241
    %v5662 = vpack.c.b16 %v5248, %v5242
    %v5663 = vpack.c.b16 %v5249, %v5243
    %v5664 = vpack.c.b16 %v5250, %v5244
    %v5665 = vpack.c.b16 %v5251, %v5245
    %v5666 = vpack.c.b16 %v5252, %v5246
    %v5667 = vpack.c.b16 %v5259, %v5253
    %v5668 = vpack.c.b16 %v5260, %v5254
    %v5669 = vpack.c.b16 %v5261, %v5255
    %v5670 = vpack.c.b16 %v5262, %v5256
    %v5671 = vpack.c.b16 %v5263, %v5257
    %v5672 = vpack.c.b16 %v5264, %v5258
    %v5673 = vpack.c.b16 %v5271, %v5265
    %v5674 = vpack.c.b16 %v5272, %v5266
    %v5675 = vpack.c.b16 %v5273, %v5267
    %v5676 = vpack.c.b16 %v5274, %v5268
    %v5677 = vpack.c.b16 %v5275, %v5269
    %v5678 = vpack.c.b16 %v5276, %v5270
    %v5679 = vpack.c.b16 %v5283, %v5277
    %v5680 = vpack.c.b16 %v5284, %v5278
    %v5681 = vpack.c.b16 %v5285, %v5279
    %v5682 = vpack.c.b16 %v5286, %v5280
    %v5683 = vpack.c.b16 %v5287, %v5281
    %v5684 = vpack.c.b16 %v5288, %v5282
    %v5685 = vpack.c.b16 %v5295, %v5289
    %v5686 = vpack.c.b16 %v5296, %v5290
    %v5687 = vpack.c.b16 %v5297, %v5291
    %v5688 = vpack.c.b16 %v5298, %v5292
    %v5689 = vpack.c.b16 %v5299, %v5293
    %v5690 = vpack.c.b16 %v5300, %v5294
    %v5691 = vpack.c.b16 %v5307, %v5301
    %v5692 = vpack.c.b16 %v5308, %v5302
    %v5693 = vpack.c.b16 %v5309, %v5303
    %v5694 = vpack.c.b16 %v5310, %v5304
    %v5695 = vpack.c.b16 %v5311, %v5305
    %v5696 = vpack.c.b16 %v5312, %v5306
    %6081 = vmatprep.subr.bf16.mxu0 %v5314
    %6082 = vmatpush1.bf16.msra.mxu0 %v5313
    %6083 = vmatprep.subr.bf16.mxu0 %v5320
    %6084 = vmatpush1.bf16.msra.mxu0 %v5319
    %6085 = vmatprep.subr.bf16.mxu0 %v5326
    %6086 = vmatpush1.bf16.msra.mxu0 %v5325
    %6087 = vmatprep.subr.bf16.mxu0 %v5332
    %6088 = vmatpush1.bf16.msra.mxu0 %v5331
    %6089 = vmatprep.subr.bf16.mxu0 %v5338
    %6090 = vmatpush1.bf16.msra.mxu0 %v5337
    %6091 = vmatprep.subr.bf16.mxu0 %v5344
    %6092 = vmatpush1.bf16.msra.mxu0 %v5343
    %6093 = vmatprep.subr.bf16.mxu0 %v5350
    %6094 = vmatpush1.bf16.msra.mxu0 %v5349
    %6095 = vmatprep.subr.bf16.mxu0 %v5356
    %6096 = vmatpush1.bf16.msra.mxu0 %v5355
    %6097 = vmatprep.subr.bf16.mxu0 %v5362
    %6098 = vmatpush1.bf16.msra.mxu0 %v5361
    %6099 = vmatprep.subr.bf16.mxu0 %v5368
    %6100 = vmatpush1.bf16.msra.mxu0 %v5367
    %6101 = vmatprep.subr.bf16.mxu0 %v5374
    %6102 = vmatpush1.bf16.msra.mxu0 %v5373
    %6103 = vmatprep.subr.bf16.mxu0 %v5380
    %6104 = vmatpush1.bf16.msra.mxu0 %v5379
    %6105 = vmatprep.subr.bf16.mxu0 %v5386
    %6106 = vmatpush1.bf16.msra.mxu0 %v5385
    %6107 = vmatprep.subr.bf16.mxu0 %v5392
    %6108 = vmatpush1.bf16.msra.mxu0 %v5391
    %6109 = vmatprep.subr.bf16.mxu0 %v5398
    %6110 = vmatpush1.bf16.msra.mxu0 %v5397
    %6111 = vmatprep.subr.bf16.mxu0 %v5404
    %6112 = vmatpush1.bf16.msra.mxu0 %v5403
    %6113 = vmatprep.mubr.bf16.mxu0 %v106
    %6114 = vmatmul.mubr.bf16.gmra.mrb[0].mxu0 %v105
    %v6115 = vpop.f32.mrb[0].mxu0
    %v6116 = vadd.f32 0.0, %v6115
    %v6117 = vpop.f32.mrb[0].mxu0
    %v6118 = vadd.f32 0.0, %v6117
    %v6119 = vpop.f32.mrb[0].mxu0
    %v6120 = vadd.f32 0.0, %v6119
    %v6121 = vpop.f32.mrb[0].mxu0
    %v6122 = vadd.f32 0.0, %v6121
    %6123 = vmatprep.mubr.bf16.mxu0 %v114
    %6124 = vmatmul.mubr.bf16.gmra.mrb[0].mxu0 %v113
    %v6125 = vpop.f32.mrb[0].mxu0
    %v6126 = vadd.f32 0.0, %v6125
    %v6127 = vpop.f32.mrb[0].mxu0
    %v6128 = vadd.f32 0.0, %v6127
    %v6129 = vpop.f32.mrb[0].mxu0
    %v6130 = vadd.f32 0.0, %v6129
    %v6131 = vpop.f32.mrb[0].mxu0
    %v6132 = vadd.f32 0.0, %v6131
    %6133 = vdwg.mxu0
    %6134 = vmatprep.subr.bf16.mxu0 %v5410
    %6135 = vmatpush1.bf16.msra.mxu0 %v5409
    %6136 = vmatprep.subr.bf16.mxu0 %v5416
    %6137 = vmatpush1.bf16.msra.mxu0 %v5415
    %6138 = vmatprep.subr.bf16.mxu0 %v5422
    %6139 = vmatpush1.bf16.msra.mxu0 %v5421
    %6140 = vmatprep.subr.bf16.mxu0 %v5428
    %6141 = vmatpush1.bf16.msra.mxu0 %v5427
    %6142 = vmatprep.subr.bf16.mxu0 %v5434
    %6143 = vmatpush1.bf16.msra.mxu0 %v5433
    %6144 = vmatprep.subr.bf16.mxu0 %v5440
    %6145 = vmatpush1.bf16.msra.mxu0 %v5439
    %6146 = vmatprep.subr.bf16.mxu0 %v5446
    %6147 = vmatpush1.bf16.msra.mxu0 %v5445
    %6148 = vmatprep.subr.bf16.mxu0 %v5452
    %6149 = vmatpush1.bf16.msra.mxu0 %v5451
    %6150 = vmatprep.subr.bf16.mxu0 %v5458
    %6151 = vmatpush1.bf16.msra.mxu0 %v5457
    %6152 = vmatprep.subr.bf16.mxu0 %v5464
    %6153 = vmatpush1.bf16.msra.mxu0 %v5463
    %6154 = vmatprep.subr.bf16.mxu0 %v5470
    %6155 = vmatpush1.bf16.msra.mxu0 %v5469
    %6156 = vmatprep.subr.bf16.mxu0 %v5476
    %6157 = vmatpush1.bf16.msra.mxu0 %v5475
    %6158 = vmatprep.subr.bf16.mxu0 %v5482
    %6159 = vmatpush1.bf16.msra.mxu0 %v5481
    %6160 = vmatprep.subr.bf16.mxu0 %v5488
    %6161 = vmatpush1.bf16.msra.mxu0 %v5487
    %6162 = vmatprep.subr.bf16.mxu0 %v5494
    %6163 = vmatpush1.bf16.msra.mxu0 %v5493
    %6164 = vmatprep.subr.bf16.mxu0 %v5500
    %6165 = vmatpush1.bf16.msra.mxu0 %v5499
    %6166 = vmatprep.mubr.bf16.mxu0 %v108
    %6167 = vmatmul.mubr.bf16.gmra.mrb[0].mxu0 %v107
    %v6168 = vpop.f32.mrb[0].mxu0
    %v6169 = vadd.f32 %v6116, %v6168
    %v6170 = vpop.f32.mrb[0].mxu0
    %v6171 = vadd.f32 %v6118, %v6170
    %v6172 = vpop.f32.mrb[0].mxu0
    %v6173 = vadd.f32 %v6120, %v6172
    %v6174 = vpop.f32.mrb[0].mxu0
    %v6175 = vadd.f32 %v6122, %v6174
    %6176 = vmatprep.mubr.bf16.mxu0 %v116
    %6177 = vmatmul.mubr.bf16.gmra.mrb[0].mxu0 %v115
    %v6178 = vpop.f32.mrb[0].mxu0
    %v6179 = vadd.f32 %v6126, %v6178
    %v6180 = vpop.f32.mrb[0].mxu0
    %v6181 = vadd.f32 %v6128, %v6180
    %v6182 = vpop.f32.mrb[0].mxu0
    %v6183 = vadd.f32 %v6130, %v6182
    %v6184 = vpop.f32.mrb[0].mxu0
    %v6185 = vadd.f32 %v6132, %v6184
    %6186 = vdwg.mxu0
    %6187 = vmatprep.subr.bf16.mxu0 %v5506
    %6188 = vmatpush1.bf16.msra.mxu0 %v5505
    %6189 = vmatprep.subr.bf16.mxu0 %v5512
    %6190 = vmatpush1.bf16.msra.mxu0 %v5511
    %6191 = vmatprep.subr.bf16.mxu0 %v5518
    %6192 = vmatpush1.bf16.msra.mxu0 %v5517
    %6193 = vmatprep.subr.bf16.mxu0 %v5524
    %6194 = vmatpush1.bf16.msra.mxu0 %v5523
    %6195 = vmatprep.subr.bf16.mxu0 %v5530
    %6196 = vmatpush1.bf16.msra.mxu0 %v5529
    %6197 = vmatprep.subr.bf16.mxu0 %v5536
    %6198 = vmatpush1.bf16.msra.mxu0 %v5535
    %6199 = vmatprep.subr.bf16.mxu0 %v5542
    %6200 = vmatpush1.bf16.msra.mxu0 %v5541
    %6201 = vmatprep.subr.bf16.mxu0 %v5548
    %6202 = vmatpush1.bf16.msra.mxu0 %v5547
    %6203 = vmatprep.subr.bf16.mxu0 %v5554
    %6204 = vmatpush1.bf16.msra.mxu0 %v5553
    %6205 = vmatprep.subr.bf16.mxu0 %v5560
    %6206 = vmatpush1.bf16.msra.mxu0 %v5559
    %6207 = vmatprep.subr.bf16.mxu0 %v5566
    %6208 = vmatpush1.bf16.msra.mxu0 %v5565
    %6209 = vmatprep.subr.bf16.mxu0 %v5572
    %6210 = vmatpush1.bf16.msra.mxu0 %v5571
    %6211 = vmatprep.subr.bf16.mxu0 %v5578
    %6212 = vmatpush1.bf16.msra.mxu0 %v5577
    %6213 = vmatprep.subr.bf16.mxu0 %v5584
    %6214 = vmatpush1.bf16.msra.mxu0 %v5583
    %6215 = vmatprep.subr.bf16.mxu0 %v5590
    %6216 = vmatpush1.bf16.msra.mxu0 %v5589
    %6217 = vmatprep.subr.bf16.mxu0 %v5596
    %6218 = vmatpush1.bf16.msra.mxu0 %v5595
    %6219 = vmatprep.mubr.bf16.mxu0 %v110
    %6220 = vmatmul.mubr.bf16.gmra.mrb[0].mxu0 %v109
    %v6221 = vpop.f32.mrb[0].mxu0
    %v6222 = vadd.f32 %v6169, %v6221
    %v6223 = vpop.f32.mrb[0].mxu0
    %v6224 = vadd.f32 %v6171, %v6223
    %v6225 = vpop.f32.mrb[0].mxu0
    %v6226 = vadd.f32 %v6173, %v6225
    %v6227 = vpop.f32.mrb[0].mxu0
    %v6228 = vadd.f32 %v6175, %v6227
    %6229 = vmatprep.mubr.bf16.mxu0 %v118
    %6230 = vmatmul.mubr.bf16.gmra.mrb[0].mxu0 %v117
    %v6231 = vpop.f32.mrb[0].mxu0
    %v6232 = vadd.f32 %v6179, %v6231
    %v6233 = vpop.f32.mrb[0].mxu0
    %v6234 = vadd.f32 %v6181, %v6233
    %v6235 = vpop.f32.mrb[0].mxu0
    %v6236 = vadd.f32 %v6183, %v6235
    %v6237 = vpop.f32.mrb[0].mxu0
    %v6238 = vadd.f32 %v6185, %v6237
    %6239 = vdwg.mxu0
    %6240 = vmatprep.subr.bf16.mxu0 %v5602
    %6241 = vmatpush1.bf16.msra.mxu0 %v5601
    %6242 = vmatprep.subr.bf16.mxu0 %v5608
    %6243 = vmatpush1.bf16.msra.mxu0 %v5607
    %6244 = vmatprep.subr.bf16.mxu0 %v5614
    %6245 = vmatpush1.bf16.msra.mxu0 %v5613
    %6246 = vmatprep.subr.bf16.mxu0 %v5620
    %6247 = vmatpush1.bf16.msra.mxu0 %v5619
    %6248 = vmatprep.subr.bf16.mxu0 %v5626
    %6249 = vmatpush1.bf16.msra.mxu0 %v5625
    %6250 = vmatprep.subr.bf16.mxu0 %v5632
    %6251 = vmatpush1.bf16.msra.mxu0 %v5631
    %6252 = vmatprep.subr.bf16.mxu0 %v5638
    %6253 = vmatpush1.bf16.msra.mxu0 %v5637
    %6254 = vmatprep.subr.bf16.mxu0 %v5644
    %6255 = vmatpush1.bf16.msra.mxu0 %v5643
    %6256 = vmatprep.subr.bf16.mxu0 %v5650
    %6257 = vmatpush1.bf16.msra.mxu0 %v5649
    %6258 = vmatprep.subr.bf16.mxu0 %v5656
    %6259 = vmatpush1.bf16.msra.mxu0 %v5655
    %6260 = vmatprep.subr.bf16.mxu0 %v5662
    %6261 = vmatpush1.bf16.msra.mxu0 %v5661
    %6262 = vmatprep.subr.bf16.mxu0 %v5668
    %6263 = vmatpush1.bf16.msra.mxu0 %v5667
    %6264 = vmatprep.subr.bf16.mxu0 %v5674
    %6265 = vmatpush1.bf16.msra.mxu0 %v5673
    %6266 = vmatprep.subr.bf16.mxu0 %v5680
    %6267 = vmatpush1.bf16.msra.mxu0 %v5679
    %6268 = vmatprep.subr.bf16.mxu0 %v5686
    %6269 = vmatpush1.bf16.msra.mxu0 %v5685
    %6270 = vmatprep.subr.bf16.mxu0 %v5692
    %6271 = vmatpush1.bf16.msra.mxu0 %v5691
    %6272 = vmatprep.mubr.bf16.mxu0 %v112
    %6273 = vmatmul.mubr.bf16.gmra.mrb[0].mxu0 %v111
    %v6274 = vpop.f32.mrb[0].mxu0
    %v6275 = vadd.f32 %v6222, %v6274
    %v6276 = vpop.f32.mrb[0].mxu0
    %v6277 = vadd.f32 %v6224, %v6276
    %v6278 = vpop.f32.mrb[0].mxu0
    %v6279 = vadd.f32 %v6226, %v6278
    %v6280 = vpop.f32.mrb[0].mxu0
    %v6281 = vadd.f32 %v6228, %v6280
    %6282 = vmatprep.mubr.bf16.mxu0 %v120
    %6283 = vmatmul.mubr.bf16.gmra.mrb[0].mxu0 %v119
    %v6284 = vpop.f32.mrb[0].mxu0
    %v6285 = vadd.f32 %v6232, %v6284
    %v6286 = vpop.f32.mrb[0].mxu0
    %v6287 = vadd.f32 %v6234, %v6286
    %v6288 = vpop.f32.mrb[0].mxu0
    %v6289 = vadd.f32 %v6236, %v6288
    %v6290 = vpop.f32.mrb[0].mxu0
    %v6291 = vadd.f32 %v6238, %v6290
    %6292 = vdwg.mxu0
    %6293 = vmatprep.subr.bf16.mxu0 %v5316
    %6294 = vmatpush1.bf16.msra.mxu0 %v5315
    %6295 = vmatprep.subr.bf16.mxu0 %v5322
    %6296 = vmatpush1.bf16.msra.mxu0 %v5321
    %6297 = vmatprep.subr.bf16.mxu0 %v5328
    %6298 = vmatpush1.bf16.msra.mxu0 %v5327
    %6299 = vmatprep.subr.bf16.mxu0 %v5334
    %6300 = vmatpush1.bf16.msra.mxu0 %v5333
    %6301 = vmatprep.subr.bf16.mxu0 %v5340
    %6302 = vmatpush1.bf16.msra.mxu0 %v5339
    %6303 = vmatprep.subr.bf16.mxu0 %v5346
    %6304 = vmatpush1.bf16.msra.mxu0 %v5345
    %6305 = vmatprep.subr.bf16.mxu0 %v5352
    %6306 = vmatpush1.bf16.msra.mxu0 %v5351
    %6307 = vmatprep.subr.bf16.mxu0 %v5358
    %6308 = vmatpush1.bf16.msra.mxu0 %v5357
    %6309 = vmatprep.subr.bf16.mxu0 %v5364
    %6310 = vmatpush1.bf16.msra.mxu0 %v5363
    %6311 = vmatprep.subr.bf16.mxu0 %v5370
    %6312 = vmatpush1.bf16.msra.mxu0 %v5369
    %6313 = vmatprep.subr.bf16.mxu0 %v5376
    %6314 = vmatpush1.bf16.msra.mxu0 %v5375
    %6315 = vmatprep.subr.bf16.mxu0 %v5382
    %6316 = vmatpush1.bf16.msra.mxu0 %v5381
    %6317 = vmatprep.subr.bf16.mxu0 %v5388
    %6318 = vmatpush1.bf16.msra.mxu0 %v5387
    %6319 = vmatprep.subr.bf16.mxu0 %v5394
    %6320 = vmatpush1.bf16.msra.mxu0 %v5393
    %6321 = vmatprep.subr.bf16.mxu0 %v5400
    %6322 = vmatpush1.bf16.msra.mxu0 %v5399
    %6323 = vmatprep.subr.bf16.mxu0 %v5406
    %6324 = vmatpush1.bf16.msra.mxu0 %v5405
    %6325 = vmatprep.mubr.bf16.mxu0 %v106
    %6326 = vmatmul.mubr.bf16.gmra.mrb[0].mxu0 %v105
    %v6327 = vpop.f32.mrb[0].mxu0
    %v6328 = vadd.f32 0.0, %v6327
    %v6329 = vpop.f32.mrb[0].mxu0
    %v6330 = vadd.f32 0.0, %v6329
    %v6331 = vpop.f32.mrb[0].mxu0
    %v6332 = vadd.f32 0.0, %v6331
    %v6333 = vpop.f32.mrb[0].mxu0
    %v6334 = vadd.f32 0.0, %v6333
    %6335 = vmatprep.mubr.bf16.mxu0 %v114
    %6336 = vmatmul.mubr.bf16.gmra.mrb[0].mxu0 %v113
    %v6337 = vpop.f32.mrb[0].mxu0
    %v6338 = vadd.f32 0.0, %v6337
    %v6339 = vpop.f32.mrb[0].mxu0
    %v6340 = vadd.f32 0.0, %v6339
    %v6341 = vpop.f32.mrb[0].mxu0
    %v6342 = vadd.f32 0.0, %v6341
    %v6343 = vpop.f32.mrb[0].mxu0
    %v6344 = vadd.f32 0.0, %v6343
    %6345 = vdwg.mxu0
    %6346 = vmatprep.subr.bf16.mxu0 %v5412
    %6347 = vmatpush1.bf16.msra.mxu0 %v5411
    %6348 = vmatprep.subr.bf16.mxu0 %v5418
    %6349 = vmatpush1.bf16.msra.mxu0 %v5417
    %6350 = vmatprep.subr.bf16.mxu0 %v5424
    %6351 = vmatpush1.bf16.msra.mxu0 %v5423
    %6352 = vmatprep.subr.bf16.mxu0 %v5430
    %6353 = vmatpush1.bf16.msra.mxu0 %v5429
    %6354 = vmatprep.subr.bf16.mxu0 %v5436
    %6355 = vmatpush1.bf16.msra.mxu0 %v5435
    %6356 = vmatprep.subr.bf16.mxu0 %v5442
    %6357 = vmatpush1.bf16.msra.mxu0 %v5441
    %6358 = vmatprep.subr.bf16.mxu0 %v5448
    %6359 = vmatpush1.bf16.msra.mxu0 %v5447
    %6360 = vmatprep.subr.bf16.mxu0 %v5454
    %6361 = vmatpush1.bf16.msra.mxu0 %v5453
    %6362 = vmatprep.subr.bf16.mxu0 %v5460
    %6363 = vmatpush1.bf16.msra.mxu0 %v5459
    %6364 = vmatprep.subr.bf16.mxu0 %v5466
    %6365 = vmatpush1.bf16.msra.mxu0 %v5465
    %6366 = vmatprep.subr.bf16.mxu0 %v5472
    %6367 = vmatpush1.bf16.msra.mxu0 %v5471
    %6368 = vmatprep.subr.bf16.mxu0 %v5478
    %6369 = vmatpush1.bf16.msra.mxu0 %v5477
    %6370 = vmatprep.subr.bf16.mxu0 %v5484
    %6371 = vmatpush1.bf16.msra.mxu0 %v5483
    %6372 = vmatprep.subr.bf16.mxu0 %v5490
    %6373 = vmatpush1.bf16.msra.mxu0 %v5489
    %6374 = vmatprep.subr.bf16.mxu0 %v5496
    %6375 = vmatpush1.bf16.msra.mxu0 %v5495
    %6376 = vmatprep.subr.bf16.mxu0 %v5502
    %6377 = vmatpush1.bf16.msra.mxu0 %v5501
    %6378 = vmatprep.mubr.bf16.mxu0 %v108
    %6379 = vmatmul.mubr.bf16.gmra.mrb[0].mxu0 %v107
    %v6380 = vpop.f32.mrb[0].mxu0
    %v6381 = vadd.f32 %v6328, %v6380
    %v6382 = vpop.f32.mrb[0].mxu0
    %v6383 = vadd.f32 %v6330, %v6382
    %v6384 = vpop.f32.mrb[0].mxu0
    %v6385 = vadd.f32 %v6332, %v6384
    %v6386 = vpop.f32.mrb[0].mxu0
    %v6387 = vadd.f32 %v6334, %v6386
    %6388 = vmatprep.mubr.bf16.mxu0 %v116
    %6389 = vmatmul.mubr.bf16.gmra.mrb[0].mxu0 %v115
    %v6390 = vpop.f32.mrb[0].mxu0
    %v6391 = vadd.f32 %v6338, %v6390
    %v6392 = vpop.f32.mrb[0].mxu0
    %v6393 = vadd.f32 %v6340, %v6392
    %v6394 = vpop.f32.mrb[0].mxu0
    %v6395 = vadd.f32 %v6342, %v6394
    %v6396 = vpop.f32.mrb[0].mxu0
    %v6397 = vadd.f32 %v6344, %v6396
    %6398 = vdwg.mxu0
    %6399 = vmatprep.subr.bf16.mxu0 %v5508
    %6400 = vmatpush1.bf16.msra.mxu0 %v5507
    %6401 = vmatprep.subr.bf16.mxu0 %v5514
    %6402 = vmatpush1.bf16.msra.mxu0 %v5513
    %6403 = vmatprep.subr.bf16.mxu0 %v5520
    %6404 = vmatpush1.bf16.msra.mxu0 %v5519
    %6405 = vmatprep.subr.bf16.mxu0 %v5526
    %6406 = vmatpush1.bf16.msra.mxu0 %v5525
    %6407 = vmatprep.subr.bf16.mxu0 %v5532
    %6408 = vmatpush1.bf16.msra.mxu0 %v5531
    %6409 = vmatprep.subr.bf16.mxu0 %v5538
    %6410 = vmatpush1.bf16.msra.mxu0 %v5537
    %6411 = vmatprep.subr.bf16.mxu0 %v5544
    %6412 = vmatpush1.bf16.msra.mxu0 %v5543
    %6413 = vmatprep.subr.bf16.mxu0 %v5550
    %6414 = vmatpush1.bf16.msra.mxu0 %v5549
    %6415 = vmatprep.subr.bf16.mxu0 %v5556
    %6416 = vmatpush1.bf16.msra.mxu0 %v5555
    %6417 = vmatprep.subr.bf16.mxu0 %v5562
    %6418 = vmatpush1.bf16.msra.mxu0 %v5561
    %6419 = vmatprep.subr.bf16.mxu0 %v5568
    %6420 = vmatpush1.bf16.msra.mxu0 %v5567
    %6421 = vmatprep.subr.bf16.mxu0 %v5574
    %6422 = vmatpush1.bf16.msra.mxu0 %v5573
    %6423 = vmatprep.subr.bf16.mxu0 %v5580
    %6424 = vmatpush1.bf16.msra.mxu0 %v5579
    %6425 = vmatprep.subr.bf16.mxu0 %v5586
    %6426 = vmatpush1.bf16.msra.mxu0 %v5585
    %6427 = vmatprep.subr.bf16.mxu0 %v5592
    %6428 = vmatpush1.bf16.msra.mxu0 %v5591
    %6429 = vmatprep.subr.bf16.mxu0 %v5598
    %6430 = vmatpush1.bf16.msra.mxu0 %v5597
    %6431 = vmatprep.mubr.bf16.mxu0 %v110
    %6432 = vmatmul.mubr.bf16.gmra.mrb[0].mxu0 %v109
    %v6433 = vpop.f32.mrb[0].mxu0
    %v6434 = vadd.f32 %v6381, %v6433
    %v6435 = vpop.f32.mrb[0].mxu0
    %v6436 = vadd.f32 %v6383, %v6435
    %v6437 = vpop.f32.mrb[0].mxu0
    %v6438 = vadd.f32 %v6385, %v6437
    %v6439 = vpop.f32.mrb[0].mxu0
    %v6440 = vadd.f32 %v6387, %v6439
    %6441 = vmatprep.mubr.bf16.mxu0 %v118
    %6442 = vmatmul.mubr.bf16.gmra.mrb[0].mxu0 %v117
    %v6443 = vpop.f32.mrb[0].mxu0
    %v6444 = vadd.f32 %v6391, %v6443
    %v6445 = vpop.f32.mrb[0].mxu0
    %v6446 = vadd.f32 %v6393, %v6445
    %v6447 = vpop.f32.mrb[0].mxu0
    %v6448 = vadd.f32 %v6395, %v6447
    %v6449 = vpop.f32.mrb[0].mxu0
    %v6450 = vadd.f32 %v6397, %v6449
    %6451 = vdwg.mxu0
    %6452 = vmatprep.subr.bf16.mxu0 %v5604
    %6453 = vmatpush1.bf16.msra.mxu0 %v5603
    %6454 = vmatprep.subr.bf16.mxu0 %v5610
    %6455 = vmatpush1.bf16.msra.mxu0 %v5609
    %6456 = vmatprep.subr.bf16.mxu0 %v5616
    %6457 = vmatpush1.bf16.msra.mxu0 %v5615
    %6458 = vmatprep.subr.bf16.mxu0 %v5622
    %6459 = vmatpush1.bf16.msra.mxu0 %v5621
    %6460 = vmatprep.subr.bf16.mxu0 %v5628
    %6461 = vmatpush1.bf16.msra.mxu0 %v5627
    %6462 = vmatprep.subr.bf16.mxu0 %v5634
    %6463 = vmatpush1.bf16.msra.mxu0 %v5633
    %6464 = vmatprep.subr.bf16.mxu0 %v5640
    %6465 = vmatpush1.bf16.msra.mxu0 %v5639
    %6466 = vmatprep.subr.bf16.mxu0 %v5646
    %6467 = vmatpush1.bf16.msra.mxu0 %v5645
    %6468 = vmatprep.subr.bf16.mxu0 %v5652
    %6469 = vmatpush1.bf16.msra.mxu0 %v5651
    %6470 = vmatprep.subr.bf16.mxu0 %v5658
    %6471 = vmatpush1.bf16.msra.mxu0 %v5657
    %6472 = vmatprep.subr.bf16.mxu0 %v5664
    %6473 = vmatpush1.bf16.msra.mxu0 %v5663
    %6474 = vmatprep.subr.bf16.mxu0 %v5670
    %6475 = vmatpush1.bf16.msra.mxu0 %v5669
    %6476 = vmatprep.subr.bf16.mxu0 %v5676
    %6477 = vmatpush1.bf16.msra.mxu0 %v5675
    %6478 = vmatprep.subr.bf16.mxu0 %v5682
    %6479 = vmatpush1.bf16.msra.mxu0 %v5681
    %6480 = vmatprep.subr.bf16.mxu0 %v5688
    %6481 = vmatpush1.bf16.msra.mxu0 %v5687
    %6482 = vmatprep.subr.bf16.mxu0 %v5694
    %6483 = vmatpush1.bf16.msra.mxu0 %v5693
    %6484 = vmatprep.mubr.bf16.mxu0 %v112
    %6485 = vmatmul.mubr.bf16.gmra.mrb[0].mxu0 %v111
    %v6486 = vpop.f32.mrb[0].mxu0
    %v6487 = vadd.f32 %v6434, %v6486
    %v6488 = vpop.f32.mrb[0].mxu0
    %v6489 = vadd.f32 %v6436, %v6488
    %v6490 = vpop.f32.mrb[0].mxu0
    %v6491 = vadd.f32 %v6438, %v6490
    %v6492 = vpop.f32.mrb[0].mxu0
    %v6493 = vadd.f32 %v6440, %v6492
    %6494 = vmatprep.mubr.bf16.mxu0 %v120
    %6495 = vmatmul.mubr.bf16.gmra.mrb[0].mxu0 %v119
    %v6496 = vpop.f32.mrb[0].mxu0
    %v6497 = vadd.f32 %v6444, %v6496
    %v6498 = vpop.f32.mrb[0].mxu0
    %v6499 = vadd.f32 %v6446, %v6498
    %v6500 = vpop.f32.mrb[0].mxu0
    %v6501 = vadd.f32 %v6448, %v6500
    %v6502 = vpop.f32.mrb[0].mxu0
    %v6503 = vadd.f32 %v6450, %v6502
    %6504 = vdwg.mxu0
    %6505 = vmatprep.subr.bf16.mxu0 %v5318
    %6506 = vmatpush1.bf16.msra.mxu0 %v5317
    %6507 = vmatprep.subr.bf16.mxu0 %v5324
    %6508 = vmatpush1.bf16.msra.mxu0 %v5323
    %6509 = vmatprep.subr.bf16.mxu0 %v5330
    %6510 = vmatpush1.bf16.msra.mxu0 %v5329
    %6511 = vmatprep.subr.bf16.mxu0 %v5336
    %6512 = vmatpush1.bf16.msra.mxu0 %v5335
    %6513 = vmatprep.subr.bf16.mxu0 %v5342
    %6514 = vmatpush1.bf16.msra.mxu0 %v5341
    %6515 = vmatprep.subr.bf16.mxu0 %v5348
    %6516 = vmatpush1.bf16.msra.mxu0 %v5347
    %6517 = vmatprep.subr.bf16.mxu0 %v5354
    %6518 = vmatpush1.bf16.msra.mxu0 %v5353
    %6519 = vmatprep.subr.bf16.mxu0 %v5360
    %6520 = vmatpush1.bf16.msra.mxu0 %v5359
    %6521 = vmatprep.subr.bf16.mxu0 %v5366
    %6522 = vmatpush1.bf16.msra.mxu0 %v5365
    %6523 = vmatprep.subr.bf16.mxu0 %v5372
    %6524 = vmatpush1.bf16.msra.mxu0 %v5371
    %6525 = vmatprep.subr.bf16.mxu0 %v5378
    %6526 = vmatpush1.bf16.msra.mxu0 %v5377
    %6527 = vmatprep.subr.bf16.mxu0 %v5384
    %6528 = vmatpush1.bf16.msra.mxu0 %v5383
    %6529 = vmatprep.subr.bf16.mxu0 %v5390
    %6530 = vmatpush1.bf16.msra.mxu0 %v5389
    %6531 = vmatprep.subr.bf16.mxu0 %v5396
    %6532 = vmatpush1.bf16.msra.mxu0 %v5395
    %6533 = vmatprep.subr.bf16.mxu0 %v5402
    %6534 = vmatpush1.bf16.msra.mxu0 %v5401
    %6535 = vmatprep.subr.bf16.mxu0 %v5408
    %6536 = vmatpush1.bf16.msra.mxu0 %v5407
    %6537 = vmatprep.mubr.bf16.mxu0 %v106
    %6538 = vmatmul.mubr.bf16.gmra.mrb[0].mxu0 %v105
    %v6539 = vpop.f32.mrb[0].mxu0
    %v6540 = vadd.f32 0.0, %v6539
    %v6541 = vpop.f32.mrb[0].mxu0
    %v6542 = vadd.f32 0.0, %v6541
    %v6543 = vpop.f32.mrb[0].mxu0
    %v6544 = vadd.f32 0.0, %v6543
    %v6545 = vpop.f32.mrb[0].mxu0
    %v6546 = vadd.f32 0.0, %v6545
    %6547 = vmatprep.mubr.bf16.mxu0 %v114
    %6548 = vmatmul.mubr.bf16.gmra.mrb[0].mxu0 %v113
    %v6549 = vpop.f32.mrb[0].mxu0
    %v6550 = vadd.f32 0.0, %v6549
    %v6551 = vpop.f32.mrb[0].mxu0
    %v6552 = vadd.f32 0.0, %v6551
    %v6553 = vpop.f32.mrb[0].mxu0
    %v6554 = vadd.f32 0.0, %v6553
    %v6555 = vpop.f32.mrb[0].mxu0
    %v6556 = vadd.f32 0.0, %v6555
    %6557 = vdwg.mxu0
    %6558 = vmatprep.subr.bf16.mxu0 %v5414
    %6559 = vmatpush1.bf16.msra.mxu0 %v5413
    %6560 = vmatprep.subr.bf16.mxu0 %v5420
    %6561 = vmatpush1.bf16.msra.mxu0 %v5419
    %6562 = vmatprep.subr.bf16.mxu0 %v5426
    %6563 = vmatpush1.bf16.msra.mxu0 %v5425
    %6564 = vmatprep.subr.bf16.mxu0 %v5432
    %6565 = vmatpush1.bf16.msra.mxu0 %v5431
    %6566 = vmatprep.subr.bf16.mxu0 %v5438
    %6567 = vmatpush1.bf16.msra.mxu0 %v5437
    %6568 = vmatprep.subr.bf16.mxu0 %v5444
    %6569 = vmatpush1.bf16.msra.mxu0 %v5443
    %6570 = vmatprep.subr.bf16.mxu0 %v5450
    %6571 = vmatpush1.bf16.msra.mxu0 %v5449
    %6572 = vmatprep.subr.bf16.mxu0 %v5456
    %6573 = vmatpush1.bf16.msra.mxu0 %v5455
    %6574 = vmatprep.subr.bf16.mxu0 %v5462
    %6575 = vmatpush1.bf16.msra.mxu0 %v5461
    %6576 = vmatprep.subr.bf16.mxu0 %v5468
    %6577 = vmatpush1.bf16.msra.mxu0 %v5467
    %6578 = vmatprep.subr.bf16.mxu0 %v5474
    %6579 = vmatpush1.bf16.msra.mxu0 %v5473
    %6580 = vmatprep.subr.bf16.mxu0 %v5480
    %6581 = vmatpush1.bf16.msra.mxu0 %v5479
    %6582 = vmatprep.subr.bf16.mxu0 %v5486
    %6583 = vmatpush1.bf16.msra.mxu0 %v5485
    %6584 = vmatprep.subr.bf16.mxu0 %v5492
    %6585 = vmatpush1.bf16.msra.mxu0 %v5491
    %6586 = vmatprep.subr.bf16.mxu0 %v5498
    %6587 = vmatpush1.bf16.msra.mxu0 %v5497
    %6588 = vmatprep.subr.bf16.mxu0 %v5504
    %6589 = vmatpush1.bf16.msra.mxu0 %v5503
    %6590 = vmatprep.mubr.bf16.mxu0 %v108
    %6591 = vmatmul.mubr.bf16.gmra.mrb[0].mxu0 %v107
    %v6592 = vpop.f32.mrb[0].mxu0
    %v6593 = vadd.f32 %v6540, %v6592
    %v6594 = vpop.f32.mrb[0].mxu0
    %v6595 = vadd.f32 %v6542, %v6594
    %v6596 = vpop.f32.mrb[0].mxu0
    %v6597 = vadd.f32 %v6544, %v6596
    %v6598 = vpop.f32.mrb[0].mxu0
    %v6599 = vadd.f32 %v6546, %v6598
    %6600 = vmatprep.mubr.bf16.mxu0 %v116
    %6601 = vmatmul.mubr.bf16.gmra.mrb[0].mxu0 %v115
    %v6602 = vpop.f32.mrb[0].mxu0
    %v6603 = vadd.f32 %v6550, %v6602
    %v6604 = vpop.f32.mrb[0].mxu0
    %v6605 = vadd.f32 %v6552, %v6604
    %v6606 = vpop.f32.mrb[0].mxu0
    %v6607 = vadd.f32 %v6554, %v6606
    %v6608 = vpop.f32.mrb[0].mxu0
    %v6609 = vadd.f32 %v6556, %v6608
    %6610 = vdwg.mxu0
    %6611 = vmatprep.subr.bf16.mxu0 %v5510
    %6612 = vmatpush1.bf16.msra.mxu0 %v5509
    %6613 = vmatprep.subr.bf16.mxu0 %v5516
    %6614 = vmatpush1.bf16.msra.mxu0 %v5515
    %6615 = vmatprep.subr.bf16.mxu0 %v5522
    %6616 = vmatpush1.bf16.msra.mxu0 %v5521
    %6617 = vmatprep.subr.bf16.mxu0 %v5528
    %6618 = vmatpush1.bf16.msra.mxu0 %v5527
    %6619 = vmatprep.subr.bf16.mxu0 %v5534
    %6620 = vmatpush1.bf16.msra.mxu0 %v5533
    %6621 = vmatprep.subr.bf16.mxu0 %v5540
    %6622 = vmatpush1.bf16.msra.mxu0 %v5539
    %6623 = vmatprep.subr.bf16.mxu0 %v5546
    %6624 = vmatpush1.bf16.msra.mxu0 %v5545
    %6625 = vmatprep.subr.bf16.mxu0 %v5552
    %6626 = vmatpush1.bf16.msra.mxu0 %v5551
    %6627 = vmatprep.subr.bf16.mxu0 %v5558
    %6628 = vmatpush1.bf16.msra.mxu0 %v5557
    %6629 = vmatprep.subr.bf16.mxu0 %v5564
    %6630 = vmatpush1.bf16.msra.mxu0 %v5563
    %6631 = vmatprep.subr.bf16.mxu0 %v5570
    %6632 = vmatpush1.bf16.msra.mxu0 %v5569
    %6633 = vmatprep.subr.bf16.mxu0 %v5576
    %6634 = vmatpush1.bf16.msra.mxu0 %v5575
    %6635 = vmatprep.subr.bf16.mxu0 %v5582
    %6636 = vmatpush1.bf16.msra.mxu0 %v5581
    %6637 = vmatprep.subr.bf16.mxu0 %v5588
    %6638 = vmatpush1.bf16.msra.mxu0 %v5587
    %6639 = vmatprep.subr.bf16.mxu0 %v5594
    %6640 = vmatpush1.bf16.msra.mxu0 %v5593
    %6641 = vmatprep.subr.bf16.mxu0 %v5600
    %6642 = vmatpush1.bf16.msra.mxu0 %v5599
    %6643 = vmatprep.mubr.bf16.mxu0 %v110
    %6644 = vmatmul.mubr.bf16.gmra.mrb[0].mxu0 %v109
    %v6645 = vpop.f32.mrb[0].mxu0
    %v6646 = vadd.f32 %v6593, %v6645
    %v6647 = vpop.f32.mrb[0].mxu0
    %v6648 = vadd.f32 %v6595, %v6647
    %v6649 = vpop.f32.mrb[0].mxu0
    %v6650 = vadd.f32 %v6597, %v6649
    %v6651 = vpop.f32.mrb[0].mxu0
    %v6652 = vadd.f32 %v6599, %v6651
    %6653 = vmatprep.mubr.bf16.mxu0 %v118
    %6654 = vmatmul.mubr.bf16.gmra.mrb[0].mxu0 %v117
    %v6655 = vpop.f32.mrb[0].mxu0
    %v6656 = vadd.f32 %v6603, %v6655
    %v6657 = vpop.f32.mrb[0].mxu0
    %v6658 = vadd.f32 %v6605, %v6657
    %v6659 = vpop.f32.mrb[0].mxu0
    %v6660 = vadd.f32 %v6607, %v6659
    %v6661 = vpop.f32.mrb[0].mxu0
    %v6662 = vadd.f32 %v6609, %v6661
    %6663 = vdwg.mxu0
    %6664 = vmatprep.subr.bf16.mxu0 %v5606
    %6665 = vmatpush1.bf16.msra.mxu0 %v5605
    %6666 = vmatprep.subr.bf16.mxu0 %v5612
    %6667 = vmatpush1.bf16.msra.mxu0 %v5611
    %6668 = vmatprep.subr.bf16.mxu0 %v5618
    %6669 = vmatpush1.bf16.msra.mxu0 %v5617
    %6670 = vmatprep.subr.bf16.mxu0 %v5624
    %6671 = vmatpush1.bf16.msra.mxu0 %v5623
    %6672 = vmatprep.subr.bf16.mxu0 %v5630
    %6673 = vmatpush1.bf16.msra.mxu0 %v5629
    %6674 = vmatprep.subr.bf16.mxu0 %v5636
    %6675 = vmatpush1.bf16.msra.mxu0 %v5635
    %6676 = vmatprep.subr.bf16.mxu0 %v5642
    %6677 = vmatpush1.bf16.msra.mxu0 %v5641
    %6678 = vmatprep.subr.bf16.mxu0 %v5648
    %6679 = vmatpush1.bf16.msra.mxu0 %v5647
    %6680 = vmatprep.subr.bf16.mxu0 %v5654
    %6681 = vmatpush1.bf16.msra.mxu0 %v5653
    %6682 = vmatprep.subr.bf16.mxu0 %v5660
    %6683 = vmatpush1.bf16.msra.mxu0 %v5659
    %6684 = vmatprep.subr.bf16.mxu0 %v5666
    %6685 = vmatpush1.bf16.msra.mxu0 %v5665
    %6686 = vmatprep.subr.bf16.mxu0 %v5672
    %6687 = vmatpush1.bf16.msra.mxu0 %v5671
    %6688 = vmatprep.subr.bf16.mxu0 %v5678
    %6689 = vmatpush1.bf16.msra.mxu0 %v5677
    %6690 = vmatprep.subr.bf16.mxu0 %v5684
    %6691 = vmatpush1.bf16.msra.mxu0 %v5683
    %6692 = vmatprep.subr.bf16.mxu0 %v5690
    %6693 = vmatpush1.bf16.msra.mxu0 %v5689
    %6694 = vmatprep.subr.bf16.mxu0 %v5696
    %6695 = vmatpush1.bf16.msra.mxu0 %v5695
    %6696 = vmatprep.mubr.bf16.mxu0 %v112
    %6697 = vmatmul.mubr.bf16.gmra.mrb[0].mxu0 %v111
    %v6698 = vpop.f32.mrb[0].mxu0
    %v6699 = vadd.f32 %v6646, %v6698
    %v6700 = vpop.f32.mrb[0].mxu0
    %v6701 = vadd.f32 %v6648, %v6700
    %v6702 = vpop.f32.mrb[0].mxu0
    %v6703 = vadd.f32 %v6650, %v6702
    %v6704 = vpop.f32.mrb[0].mxu0
    %v6705 = vadd.f32 %v6652, %v6704
    %6706 = vmatprep.mubr.bf16.mxu0 %v120
    %6707 = vmatmul.mubr.bf16.gmra.mrb[0].mxu0 %v119
    %v6708 = vpop.f32.mrb[0].mxu0
    %v6709 = vadd.f32 %v6656, %v6708
    %v6710 = vpop.f32.mrb[0].mxu0
    %v6711 = vadd.f32 %v6658, %v6710
    %v6712 = vpop.f32.mrb[0].mxu0
    %v6713 = vadd.f32 %v6660, %v6712
    %v6714 = vpop.f32.mrb[0].mxu0
    %v6715 = vadd.f32 %v6662, %v6714
    %6716 = vdwg.mxu0
    %v6717 = vadd.f32 %v3719, %v6275
    %v6718 = vadd.f32 %v3721, %v6277
    %v6719 = vadd.f32 %v3931, %v6487
    %v6720 = vadd.f32 %v3933, %v6489
    %v6721 = vadd.f32 %v4143, %v6699
    %v6722 = vadd.f32 %v4145, %v6701
    %v6723 = vadd.f32 %v3723, %v6279
    %v6724 = vadd.f32 %v3725, %v6281
    %v6725 = vadd.f32 %v3935, %v6491
    %v6726 = vadd.f32 %v3937, %v6493
    %v6727 = vadd.f32 %v4147, %v6703
    %v6728 = vadd.f32 %v4149, %v6705
    %v6729 = vadd.f32 %v3729, %v6285
    %v6730 = vadd.f32 %v3731, %v6287
    %v6731 = vadd.f32 %v3941, %v6497
    %v6732 = vadd.f32 %v3943, %v6499
    %v6733 = vadd.f32 %v4153, %v6709
    %v6734 = vadd.f32 %v4155, %v6711
    %v6735 = vadd.f32 %v3733, %v6289
    %v6736 = vadd.f32 %v3735, %v6291
    %v6737 = vadd.f32 %v3945, %v6501
    %v6738 = vadd.f32 %v3947, %v6503
    %v6739 = vadd.f32 %v4157, %v6713
    %v6740 = vadd.f32 %v4159, %v6715
    %v6741 = vmul.f32 %v6717, %v6717
    %v6742 = vmul.f32 %v6718, %v6718
    %v6743 = vmul.f32 %v6719, %v6719
    %v6744 = vmul.f32 %v6723, %v6723
    %v6745 = vmul.f32 %v6724, %v6724
    %v6746 = vmul.f32 %v6725, %v6725
    %v6747 = vmul.f32 %v6729, %v6729
    %v6748 = vmul.f32 %v6730, %v6730
    %v6749 = vmul.f32 %v6731, %v6731
    %v6750 = vmul.f32 %v6735, %v6735
    %v6751 = vmul.f32 %v6736, %v6736
    %v6752 = vmul.f32 %v6737, %v6737
    %v6753 = vmul.f32 %v6720, %v6720
    %v6754 = vmul.f32 %v6721, %v6721
    %v6755 = vmul.f32 %v6722, %v6722
    %v6756 = vmul.f32 %v6726, %v6726
    %v6757 = vmul.f32 %v6727, %v6727
    %v6758 = vmul.f32 %v6728, %v6728
    %v6759 = vmul.f32 %v6732, %v6732
    %v6760 = vmul.f32 %v6733, %v6733
    %v6761 = vmul.f32 %v6734, %v6734
    %v6762 = vmul.f32 %v6738, %v6738
    %v6763 = vmul.f32 %v6739, %v6739
    %v6764 = vmul.f32 %v6740, %v6740
    %v6765 = vadd.f32 %v6741, %v6753
    %v6766 = vadd.f32 %v6742, %v6754
    %v6767 = vadd.f32 %v6743, %v6755
    %v6768 = vadd.f32 %v6744, %v6756
    %v6769 = vadd.f32 %v6745, %v6757
    %v6770 = vadd.f32 %v6746, %v6758
    %v6771 = vadd.f32 %v6747, %v6759
    %v6772 = vadd.f32 %v6748, %v6760
    %v6773 = vadd.f32 %v6749, %v6761
    %v6774 = vadd.f32 %v6750, %v6762
    %v6775 = vadd.f32 %v6751, %v6763
    %v6776 = vadd.f32 %v6752, %v6764
    %v6777 = vadd.f32 %v6765, 1e-09
    %v6778 = vadd.f32 %v6766, 1e-09
    %v6779 = vadd.f32 %v6767, 1e-09
    %v6780 = vadd.f32 %v6768, 1e-09
    %v6781 = vadd.f32 %v6769, 1e-09
    %v6782 = vadd.f32 %v6770, 1e-09
    %v6783 = vadd.f32 %v6771, 1e-09
    %v6784 = vadd.f32 %v6772, 1e-09
    %v6785 = vadd.f32 %v6773, 1e-09
    %v6786 = vadd.f32 %v6774, 1e-09
    %v6787 = vadd.f32 %v6775, 1e-09
    %v6788 = vadd.f32 %v6776, 1e-09
    %v6789 = vrsqrt.pop %v6777
    %v6790 = vmul.f32 %v6777, %v6789
    %vm6791 = vcmp.eq.f32.partialorder %v6777, inf
    %v6792 = vsel %vm6791, %v6777, %v6790
    %vm6793 = vcmp.eq.f32.partialorder %v6777, 0.0
    %v6794 = vand.u32 %v6777, 2147483648
    %v6795 = vsel %vm6793, %v6794, %v6792
    %v6796 = vrsqrt.pop %v6778
    %v6797 = vmul.f32 %v6778, %v6796
    %vm6798 = vcmp.eq.f32.partialorder %v6778, inf
    %v6799 = vsel %vm6798, %v6778, %v6797
    %vm6800 = vcmp.eq.f32.partialorder %v6778, 0.0
    %v6801 = vand.u32 %v6778, 2147483648
    %v6802 = vsel %vm6800, %v6801, %v6799
    %v6803 = vrsqrt.pop %v6779
    %v6804 = vmul.f32 %v6779, %v6803
    %vm6805 = vcmp.eq.f32.partialorder %v6779, inf
    %v6806 = vsel %vm6805, %v6779, %v6804
    %vm6807 = vcmp.eq.f32.partialorder %v6779, 0.0
    %v6808 = vand.u32 %v6779, 2147483648
    %v6809 = vsel %vm6807, %v6808, %v6806
    %v6810 = vrsqrt.pop %v6780
    %v6811 = vmul.f32 %v6780, %v6810
    %vm6812 = vcmp.eq.f32.partialorder %v6780, inf
    %v6813 = vsel %vm6812, %v6780, %v6811
    %vm6814 = vcmp.eq.f32.partialorder %v6780, 0.0
    %v6815 = vand.u32 %v6780, 2147483648
    %v6816 = vsel %vm6814, %v6815, %v6813
    %v6817 = vrsqrt.pop %v6781
    %v6818 = vmul.f32 %v6781, %v6817
    %vm6819 = vcmp.eq.f32.partialorder %v6781, inf
    %v6820 = vsel %vm6819, %v6781, %v6818
    %vm6821 = vcmp.eq.f32.partialorder %v6781, 0.0
    %v6822 = vand.u32 %v6781, 2147483648
    %v6823 = vsel %vm6821, %v6822, %v6820
    %v6824 = vrsqrt.pop %v6782
    %v6825 = vmul.f32 %v6782, %v6824
    %vm6826 = vcmp.eq.f32.partialorder %v6782, inf
    %v6827 = vsel %vm6826, %v6782, %v6825
    %vm6828 = vcmp.eq.f32.partialorder %v6782, 0.0
    %v6829 = vand.u32 %v6782, 2147483648
    %v6830 = vsel %vm6828, %v6829, %v6827
    %v6831 = vrsqrt.pop %v6783
    %v6832 = vmul.f32 %v6783, %v6831
    %vm6833 = vcmp.eq.f32.partialorder %v6783, inf
    %v6834 = vsel %vm6833, %v6783, %v6832
    %vm6835 = vcmp.eq.f32.partialorder %v6783, 0.0
    %v6836 = vand.u32 %v6783, 2147483648
    %v6837 = vsel %vm6835, %v6836, %v6834
    %v6838 = vrsqrt.pop %v6784
    %v6839 = vmul.f32 %v6784, %v6838
    %vm6840 = vcmp.eq.f32.partialorder %v6784, inf
    %v6841 = vsel %vm6840, %v6784, %v6839
    %vm6842 = vcmp.eq.f32.partialorder %v6784, 0.0
    %v6843 = vand.u32 %v6784, 2147483648
    %v6844 = vsel %vm6842, %v6843, %v6841
    %v6845 = vrsqrt.pop %v6785
    %v6846 = vmul.f32 %v6785, %v6845
    %vm6847 = vcmp.eq.f32.partialorder %v6785, inf
    %v6848 = vsel %vm6847, %v6785, %v6846
    %vm6849 = vcmp.eq.f32.partialorder %v6785, 0.0
    %v6850 = vand.u32 %v6785, 2147483648
    %v6851 = vsel %vm6849, %v6850, %v6848
    %v6852 = vrsqrt.pop %v6786
    %v6853 = vmul.f32 %v6786, %v6852
    %vm6854 = vcmp.eq.f32.partialorder %v6786, inf
    %v6855 = vsel %vm6854, %v6786, %v6853
    %vm6856 = vcmp.eq.f32.partialorder %v6786, 0.0
    %v6857 = vand.u32 %v6786, 2147483648
    %v6858 = vsel %vm6856, %v6857, %v6855
    %v6859 = vrsqrt.pop %v6787
    %v6860 = vmul.f32 %v6787, %v6859
    %vm6861 = vcmp.eq.f32.partialorder %v6787, inf
    %v6862 = vsel %vm6861, %v6787, %v6860
    %vm6863 = vcmp.eq.f32.partialorder %v6787, 0.0
    %v6864 = vand.u32 %v6787, 2147483648
    %v6865 = vsel %vm6863, %v6864, %v6862
    %v6866 = vrsqrt.pop %v6788
    %v6867 = vmul.f32 %v6788, %v6866
    %vm6868 = vcmp.eq.f32.partialorder %v6788, inf
    %v6869 = vsel %vm6868, %v6788, %v6867
    %vm6870 = vcmp.eq.f32.partialorder %v6788, 0.0
    %v6871 = vand.u32 %v6788, 2147483648
    %v6872 = vsel %vm6870, %v6871, %v6869
    %v6873 = vld [vmem:[#allocation8] sm:$0xff]
    %v6874 = vld [vmem:[#allocation8 + $0x8] sm:$0xff]
    %v6875 = vld [vmem:[#allocation8 + $0x10] sm:$0xff]
    %v6876 = vld [vmem:[#allocation8 + $0x18] sm:$0xff]
    %v6877 = vld [vmem:[#allocation8 + $0x20] sm:$0xff]
    %v6878 = vld [vmem:[#allocation8 + $0x28] sm:$0xff]
    %v6879 = vld [vmem:[#allocation8 + $0x30] sm:$0xff]
    %v6880 = vld [vmem:[#allocation8 + $0x38] sm:$0xff]
    %v6881 = vld [vmem:[#allocation8 + $0x40] sm:$0xff]
    %v6882 = vld [vmem:[#allocation8 + $0x48] sm:$0xff]
    %v6883 = vld [vmem:[#allocation8 + $0x50] sm:$0xff]
    %v6884 = vld [vmem:[#allocation8 + $0x58] sm:$0xff]
    %v6885 = vld [vmem:[#allocation8 + $0x60] sm:$0xff]
    %v6886 = vld [vmem:[#allocation8 + $0x68] sm:$0xff]
    %v6887 = vld [vmem:[#allocation8 + $0x70] sm:$0xff]
    %v6888 = vld [vmem:[#allocation8 + $0x78] sm:$0xff]
    %v6889 = vld [vmem:[#allocation8 + $0x80] sm:$0xff]
    %v6890 = vld [vmem:[#allocation8 + $0x88] sm:$0xff]
    %v6891 = vld [vmem:[#allocation8 + $0x90] sm:$0xff]
    %v6892 = vld [vmem:[#allocation8 + $0x98] sm:$0xff]
    %v6893 = vld [vmem:[#allocation8 + $0xa0] sm:$0xff]
    %v6894 = vld [vmem:[#allocation8 + $0xa8] sm:$0xff]
    %v6895 = vld [vmem:[#allocation8 + $0xb0] sm:$0xff]
    %v6896 = vld [vmem:[#allocation8 + $0xb8] sm:$0xff]
    %v6897 = vld [vmem:[#allocation8 + $0xc0] sm:$0xff]
    %v6898 = vld [vmem:[#allocation8 + $0xc8] sm:$0xff]
    %v6899 = vld [vmem:[#allocation8 + $0xd0] sm:$0xff]
    %v6900 = vld [vmem:[#allocation8 + $0xd8] sm:$0xff]
    %v6901 = vld [vmem:[#allocation8 + $0xe0] sm:$0xff]
    %v6902 = vld [vmem:[#allocation8 + $0xe8] sm:$0xff]
    %v6903 = vld [vmem:[#allocation8 + $0xf0] sm:$0xff]
    %v6904 = vld [vmem:[#allocation8 + $0xf8] sm:$0xff]
    %v6905 = vld [vmem:[#allocation8 + $0x100] sm:$0xff]
    %v6906 = vld [vmem:[#allocation8 + $0x108] sm:$0xff]
    %v6907 = vld [vmem:[#allocation8 + $0x110] sm:$0xff]
    %v6908 = vld [vmem:[#allocation8 + $0x118] sm:$0xff]
    %v6909 = vld [vmem:[#allocation8 + $0x120] sm:$0xff]
    %v6910 = vld [vmem:[#allocation8 + $0x128] sm:$0xff]
    %v6911 = vld [vmem:[#allocation8 + $0x130] sm:$0xff]
    %v6912 = vld [vmem:[#allocation8 + $0x138] sm:$0xff]
    %v6913 = vld [vmem:[#allocation8 + $0x140] sm:$0xff]
    %v6914 = vld [vmem:[#allocation8 + $0x148] sm:$0xff]
    %v6915 = vld [vmem:[#allocation8 + $0x150] sm:$0xff]
    %v6916 = vld [vmem:[#allocation8 + $0x158] sm:$0xff]
    %v6917 = vld [vmem:[#allocation8 + $0x160] sm:$0xff]
    %v6918 = vld [vmem:[#allocation8 + $0x168] sm:$0xff]
    %v6919 = vld [vmem:[#allocation8 + $0x170] sm:$0xff]
    %v6920 = vld [vmem:[#allocation8 + $0x178] sm:$0xff]
    %6921 = vmatprep.subr.mxu0 0.0
    %6922 = vmatpush1.msra.mxu0 %v6873
    %6923 = vmatprep.subr.mxu0 0.0
    %6924 = vmatpush1.msra.mxu0 %v6874
    %6925 = vmatprep.subr.mxu0 0.0
    %6926 = vmatpush1.msra.mxu0 %v6875
    %6927 = vmatprep.subr.mxu0 0.0
    %6928 = vmatpush1.msra.mxu0 %v6876
    %6929 = vmatprep.subr.mxu0 0.0
    %6930 = vmatpush1.msra.mxu0 %v6877
    %6931 = vmatprep.subr.mxu0 0.0
    %6932 = vmatpush1.msra.mxu0 %v6878
    %6933 = vmatprep.subr.mxu0 0.0
    %6934 = vmatpush1.msra.mxu0 %v6879
    %6935 = vmatprep.subr.mxu0 0.0
    %6936 = vmatpush1.msra.mxu0 %v6880
    %6937 = vmatprep.subr.mxu0 0.0
    %6938 = vmatpush1.msra.mxu0 %v6881
    %6939 = vmatprep.subr.mxu0 0.0
    %6940 = vmatpush1.msra.mxu0 %v6882
    %6941 = vmatprep.subr.mxu0 0.0
    %6942 = vmatpush1.msra.mxu0 %v6883
    %6943 = vmatprep.subr.mxu0 0.0
    %6944 = vmatpush1.msra.mxu0 %v6884
    %6945 = vmatprep.subr.mxu0 0.0
    %6946 = vmatpush1.msra.mxu0 %v6885
    %6947 = vmatprep.subr.mxu0 0.0
    %6948 = vmatpush1.msra.mxu0 %v6886
    %6949 = vmatprep.subr.mxu0 0.0
    %6950 = vmatpush1.msra.mxu0 %v6887
    %6951 = vmatprep.subr.mxu0 0.0
    %6952 = vmatpush1.msra.mxu0 %v6888
    %6953 = vmatprep.subr.mxu0 0.0
    %6954 = vmatpush1.msra.mxu0 %v6889
    %6955 = vmatprep.subr.mxu0 0.0
    %6956 = vmatpush1.msra.mxu0 %v6890
    %6957 = vmatprep.subr.mxu0 0.0
    %6958 = vmatpush1.msra.mxu0 %v6891
    %6959 = vmatprep.subr.mxu0 0.0
    %6960 = vmatpush1.msra.mxu0 %v6892
    %6961 = vmatprep.subr.mxu0 0.0
    %6962 = vmatpush1.msra.mxu0 %v6893
    %6963 = vmatprep.subr.mxu0 0.0
    %6964 = vmatpush1.msra.mxu0 %v6894
    %6965 = vmatprep.subr.mxu0 0.0
    %6966 = vmatpush1.msra.mxu0 %v6895
    %6967 = vmatprep.subr.mxu0 0.0
    %6968 = vmatpush1.msra.mxu0 %v6896
    %6969 = vmatprep.subr.mxu0 0.0
    %6970 = vmatpush1.msra.mxu0 %v6897
    %6971 = vmatprep.subr.mxu0 0.0
    %6972 = vmatpush1.msra.mxu0 %v6898
    %6973 = vmatprep.subr.mxu0 0.0
    %6974 = vmatpush1.msra.mxu0 %v6899
    %6975 = vmatprep.subr.mxu0 0.0
    %6976 = vmatpush1.msra.mxu0 %v6900
    %6977 = vmatprep.subr.mxu0 0.0
    %6978 = vmatpush1.msra.mxu0 %v6901
    %6979 = vmatprep.subr.mxu0 0.0
    %6980 = vmatpush1.msra.mxu0 %v6902
    %6981 = vmatprep.subr.mxu0 0.0
    %6982 = vmatpush1.msra.mxu0 %v6903
    %6983 = vmatprep.subr.mxu0 0.0
    %6984 = vmatpush1.msra.mxu0 %v6904
    %6985 = vmatprep.mubr.f32.mxu0 %v6802
    %6986 = vmatmul.mubr.f32.gmra.mrb[0].mxu0 %v6795
    %v6987 = vpop.f32.mrb[0].mxu0
    %v6988 = vadd.f32 0.0, %v6987
    %v6989 = vpop.f32.mrb[0].mxu0
    %6990 = vmatprep.mubr.f32.mxu0 %v6823
    %6991 = vmatmul.mubr.f32.gmra.mrb[0].mxu0 %v6816
    %v6992 = vpop.f32.mrb[0].mxu0
    %v6993 = vadd.f32 0.0, %v6992
    %v6994 = vpop.f32.mrb[0].mxu0
    %6995 = vmatprep.mubr.f32.mxu0 %v6844
    %6996 = vmatmul.mubr.f32.gmra.mrb[0].mxu0 %v6837
    %v6997 = vpop.f32.mrb[0].mxu0
    %v6998 = vadd.f32 0.0, %v6997
    %v6999 = vpop.f32.mrb[0].mxu0
    %7000 = vmatprep.mubr.f32.mxu0 %v6865
    %7001 = vmatmul.mubr.f32.gmra.mrb[0].mxu0 %v6858
    %v7002 = vpop.f32.mrb[0].mxu0
    %v7003 = vadd.f32 0.0, %v7002
    %v7004 = vpop.f32.mrb[0].mxu0
    %7005 = vdwg.mxu0
    %7006 = vmatprep.subr.mxu0 0.0
    %7007 = vmatpush1.msra.mxu0 %v6905
    %7008 = vmatprep.subr.mxu0 0.0
    %7009 = vmatpush1.msra.mxu0 %v6906
    %7010 = vmatprep.subr.mxu0 0.0
    %7011 = vmatpush1.msra.mxu0 %v6907
    %7012 = vmatprep.subr.mxu0 0.0
    %7013 = vmatpush1.msra.mxu0 %v6908
    %7014 = vmatprep.subr.mxu0 0.0
    %7015 = vmatpush1.msra.mxu0 %v6909
    %7016 = vmatprep.subr.mxu0 0.0
    %7017 = vmatpush1.msra.mxu0 %v6910
    %7018 = vmatprep.subr.mxu0 0.0
    %7019 = vmatpush1.msra.mxu0 %v6911
    %7020 = vmatprep.subr.mxu0 0.0
    %7021 = vmatpush1.msra.mxu0 %v6912
    %7022 = vmatprep.subr.mxu0 0.0
    %7023 = vmatpush1.msra.mxu0 %v6913
    %7024 = vmatprep.subr.mxu0 0.0
    %7025 = vmatpush1.msra.mxu0 %v6914
    %7026 = vmatprep.subr.mxu0 0.0
    %7027 = vmatpush1.msra.mxu0 %v6915
    %7028 = vmatprep.subr.mxu0 0.0
    %7029 = vmatpush1.msra.mxu0 %v6916
    %7030 = vmatprep.subr.mxu0 0.0
    %7031 = vmatpush1.msra.mxu0 %v6917
    %7032 = vmatprep.subr.mxu0 0.0
    %7033 = vmatpush1.msra.mxu0 %v6918
    %7034 = vmatprep.subr.mxu0 0.0
    %7035 = vmatpush1.msra.mxu0 %v6919
    %7036 = vmatprep.subr.mxu0 0.0
    %7037 = vmatpush1.msra.mxu0 %v6920
    %7038 = vmatprep.subr.mxu0 0.0
    %7039 = vmatpush1.msra.mxu0 0.0
    %7040 = vmatprep.subr.mxu0 0.0
    %7041 = vmatpush1.msra.mxu0 0.0
    %7042 = vmatprep.subr.mxu0 0.0
    %7043 = vmatpush1.msra.mxu0 0.0
    %7044 = vmatprep.subr.mxu0 0.0
    %7045 = vmatpush1.msra.mxu0 0.0
    %7046 = vmatprep.subr.mxu0 0.0
    %7047 = vmatpush1.msra.mxu0 0.0
    %7048 = vmatprep.subr.mxu0 0.0
    %7049 = vmatpush1.msra.mxu0 0.0
    %7050 = vmatprep.subr.mxu0 0.0
    %7051 = vmatpush1.msra.mxu0 0.0
    %7052 = vmatprep.subr.mxu0 0.0
    %7053 = vmatpush1.msra.mxu0 0.0
    %7054 = vmatprep.subr.mxu0 0.0
    %7055 = vmatpush1.msra.mxu0 0.0
    %7056 = vmatprep.subr.mxu0 0.0
    %7057 = vmatpush1.msra.mxu0 0.0
    %7058 = vmatprep.subr.mxu0 0.0
    %7059 = vmatpush1.msra.mxu0 0.0
    %7060 = vmatprep.subr.mxu0 0.0
    %7061 = vmatpush1.msra.mxu0 0.0
    %7062 = vmatprep.subr.mxu0 0.0
    %7063 = vmatpush1.msra.mxu0 0.0
    %7064 = vmatprep.subr.mxu0 0.0
    %7065 = vmatpush1.msra.mxu0 0.0
    %7066 = vmatprep.subr.mxu0 0.0
    %7067 = vmatpush1.msra.mxu0 0.0
    %7068 = vmatprep.subr.mxu0 0.0
    %7069 = vmatpush1.msra.mxu0 0.0
    %7070 = vmatprep.mubr.f32.mxu0 0.0
    %7071 = vmatmul.mubr.f32.gmra.mrb[0].mxu0 %v6809
    %v7072 = vpop.f32.mrb[0].mxu0
    %v7073 = vadd.f32 %v6988, %v7072
    %v7074 = vpop.f32.mrb[0].mxu0
    %7075 = vmatprep.mubr.f32.mxu0 0.0
    %7076 = vmatmul.mubr.f32.gmra.mrb[0].mxu0 %v6830
    %v7077 = vpop.f32.mrb[0].mxu0
    %v7078 = vadd.f32 %v6993, %v7077
    %v7079 = vpop.f32.mrb[0].mxu0
    %7080 = vmatprep.mubr.f32.mxu0 0.0
    %7081 = vmatmul.mubr.f32.gmra.mrb[0].mxu0 %v6851
    %v7082 = vpop.f32.mrb[0].mxu0
    %v7083 = vadd.f32 %v6998, %v7082
    %v7084 = vpop.f32.mrb[0].mxu0
    %7085 = vmatprep.mubr.f32.mxu0 0.0
    %7086 = vmatmul.mubr.f32.gmra.mrb[0].mxu0 %v6872
    %v7087 = vpop.f32.mrb[0].mxu0
    %v7088 = vadd.f32 %v7003, %v7087
    %v7089 = vpop.f32.mrb[0].mxu0
    %7090 = vdwg.mxu0
    %v7091 = vmax.f32 %v7073, 1e-05
    %v7092 = vmax.f32 %v7078, 1e-05
    %v7093 = vmax.f32 %v7083, 1e-05
    %v7094 = vmax.f32 %v7088, 1e-05
    %v7095 = vlog2.pop %v7091
    %v7096 = vmul.f32 %v7095, 0.6931472
    %v7097 = vlog2.pop %v7092
    %v7098 = vmul.f32 %v7097, 0.6931472
    %v7099 = vlog2.pop %v7093
    %v7100 = vmul.f32 %v7099, 0.6931472
    %v7101 = vlog2.pop %v7094
    %v7102 = vmul.f32 %v7101, 0.6931472
    %7103 = vst [vmem:[#allocation10] sm:$0xff] %v7096
    %7104 = vst [vmem:[#allocation10 + $0x8] sm:$0xff] %v7098
    %7105 = vst [vmem:[#allocation10 + $0x10] sm:$0xff] %v7100
    %7106 = vst [vmem:[#allocation10 + $0x18] sm:$0xff] %v7102
    // Predicated region
    $region34: #{tpu_custom_call.1} parent=1 // pred_check
      _
    $region35: #{tpu_custom_call.1} parent=1 // pred_check_branch
      %7108 = sbr.rel (0) target = $region37
    $region36: #{tpu_custom_call.1} parent=1 // pred_region
      %s7110 = ssub.s32 512, 512
      %7111 = vsyncadd [#allocation4], %s7110
      %s7112 = sshll.u32 [#allocation10], 4
      %s7113 = int_to_ptr.vmem [resolvable:$true] %s7112
      %7118 = dma.vmem_to_hbm [thread:$0]  %s7113, 512, %s4, [#allocation4], 128, 128, 8
    $region37: #{tpu_custom_call.1} parent=1 // pred_fallthru
      _
    // Predicated region
    $region38: #{tpu_custom_call.1} parent=1 // pred_check
      _
    $region39: #{tpu_custom_call.1} parent=1 // pred_check_branch
      %7120 = sbr.rel (0) target = $region41
    $region40: #{tpu_custom_call.1} parent=1 // pred_region
      %7121 = dma.done [#allocation4], 512
    $region41: #{tpu_custom_call.1} parent=1 // pred_fallthru
      _
    %7122 = vsyncpa [#allocation3], 1
    %7123 = vsyncpa [#allocation6], 1
    %7124 = vsyncpa [#allocation9], 1
    %7125 = vsyncpa [#allocation4], 1

</llo_original>
